<compile_context>
chip_gen: v6e
topology: v6e:2x2x1
jax: 0.10.0
libtpu: 0.0.40
codegen_flags: <defaults>
</compile_context>

<pallas_src>
import math

import jax
import jax.numpy as jnp
from jax.experimental import pallas as pl
from jax.experimental.pallas import tpu as pltpu  # noqa: F401  (TPU backend)

# Model hyper-parameters (small, consistent with the module's forward).
D_MODEL = 32
N_HEAD = 4
HEAD_DIM = D_MODEL // N_HEAD
D_FF = 64
SEQ = 16
BATCH = 2
NUM_LAYERS = 2
LN_EPS = 1e-5


def encoder_kernel(x_ref, wa_ref, w2_ref, vec_ref, o_ref):
    """Whole NUM_LAYERS encoder stack, single invocation, flat (B*S, D) activations.

    x_ref   : (B*S, D)        activations
    wa_ref  : (D, 3D+D+D_FF)  packed [wqkv(Q pre-scaled) | wo | w1]
    w2_ref  : (D_FF, D)
    vec_ref : (8, 3D)         packed rows [bqkv, bo, ln1g, ln1b, b1, b2, ln2g, ln2b]
    """
    N, D = x_ref.shape                      # N = B*S
    B, S, H, Dh = BATCH, N // BATCH, N_HEAD, HEAD_DIM

    x = x_ref[...]

    # ---- vector params: load + broadcast once, reused by both layers ----
    bqkv = jnp.broadcast_to(vec_ref[0:1, 0:3 * D], (N, 3 * D))
    bo   = jnp.broadcast_to(vec_ref[1:2, 0:D], (N, D))
    ln1g = jnp.broadcast_to(vec_ref[2:3, 0:D], (N, D))
    ln1b = jnp.broadcast_to(vec_ref[3:4, 0:D], (N, D))
    b1   = jnp.broadcast_to(vec_ref[4:5, 0:D_FF], (N, D_FF))
    b2   = jnp.broadcast_to(vec_ref[5:6, 0:D], (N, D))
    ln2g = jnp.broadcast_to(vec_ref[6:7, 0:D], (N, D))
    ln2b = jnp.broadcast_to(vec_ref[7:8, 0:D], (N, D))

    def layernorm(v, g, b):
        # PyTorch nn.LayerNorm semantics: biased variance, eps inside rsqrt.
        mu = jnp.mean(v, axis=-1, keepdims=True)
        vc = v - mu
        var = jnp.mean(vc * vc, axis=-1, keepdims=True)
        return vc * jax.lax.rsqrt(var + LN_EPS) * g + b

    def softmax_lastdim(s):
        # max-subtracted softmax; divide replaced by EUP reciprocal + one
        # Newton-Raphson step (keeps full f32-class precision).
        s = s - jnp.max(s, axis=-1, keepdims=True)
        p = jnp.exp(s)
        den = jnp.sum(p, axis=-1, keepdims=True)
        inv = pl.reciprocal(den, approx=True)
        inv = inv * (2.0 - den * inv)
        return p * inv

    def one_layer(xf):                       # xf: (N, D) flat
        # ---- fused QKV projection over all N rows (Q pre-scaled at pack time) ----
        qkv = jnp.dot(xf, wa_ref[:, 0:3 * D],
                      preferred_element_type=jnp.float32) + bqkv
        qkv3 = qkv.reshape(B, S, 3 * D)
        q3 = qkv3[:, :, 0:D]
        k3 = qkv3[:, :, D:2 * D]
        v3 = qkv3[:, :, 2 * D:3 * D]

        # ---- head-major batching: (H*B, S, Dh), leading-axis concat is cheap ----
        qh = jnp.concatenate([q3[:, :, h * Dh:(h + 1) * Dh] for h in range(H)], axis=0)
        kh = jnp.concatenate([k3[:, :, h * Dh:(h + 1) * Dh] for h in range(H)], axis=0)
        vh = jnp.concatenate([v3[:, :, h * Dh:(h + 1) * Dh] for h in range(H)], axis=0)

        # ---- one batched score einsum + ONE softmax + one batched PV einsum ----
        s = jnp.einsum('nqd,nkd->nqk', qh, kh,
                       preferred_element_type=jnp.float32)          # (H*B, S, S)
        p = softmax_lastdim(s)
        oh = jnp.einsum('nqk,nkd->nqd', p, vh,
                        preferred_element_type=jnp.float32)         # (H*B, S, Dh)

        # ---- merge heads back to lanes, output projection over all N rows ----
        attn3 = jnp.concatenate([oh[h * B:(h + 1) * B] for h in range(H)], axis=-1)
        attn = jnp.dot(attn3.reshape(N, D), wa_ref[:, 3 * D:4 * D],
                       preferred_element_type=jnp.float32) + bo

        # ---- residual + LayerNorm 1 ----
        y = layernorm(xf + attn, ln1g, ln1b)

        # ---- feed-forward over all N rows ----
        h1 = jnp.maximum(jnp.dot(y, wa_ref[:, 4 * D:4 * D + D_FF],
                                 preferred_element_type=jnp.float32) + b1, 0.0)
        h2 = jnp.dot(h1, w2_ref[...], preferred_element_type=jnp.float32) + b2

        # ---- residual + LayerNorm 2 ----
        return layernorm(y + h2, ln2g, ln2b)

    # Both layers fused in one kernel; activation stays in vregs/VMEM.
    for _ in range(NUM_LAYERS):
        x = one_layer(x)

    o_ref[...] = x.astype(o_ref.dtype)


@jax.jit
def transformer_encoder(x, wa, w2, vec):
    """Entire encoder stack in one spec-less pallas_call (no grid, whole arrays in VMEM)."""
    B, S, D = x.shape
    xf = x.reshape(B * S, D)                 # flat (32, 32) at the kernel boundary
    out = pl.pallas_call(
        encoder_kernel,
        out_shape=jax.ShapeDtypeStruct((B * S, D), x.dtype),
    )(xf, wa, w2, vec)
    return out.reshape(B, S, D)


# ------------------ parameter construction & packing ------------------
def make_params(key):
    """Canonical (PyTorch-layout) parameters, shared by all layers."""
    ks = jax.random.split(key, 10)
    scale = 0.05
    wqkv = scale * jax.random.normal(ks[0], (D_MODEL, 3 * D_MODEL), jnp.float32)
    bqkv = 0.02 * jax.random.normal(ks[1], (1, 3 * D_MODEL), jnp.float32)
    wo = scale * jax.random.normal(ks[2], (D_MODEL, D_MODEL), jnp.float32)
    bo = 0.02 * jax.random.normal(ks[3], (1, D_MODEL), jnp.float32)
    ln1g = 1.0 + 0.05 * jax.random.normal(ks[4], (1, D_MODEL), jnp.float32)
    ln1b = 0.02 * jax.random.normal(ks[5], (1, D_MODEL), jnp.float32)
    w1 = scale * jax.random.normal(ks[6], (D_MODEL, D_FF), jnp.float32)
    b1 = 0.02 * jax.random.normal(ks[7], (1, D_FF), jnp.float32)
    w2 = scale * jax.random.normal(ks[8], (D_FF, D_MODEL), jnp.float32)
    b2 = 0.02 * jax.random.normal(ks[9], (1, D_MODEL), jnp.float32)
    ln2g = jnp.ones((1, D_MODEL), jnp.float32)
    ln2b = jnp.zeros((1, D_MODEL), jnp.float32)
    return [wqkv, bqkv, wo, bo, ln1g, ln1b, w1, b1, w2, b2, ln2g, ln2b]


def pack_params(params):
    """Pack 13 tiny arrays into 3 kernel inputs; fold 1/sqrt(Dh) into Q columns."""
    (wqkv, bqkv, wo, bo, ln1g, ln1b, w1, b1, w2, b2, ln2g, ln2b) = params
    scale = 1.0 / math.sqrt(HEAD_DIM)
    wqkv_s = jnp.concatenate([wqkv[:, :D_MODEL] * scale, wqkv[:, D_MODEL:]], axis=1)
    bqkv_s = jnp.concatenate([bqkv[:, :D_MODEL] * scale, bqkv[:, D_MODEL:]], axis=1)

    # weights: (D, 3D | D | D_FF) = (32, 192)
    wa = jnp.concatenate([wqkv_s, wo, w1], axis=1)

    # vectors: (8, 3D) rows [bqkv, bo, ln1g, ln1b, b1, b2, ln2g, ln2b], zero-padded
    width = 3 * D_MODEL

    def row(v):
        v = v.reshape(1, -1)
        return jnp.pad(v, ((0, 0), (0, width - v.shape[1])))

    vec = jnp.concatenate([row(bqkv_s), row(bo), row(ln1g), row(ln1b),
                           row(b1), row(b2), row(ln2g), row(ln2b)], axis=0)
    return wa, w2, vec


# ------------------ pure-JAX reference (for correctness check) ------------------
def _layernorm_ref(x, gamma, beta):
    mu = jnp.mean(x, axis=-1, keepdims=True)
    xc = x - mu
    var = jnp.mean(xc * xc, axis=-1, keepdims=True)
    return xc * jax.lax.rsqrt(var + LN_EPS) * gamma + beta


def _layer_ref(x, params):
    (wqkv, bqkv, wo, bo, ln1g, ln1b, w1, b1, w2, b2, ln2g, ln2b) = params

    def one(xb):
        qkv = xb @ wqkv + bqkv
        q, k, v = qkv[:, :D_MODEL], qkv[:, D_MODEL:2 * D_MODEL], qkv[:, 2 * D_MODEL:]
        outs = []
        for h in range(N_HEAD):
            sl = slice(h * HEAD_DIM, (h + 1) * HEAD_DIM)
            s = (q[:, sl] @ k[:, sl].T) / math.sqrt(HEAD_DIM)
            p = jax.nn.softmax(s, axis=-1)
            outs.append(p @ v[:, sl])
        attn = jnp.concatenate(outs, axis=-1) @ wo + bo
        y = _layernorm_ref(xb + attn, ln1g, ln1b)
        hdn = jnp.maximum(y @ w1 + b1, 0.0)
        return _layernorm_ref(y + hdn @ w2 + b2, ln2g, ln2b)

    return jax.vmap(one)(x)


def _encoder_ref(x, params):
    for _ in range(NUM_LAYERS):
        x = _layer_ref(x, params)
    return x


if __name__ == "__main__":
    key = jax.random.PRNGKey(0)
    kx, kp = jax.random.split(key)
    x = jax.random.normal(kx, (BATCH, SEQ, D_MODEL), jnp.float32)
    params = make_params(kp)
    wa, w2, vec = pack_params(params)        # packed once, outside the hot path

    out = jax.block_until_ready(transformer_encoder(x, wa, w2, vec))
    ref = _encoder_ref(x, params)

    assert out.shape == (BATCH, SEQ, D_MODEL)
    err = jnp.max(jnp.abs(out - ref))
    assert jnp.allclose(out, ref, atol=2e-4, rtol=2e-4), f"max err {err}"
    print("KERNEL_OK")
</pallas_src>

<mosaic_0001>
module attributes {stable_mosaic.version = 11 : i64} {
  func.func @encoder_kernel(%arg0: memref<32x32xf32, #tpu.memory_space<vmem>>, %arg1: memref<32x192xf32, #tpu.memory_space<vmem>>, %arg2: memref<64x32xf32, #tpu.memory_space<vmem>>, %arg3: memref<8x96xf32, #tpu.memory_space<vmem>>, %arg4: memref<32x32xf32, #tpu.memory_space<vmem>>) attributes {dimension_semantics = [], scalar_prefetch = 0 : i64, scratch_operands = 0 : i64, tpu.core_type = #tpu.core_type<tc>} {
    %c0 = arith.constant 0 : index
    %c0_0 = arith.constant 0 : index
    %0 = vector.load %arg0[%c0, %c0_0] : memref<32x32xf32, #tpu.memory_space<vmem>>, vector<32x32xf32>
    %c0_1 = arith.constant 0 : index
    %c0_2 = arith.constant 0 : index
    %1 = vector.load %arg3[%c0_1, %c0_2] : memref<8x96xf32, #tpu.memory_space<vmem>>, vector<1x96xf32>
    %2 = vector.shape_cast %1 : vector<1x96xf32> to vector<1x96xf32>
    %3 = vector.broadcast %2 : vector<1x96xf32> to vector<32x96xf32>
    %c1 = arith.constant 1 : index
    %c0_3 = arith.constant 0 : index
    %4 = vector.load %arg3[%c1, %c0_3] : memref<8x96xf32, #tpu.memory_space<vmem>>, vector<1x32xf32>
    %5 = vector.shape_cast %4 : vector<1x32xf32> to vector<1x32xf32>
    %6 = vector.broadcast %5 : vector<1x32xf32> to vector<32x32xf32>
    %c2 = arith.constant 2 : index
    %c0_4 = arith.constant 0 : index
    %7 = vector.load %arg3[%c2, %c0_4] : memref<8x96xf32, #tpu.memory_space<vmem>>, vector<1x32xf32>
    %8 = vector.shape_cast %7 : vector<1x32xf32> to vector<1x32xf32>
    %9 = vector.broadcast %8 : vector<1x32xf32> to vector<32x32xf32>
    %c3 = arith.constant 3 : index
    %c0_5 = arith.constant 0 : index
    %10 = vector.load %arg3[%c3, %c0_5] : memref<8x96xf32, #tpu.memory_space<vmem>>, vector<1x32xf32>
    %11 = vector.shape_cast %10 : vector<1x32xf32> to vector<1x32xf32>
    %12 = vector.broadcast %11 : vector<1x32xf32> to vector<32x32xf32>
    %c4 = arith.constant 4 : index
    %c0_6 = arith.constant 0 : index
    %13 = vector.load %arg3[%c4, %c0_6] : memref<8x96xf32, #tpu.memory_space<vmem>>, vector<1x64xf32>
    %14 = vector.shape_cast %13 : vector<1x64xf32> to vector<1x64xf32>
    %15 = vector.broadcast %14 : vector<1x64xf32> to vector<32x64xf32>
    %c5 = arith.constant 5 : index
    %c0_7 = arith.constant 0 : index
    %16 = vector.load %arg3[%c5, %c0_7] : memref<8x96xf32, #tpu.memory_space<vmem>>, vector<1x32xf32>
    %17 = vector.shape_cast %16 : vector<1x32xf32> to vector<1x32xf32>
    %18 = vector.broadcast %17 : vector<1x32xf32> to vector<32x32xf32>
    %c6 = arith.constant 6 : index
    %c0_8 = arith.constant 0 : index
    %19 = vector.load %arg3[%c6, %c0_8] : memref<8x96xf32, #tpu.memory_space<vmem>>, vector<1x32xf32>
    %20 = vector.shape_cast %19 : vector<1x32xf32> to vector<1x32xf32>
    %21 = vector.broadcast %20 : vector<1x32xf32> to vector<32x32xf32>
    %c7 = arith.constant 7 : index
    %c0_9 = arith.constant 0 : index
    %22 = vector.load %arg3[%c7, %c0_9] : memref<8x96xf32, #tpu.memory_space<vmem>>, vector<1x32xf32>
    %23 = vector.shape_cast %22 : vector<1x32xf32> to vector<1x32xf32>
    %24 = vector.broadcast %23 : vector<1x32xf32> to vector<32x32xf32>
    %c0_10 = arith.constant 0 : index
    %c0_11 = arith.constant 0 : index
    %25 = vector.load %arg1[%c0_10, %c0_11] : memref<32x192xf32, #tpu.memory_space<vmem>>, vector<32x96xf32>
    %cst = arith.constant dense<0.000000e+00> : vector<32x96xf32>
    %26 = tpu.matmul %0, %25, %cst {dimension_numbers = #tpu.dot_dimension_numbers<[1], [0], [0], [1], [0, 0, 1, 1], [], []>} : vector<32x32xf32>, vector<32x96xf32>, vector<32x96xf32> -> vector<32x96xf32>
    %27 = arith.addf %26, %3 : vector<32x96xf32>
    %28 = vector.shape_cast %27 : vector<32x96xf32> to vector<2x16x96xf32>
    %29 = vector.extract_strided_slice %28 {offsets = [0, 0, 0], sizes = [2, 16, 32], strides = [1, 1, 1]} : vector<2x16x96xf32> to vector<2x16x32xf32>
    %30 = vector.extract_strided_slice %28 {offsets = [0, 0, 32], sizes = [2, 16, 32], strides = [1, 1, 1]} : vector<2x16x96xf32> to vector<2x16x32xf32>
    %31 = vector.extract_strided_slice %28 {offsets = [0, 0, 64], sizes = [2, 16, 32], strides = [1, 1, 1]} : vector<2x16x96xf32> to vector<2x16x32xf32>
    %32 = vector.extract_strided_slice %29 {offsets = [0, 0, 0], sizes = [2, 16, 8], strides = [1, 1, 1]} : vector<2x16x32xf32> to vector<2x16x8xf32>
    %33 = vector.extract_strided_slice %29 {offsets = [0, 0, 8], sizes = [2, 16, 8], strides = [1, 1, 1]} : vector<2x16x32xf32> to vector<2x16x8xf32>
    %34 = vector.extract_strided_slice %29 {offsets = [0, 0, 16], sizes = [2, 16, 8], strides = [1, 1, 1]} : vector<2x16x32xf32> to vector<2x16x8xf32>
    %35 = vector.extract_strided_slice %29 {offsets = [0, 0, 24], sizes = [2, 16, 8], strides = [1, 1, 1]} : vector<2x16x32xf32> to vector<2x16x8xf32>
    %36 = tpu.concatenate %32, %33, %34, %35 in 0 : vector<2x16x8xf32>, vector<2x16x8xf32>, vector<2x16x8xf32>, vector<2x16x8xf32> -> vector<8x16x8xf32>
    %37 = vector.extract_strided_slice %30 {offsets = [0, 0, 0], sizes = [2, 16, 8], strides = [1, 1, 1]} : vector<2x16x32xf32> to vector<2x16x8xf32>
    %38 = vector.extract_strided_slice %30 {offsets = [0, 0, 8], sizes = [2, 16, 8], strides = [1, 1, 1]} : vector<2x16x32xf32> to vector<2x16x8xf32>
    %39 = vector.extract_strided_slice %30 {offsets = [0, 0, 16], sizes = [2, 16, 8], strides = [1, 1, 1]} : vector<2x16x32xf32> to vector<2x16x8xf32>
    %40 = vector.extract_strided_slice %30 {offsets = [0, 0, 24], sizes = [2, 16, 8], strides = [1, 1, 1]} : vector<2x16x32xf32> to vector<2x16x8xf32>
    %41 = tpu.concatenate %37, %38, %39, %40 in 0 : vector<2x16x8xf32>, vector<2x16x8xf32>, vector<2x16x8xf32>, vector<2x16x8xf32> -> vector<8x16x8xf32>
    %42 = vector.extract_strided_slice %31 {offsets = [0, 0, 0], sizes = [2, 16, 8], strides = [1, 1, 1]} : vector<2x16x32xf32> to vector<2x16x8xf32>
    %43 = vector.extract_strided_slice %31 {offsets = [0, 0, 8], sizes = [2, 16, 8], strides = [1, 1, 1]} : vector<2x16x32xf32> to vector<2x16x8xf32>
    %44 = vector.extract_strided_slice %31 {offsets = [0, 0, 16], sizes = [2, 16, 8], strides = [1, 1, 1]} : vector<2x16x32xf32> to vector<2x16x8xf32>
    %45 = vector.extract_strided_slice %31 {offsets = [0, 0, 24], sizes = [2, 16, 8], strides = [1, 1, 1]} : vector<2x16x32xf32> to vector<2x16x8xf32>
    %46 = tpu.concatenate %42, %43, %44, %45 in 0 : vector<2x16x8xf32>, vector<2x16x8xf32>, vector<2x16x8xf32>, vector<2x16x8xf32> -> vector<8x16x8xf32>
    "tpu.trace_start"() <{level = 10 : i32, message = "nqd,nkd->nqk"}> : () -> ()
    %cst_12 = arith.constant dense<0.000000e+00> : vector<8x16x16xf32>
    %47 = tpu.matmul %36, %41, %cst_12 {dimension_numbers = #tpu.dot_dimension_numbers<[2], [2], [1], [1], [0, 0, 0, 1, 1, 1], [0], [0]>} : vector<8x16x8xf32>, vector<8x16x8xf32>, vector<8x16x16xf32> -> vector<8x16x16xf32>
    "tpu.trace_stop"() : () -> ()
    %cst_13 = arith.constant dense<0xFF800000> : vector<8x16xf32>
    %48 = vector.multi_reduction <maximumf>, %47, %cst_13 [2] : vector<8x16x16xf32> to vector<8x16xf32>
    %49 = vector.shape_cast %48 : vector<8x16xf32> to vector<8x16x1xf32>
    %50 = vector.broadcast %49 : vector<8x16x1xf32> to vector<8x16x16xf32>
    %51 = arith.subf %47, %50 : vector<8x16x16xf32>
    %52 = math.exp %51 : vector<8x16x16xf32>
    %cst_14 = arith.constant dense<0.000000e+00> : vector<8x16xf32>
    %53 = vector.multi_reduction <add>, %52, %cst_14 [2] : vector<8x16x16xf32> to vector<8x16xf32>
    %54 = vector.shape_cast %53 : vector<8x16xf32> to vector<8x16x1xf32>
    %55 = tpu.reciprocal %54 {approx = true} : vector<8x16x1xf32> -> vector<8x16x1xf32>
    %56 = arith.mulf %54, %55 : vector<8x16x1xf32>
    %cst_15 = arith.constant 2.000000e+00 : f32
    %57 = vector.broadcast %cst_15 : f32 to vector<8x16x1xf32>
    %58 = arith.subf %57, %56 : vector<8x16x1xf32>
    %59 = arith.mulf %55, %58 : vector<8x16x1xf32>
    %60 = vector.broadcast %59 : vector<8x16x1xf32> to vector<8x16x16xf32>
    %61 = arith.mulf %52, %60 : vector<8x16x16xf32>
    "tpu.trace_start"() <{level = 10 : i32, message = "nqk,nkd->nqd"}> : () -> ()
    %cst_16 = arith.constant dense<0.000000e+00> : vector<8x16x8xf32>
    %62 = tpu.matmul %61, %46, %cst_16 {dimension_numbers = #tpu.dot_dimension_numbers<[2], [1], [1], [2], [0, 0, 0, 1, 1, 2], [0], [0]>} : vector<8x16x16xf32>, vector<8x16x8xf32>, vector<8x16x8xf32> -> vector<8x16x8xf32>
    "tpu.trace_stop"() : () -> ()
    %63 = vector.extract_strided_slice %62 {offsets = [0, 0, 0], sizes = [2, 16, 8], strides = [1, 1, 1]} : vector<8x16x8xf32> to vector<2x16x8xf32>
    %64 = vector.extract_strided_slice %62 {offsets = [2, 0, 0], sizes = [2, 16, 8], strides = [1, 1, 1]} : vector<8x16x8xf32> to vector<2x16x8xf32>
    %65 = vector.extract_strided_slice %62 {offsets = [4, 0, 0], sizes = [2, 16, 8], strides = [1, 1, 1]} : vector<8x16x8xf32> to vector<2x16x8xf32>
    %66 = vector.extract_strided_slice %62 {offsets = [6, 0, 0], sizes = [2, 16, 8], strides = [1, 1, 1]} : vector<8x16x8xf32> to vector<2x16x8xf32>
    %67 = tpu.concatenate %63, %64, %65, %66 in 2 : vector<2x16x8xf32>, vector<2x16x8xf32>, vector<2x16x8xf32>, vector<2x16x8xf32> -> vector<2x16x32xf32>
    %68 = vector.shape_cast %67 : vector<2x16x32xf32> to vector<32x32xf32>
    %c0_17 = arith.constant 0 : index
    %c96 = arith.constant 96 : index
    %69 = vector.load %arg1[%c0_17, %c96] : memref<32x192xf32, #tpu.memory_space<vmem>>, vector<32x32xf32>
    %cst_18 = arith.constant dense<0.000000e+00> : vector<32x32xf32>
    %70 = tpu.matmul %68, %69, %cst_18 {dimension_numbers = #tpu.dot_dimension_numbers<[1], [0], [0], [1], [0, 0, 1, 1], [], []>} : vector<32x32xf32>, vector<32x32xf32>, vector<32x32xf32> -> vector<32x32xf32>
    %71 = arith.addf %70, %6 : vector<32x32xf32>
    %72 = arith.addf %0, %71 : vector<32x32xf32>
    %cst_19 = arith.constant dense<0.000000e+00> : vector<32xf32>
    %73 = vector.multi_reduction <add>, %72, %cst_19 [1] : vector<32x32xf32> to vector<32xf32>
    %74 = vector.shape_cast %73 : vector<32xf32> to vector<32x1xf32>
    %cst_20 = arith.constant 3.200000e+01 : f32
    %75 = vector.broadcast %cst_20 : f32 to vector<32x1xf32>
    %76 = arith.divf %74, %75 : vector<32x1xf32>
    %77 = vector.broadcast %76 : vector<32x1xf32> to vector<32x32xf32>
    %78 = arith.subf %72, %77 : vector<32x32xf32>
    %79 = arith.mulf %78, %78 : vector<32x32xf32>
    %cst_21 = arith.constant dense<0.000000e+00> : vector<32xf32>
    %80 = vector.multi_reduction <add>, %79, %cst_21 [1] : vector<32x32xf32> to vector<32xf32>
    %81 = vector.shape_cast %80 : vector<32xf32> to vector<32x1xf32>
    %cst_22 = arith.constant 3.200000e+01 : f32
    %82 = vector.broadcast %cst_22 : f32 to vector<32x1xf32>
    %83 = arith.divf %81, %82 : vector<32x1xf32>
    %cst_23 = arith.constant 9.99999974E-6 : f32
    %84 = vector.broadcast %cst_23 : f32 to vector<32x1xf32>
    %85 = arith.addf %83, %84 : vector<32x1xf32>
    %86 = math.rsqrt %85 : vector<32x1xf32>
    %87 = vector.broadcast %86 : vector<32x1xf32> to vector<32x32xf32>
    %88 = arith.mulf %78, %87 : vector<32x32xf32>
    %89 = arith.mulf %88, %9 : vector<32x32xf32>
    %90 = arith.addf %89, %12 : vector<32x32xf32>
    %c0_24 = arith.constant 0 : index
    %c128 = arith.constant 128 : index
    %91 = vector.load %arg1[%c0_24, %c128] : memref<32x192xf32, #tpu.memory_space<vmem>>, vector<32x64xf32>
    %cst_25 = arith.constant dense<0.000000e+00> : vector<32x64xf32>
    %92 = tpu.matmul %90, %91, %cst_25 {dimension_numbers = #tpu.dot_dimension_numbers<[1], [0], [0], [1], [0, 0, 1, 1], [], []>} : vector<32x32xf32>, vector<32x64xf32>, vector<32x64xf32> -> vector<32x64xf32>
    %93 = arith.addf %92, %15 : vector<32x64xf32>
    %cst_26 = arith.constant 0.000000e+00 : f32
    %94 = vector.broadcast %cst_26 : f32 to vector<32x64xf32>
    %95 = arith.maximumf %93, %94 : vector<32x64xf32>
    %c0_27 = arith.constant 0 : index
    %c0_28 = arith.constant 0 : index
    %96 = vector.load %arg2[%c0_27, %c0_28] : memref<64x32xf32, #tpu.memory_space<vmem>>, vector<64x32xf32>
    %cst_29 = arith.constant dense<0.000000e+00> : vector<32x32xf32>
    %97 = tpu.matmul %95, %96, %cst_29 {dimension_numbers = #tpu.dot_dimension_numbers<[1], [0], [0], [1], [0, 0, 1, 1], [], []>} : vector<32x64xf32>, vector<64x32xf32>, vector<32x32xf32> -> vector<32x32xf32>
    %98 = arith.addf %97, %18 : vector<32x32xf32>
    %99 = arith.addf %90, %98 : vector<32x32xf32>
    %cst_30 = arith.constant dense<0.000000e+00> : vector<32xf32>
    %100 = vector.multi_reduction <add>, %99, %cst_30 [1] : vector<32x32xf32> to vector<32xf32>
    %101 = vector.shape_cast %100 : vector<32xf32> to vector<32x1xf32>
    %cst_31 = arith.constant 3.200000e+01 : f32
    %102 = vector.broadcast %cst_31 : f32 to vector<32x1xf32>
    %103 = arith.divf %101, %102 : vector<32x1xf32>
    %104 = vector.broadcast %103 : vector<32x1xf32> to vector<32x32xf32>
    %105 = arith.subf %99, %104 : vector<32x32xf32>
    %106 = arith.mulf %105, %105 : vector<32x32xf32>
    %cst_32 = arith.constant dense<0.000000e+00> : vector<32xf32>
    %107 = vector.multi_reduction <add>, %106, %cst_32 [1] : vector<32x32xf32> to vector<32xf32>
    %108 = vector.shape_cast %107 : vector<32xf32> to vector<32x1xf32>
    %cst_33 = arith.constant 3.200000e+01 : f32
    %109 = vector.broadcast %cst_33 : f32 to vector<32x1xf32>
    %110 = arith.divf %108, %109 : vector<32x1xf32>
    %cst_34 = arith.constant 9.99999974E-6 : f32
    %111 = vector.broadcast %cst_34 : f32 to vector<32x1xf32>
    %112 = arith.addf %110, %111 : vector<32x1xf32>
    %113 = math.rsqrt %112 : vector<32x1xf32>
    %114 = vector.broadcast %113 : vector<32x1xf32> to vector<32x32xf32>
    %115 = arith.mulf %105, %114 : vector<32x32xf32>
    %116 = arith.mulf %115, %21 : vector<32x32xf32>
    %117 = arith.addf %116, %24 : vector<32x32xf32>
    %c0_35 = arith.constant 0 : index
    %c0_36 = arith.constant 0 : index
    %118 = vector.load %arg1[%c0_35, %c0_36] : memref<32x192xf32, #tpu.memory_space<vmem>>, vector<32x96xf32>
    %cst_37 = arith.constant dense<0.000000e+00> : vector<32x96xf32>
    %119 = tpu.matmul %117, %118, %cst_37 {dimension_numbers = #tpu.dot_dimension_numbers<[1], [0], [0], [1], [0, 0, 1, 1], [], []>} : vector<32x32xf32>, vector<32x96xf32>, vector<32x96xf32> -> vector<32x96xf32>
    %120 = arith.addf %119, %3 : vector<32x96xf32>
    %121 = vector.shape_cast %120 : vector<32x96xf32> to vector<2x16x96xf32>
    %122 = vector.extract_strided_slice %121 {offsets = [0, 0, 0], sizes = [2, 16, 32], strides = [1, 1, 1]} : vector<2x16x96xf32> to vector<2x16x32xf32>
    %123 = vector.extract_strided_slice %121 {offsets = [0, 0, 32], sizes = [2, 16, 32], strides = [1, 1, 1]} : vector<2x16x96xf32> to vector<2x16x32xf32>
    %124 = vector.extract_strided_slice %121 {offsets = [0, 0, 64], sizes = [2, 16, 32], strides = [1, 1, 1]} : vector<2x16x96xf32> to vector<2x16x32xf32>
    %125 = vector.extract_strided_slice %122 {offsets = [0, 0, 0], sizes = [2, 16, 8], strides = [1, 1, 1]} : vector<2x16x32xf32> to vector<2x16x8xf32>
    %126 = vector.extract_strided_slice %122 {offsets = [0, 0, 8], sizes = [2, 16, 8], strides = [1, 1, 1]} : vector<2x16x32xf32> to vector<2x16x8xf32>
    %127 = vector.extract_strided_slice %122 {offsets = [0, 0, 16], sizes = [2, 16, 8], strides = [1, 1, 1]} : vector<2x16x32xf32> to vector<2x16x8xf32>
    %128 = vector.extract_strided_slice %122 {offsets = [0, 0, 24], sizes = [2, 16, 8], strides = [1, 1, 1]} : vector<2x16x32xf32> to vector<2x16x8xf32>
    %129 = tpu.concatenate %125, %126, %127, %128 in 0 : vector<2x16x8xf32>, vector<2x16x8xf32>, vector<2x16x8xf32>, vector<2x16x8xf32> -> vector<8x16x8xf32>
    %130 = vector.extract_strided_slice %123 {offsets = [0, 0, 0], sizes = [2, 16, 8], strides = [1, 1, 1]} : vector<2x16x32xf32> to vector<2x16x8xf32>
    %131 = vector.extract_strided_slice %123 {offsets = [0, 0, 8], sizes = [2, 16, 8], strides = [1, 1, 1]} : vector<2x16x32xf32> to vector<2x16x8xf32>
    %132 = vector.extract_strided_slice %123 {offsets = [0, 0, 16], sizes = [2, 16, 8], strides = [1, 1, 1]} : vector<2x16x32xf32> to vector<2x16x8xf32>
    %133 = vector.extract_strided_slice %123 {offsets = [0, 0, 24], sizes = [2, 16, 8], strides = [1, 1, 1]} : vector<2x16x32xf32> to vector<2x16x8xf32>
    %134 = tpu.concatenate %130, %131, %132, %133 in 0 : vector<2x16x8xf32>, vector<2x16x8xf32>, vector<2x16x8xf32>, vector<2x16x8xf32> -> vector<8x16x8xf32>
    %135 = vector.extract_strided_slice %124 {offsets = [0, 0, 0], sizes = [2, 16, 8], strides = [1, 1, 1]} : vector<2x16x32xf32> to vector<2x16x8xf32>
    %136 = vector.extract_strided_slice %124 {offsets = [0, 0, 8], sizes = [2, 16, 8], strides = [1, 1, 1]} : vector<2x16x32xf32> to vector<2x16x8xf32>
    %137 = vector.extract_strided_slice %124 {offsets = [0, 0, 16], sizes = [2, 16, 8], strides = [1, 1, 1]} : vector<2x16x32xf32> to vector<2x16x8xf32>
    %138 = vector.extract_strided_slice %124 {offsets = [0, 0, 24], sizes = [2, 16, 8], strides = [1, 1, 1]} : vector<2x16x32xf32> to vector<2x16x8xf32>
    %139 = tpu.concatenate %135, %136, %137, %138 in 0 : vector<2x16x8xf32>, vector<2x16x8xf32>, vector<2x16x8xf32>, vector<2x16x8xf32> -> vector<8x16x8xf32>
    "tpu.trace_start"() <{level = 10 : i32, message = "nqd,nkd->nqk"}> : () -> ()
    %cst_38 = arith.constant dense<0.000000e+00> : vector<8x16x16xf32>
    %140 = tpu.matmul %129, %134, %cst_38 {dimension_numbers = #tpu.dot_dimension_numbers<[2], [2], [1], [1], [0, 0, 0, 1, 1, 1], [0], [0]>} : vector<8x16x8xf32>, vector<8x16x8xf32>, vector<8x16x16xf32> -> vector<8x16x16xf32>
    "tpu.trace_stop"() : () -> ()
    %cst_39 = arith.constant dense<0xFF800000> : vector<8x16xf32>
    %141 = vector.multi_reduction <maximumf>, %140, %cst_39 [2] : vector<8x16x16xf32> to vector<8x16xf32>
    %142 = vector.shape_cast %141 : vector<8x16xf32> to vector<8x16x1xf32>
    %143 = vector.broadcast %142 : vector<8x16x1xf32> to vector<8x16x16xf32>
    %144 = arith.subf %140, %143 : vector<8x16x16xf32>
    %145 = math.exp %144 : vector<8x16x16xf32>
    %cst_40 = arith.constant dense<0.000000e+00> : vector<8x16xf32>
    %146 = vector.multi_reduction <add>, %145, %cst_40 [2] : vector<8x16x16xf32> to vector<8x16xf32>
    %147 = vector.shape_cast %146 : vector<8x16xf32> to vector<8x16x1xf32>
    %148 = tpu.reciprocal %147 {approx = true} : vector<8x16x1xf32> -> vector<8x16x1xf32>
    %149 = arith.mulf %147, %148 : vector<8x16x1xf32>
    %cst_41 = arith.constant 2.000000e+00 : f32
    %150 = vector.broadcast %cst_41 : f32 to vector<8x16x1xf32>
    %151 = arith.subf %150, %149 : vector<8x16x1xf32>
    %152 = arith.mulf %148, %151 : vector<8x16x1xf32>
    %153 = vector.broadcast %152 : vector<8x16x1xf32> to vector<8x16x16xf32>
    %154 = arith.mulf %145, %153 : vector<8x16x16xf32>
    "tpu.trace_start"() <{level = 10 : i32, message = "nqk,nkd->nqd"}> : () -> ()
    %cst_42 = arith.constant dense<0.000000e+00> : vector<8x16x8xf32>
    %155 = tpu.matmul %154, %139, %cst_42 {dimension_numbers = #tpu.dot_dimension_numbers<[2], [1], [1], [2], [0, 0, 0, 1, 1, 2], [0], [0]>} : vector<8x16x16xf32>, vector<8x16x8xf32>, vector<8x16x8xf32> -> vector<8x16x8xf32>
    "tpu.trace_stop"() : () -> ()
    %156 = vector.extract_strided_slice %155 {offsets = [0, 0, 0], sizes = [2, 16, 8], strides = [1, 1, 1]} : vector<8x16x8xf32> to vector<2x16x8xf32>
    %157 = vector.extract_strided_slice %155 {offsets = [2, 0, 0], sizes = [2, 16, 8], strides = [1, 1, 1]} : vector<8x16x8xf32> to vector<2x16x8xf32>
    %158 = vector.extract_strided_slice %155 {offsets = [4, 0, 0], sizes = [2, 16, 8], strides = [1, 1, 1]} : vector<8x16x8xf32> to vector<2x16x8xf32>
    %159 = vector.extract_strided_slice %155 {offsets = [6, 0, 0], sizes = [2, 16, 8], strides = [1, 1, 1]} : vector<8x16x8xf32> to vector<2x16x8xf32>
    %160 = tpu.concatenate %156, %157, %158, %159 in 2 : vector<2x16x8xf32>, vector<2x16x8xf32>, vector<2x16x8xf32>, vector<2x16x8xf32> -> vector<2x16x32xf32>
    %161 = vector.shape_cast %160 : vector<2x16x32xf32> to vector<32x32xf32>
    %c0_43 = arith.constant 0 : index
    %c96_44 = arith.constant 96 : index
    %162 = vector.load %arg1[%c0_43, %c96_44] : memref<32x192xf32, #tpu.memory_space<vmem>>, vector<32x32xf32>
    %cst_45 = arith.constant dense<0.000000e+00> : vector<32x32xf32>
    %163 = tpu.matmul %161, %162, %cst_45 {dimension_numbers = #tpu.dot_dimension_numbers<[1], [0], [0], [1], [0, 0, 1, 1], [], []>} : vector<32x32xf32>, vector<32x32xf32>, vector<32x32xf32> -> vector<32x32xf32>
    %164 = arith.addf %163, %6 : vector<32x32xf32>
    %165 = arith.addf %117, %164 : vector<32x32xf32>
    %cst_46 = arith.constant dense<0.000000e+00> : vector<32xf32>
    %166 = vector.multi_reduction <add>, %165, %cst_46 [1] : vector<32x32xf32> to vector<32xf32>
    %167 = vector.shape_cast %166 : vector<32xf32> to vector<32x1xf32>
    %cst_47 = arith.constant 3.200000e+01 : f32
    %168 = vector.broadcast %cst_47 : f32 to vector<32x1xf32>
    %169 = arith.divf %167, %168 : vector<32x1xf32>
    %170 = vector.broadcast %169 : vector<32x1xf32> to vector<32x32xf32>
    %171 = arith.subf %165, %170 : vector<32x32xf32>
    %172 = arith.mulf %171, %171 : vector<32x32xf32>
    %cst_48 = arith.constant dense<0.000000e+00> : vector<32xf32>
    %173 = vector.multi_reduction <add>, %172, %cst_48 [1] : vector<32x32xf32> to vector<32xf32>
    %174 = vector.shape_cast %173 : vector<32xf32> to vector<32x1xf32>
    %cst_49 = arith.constant 3.200000e+01 : f32
    %175 = vector.broadcast %cst_49 : f32 to vector<32x1xf32>
    %176 = arith.divf %174, %175 : vector<32x1xf32>
    %cst_50 = arith.constant 9.99999974E-6 : f32
    %177 = vector.broadcast %cst_50 : f32 to vector<32x1xf32>
    %178 = arith.addf %176, %177 : vector<32x1xf32>
    %179 = math.rsqrt %178 : vector<32x1xf32>
    %180 = vector.broadcast %179 : vector<32x1xf32> to vector<32x32xf32>
    %181 = arith.mulf %171, %180 : vector<32x32xf32>
    %182 = arith.mulf %181, %9 : vector<32x32xf32>
    %183 = arith.addf %182, %12 : vector<32x32xf32>
    %c0_51 = arith.constant 0 : index
    %c128_52 = arith.constant 128 : index
    %184 = vector.load %arg1[%c0_51, %c128_52] : memref<32x192xf32, #tpu.memory_space<vmem>>, vector<32x64xf32>
    %cst_53 = arith.constant dense<0.000000e+00> : vector<32x64xf32>
    %185 = tpu.matmul %183, %184, %cst_53 {dimension_numbers = #tpu.dot_dimension_numbers<[1], [0], [0], [1], [0, 0, 1, 1], [], []>} : vector<32x32xf32>, vector<32x64xf32>, vector<32x64xf32> -> vector<32x64xf32>
    %186 = arith.addf %185, %15 : vector<32x64xf32>
    %cst_54 = arith.constant 0.000000e+00 : f32
    %187 = vector.broadcast %cst_54 : f32 to vector<32x64xf32>
    %188 = arith.maximumf %186, %187 : vector<32x64xf32>
    %c0_55 = arith.constant 0 : index
    %c0_56 = arith.constant 0 : index
    %189 = vector.load %arg2[%c0_55, %c0_56] : memref<64x32xf32, #tpu.memory_space<vmem>>, vector<64x32xf32>
    %cst_57 = arith.constant dense<0.000000e+00> : vector<32x32xf32>
    %190 = tpu.matmul %188, %189, %cst_57 {dimension_numbers = #tpu.dot_dimension_numbers<[1], [0], [0], [1], [0, 0, 1, 1], [], []>} : vector<32x64xf32>, vector<64x32xf32>, vector<32x32xf32> -> vector<32x32xf32>
    %191 = arith.addf %190, %18 : vector<32x32xf32>
    %192 = arith.addf %183, %191 : vector<32x32xf32>
    %cst_58 = arith.constant dense<0.000000e+00> : vector<32xf32>
    %193 = vector.multi_reduction <add>, %192, %cst_58 [1] : vector<32x32xf32> to vector<32xf32>
    %194 = vector.shape_cast %193 : vector<32xf32> to vector<32x1xf32>
    %cst_59 = arith.constant 3.200000e+01 : f32
    %195 = vector.broadcast %cst_59 : f32 to vector<32x1xf32>
    %196 = arith.divf %194, %195 : vector<32x1xf32>
    %197 = vector.broadcast %196 : vector<32x1xf32> to vector<32x32xf32>
    %198 = arith.subf %192, %197 : vector<32x32xf32>
    %199 = arith.mulf %198, %198 : vector<32x32xf32>
    %cst_60 = arith.constant dense<0.000000e+00> : vector<32xf32>
    %200 = vector.multi_reduction <add>, %199, %cst_60 [1] : vector<32x32xf32> to vector<32xf32>
    %201 = vector.shape_cast %200 : vector<32xf32> to vector<32x1xf32>
    %cst_61 = arith.constant 3.200000e+01 : f32
    %202 = vector.broadcast %cst_61 : f32 to vector<32x1xf32>
    %203 = arith.divf %201, %202 : vector<32x1xf32>
    %cst_62 = arith.constant 9.99999974E-6 : f32
    %204 = vector.broadcast %cst_62 : f32 to vector<32x1xf32>
    %205 = arith.addf %203, %204 : vector<32x1xf32>
    %206 = math.rsqrt %205 : vector<32x1xf32>
    %207 = vector.broadcast %206 : vector<32x1xf32> to vector<32x32xf32>
    %208 = arith.mulf %198, %207 : vector<32x32xf32>
    %209 = arith.mulf %208, %21 : vector<32x32xf32>
    %210 = arith.addf %209, %24 : vector<32x32xf32>
    %c0_63 = arith.constant 0 : index
    %c0_64 = arith.constant 0 : index
    %211 = vector.load %arg4[%c0_63, %c0_64] : memref<32x32xf32, #tpu.memory_space<vmem>>, vector<32x32xf32>
    tpu.vector_store %arg4[%c0_63, %c0_64], %210 {strides = array<i32>} : memref<32x32xf32, #tpu.memory_space<vmem>>, vector<32x32xf32>,
    return
  }
}

</mosaic_0001>

<llo_original>
// kernel: transformer_encoder.1
$region0: #{transformer_encoder.1}
  #allocation0 [shape = 'u32[]', space=smem, size = 0x4, offset = 0x4, fixed_abs, tag = 'smem constant byte address 0x4 - core index']
  #allocation1 [shape = 'u32[144,128]{1,0:T(1,128)}', space=vmem, size = 0x12000, scoped, tag = 'internal scratch']
  %s0 = inlined_call_operand.vmem [shape: f32[32,32], index: 0, kind: input, shape index: {}]
  %s1 = inlined_call_operand.vmem [shape: f32[32,192], index: 1, kind: input, shape index: {}]
  %s2 = inlined_call_operand.vmem [shape: f32[64,32], index: 2, kind: input, shape index: {}]
  %s3 = inlined_call_operand.hbm [shape: f32[8,96], index: 3, kind: input, shape index: {}]
  %s4 = inlined_call_operand.hbm [shape: f32[32,32], index: 4, kind: output, shape index: {}]
  %s5 = sld [smem:[#allocation0]]
  $region30: #{transformer_encoder.1} parent=0
    _
  %s7 = ssub.s32 1, %s5
  %s8 = scalar_select 0, %s7, %s5
  $region1: #{transformer_encoder.1} parent=0
    #allocation2 [shape = 'u8[4096]{0}', space=vmem, size = 0x1000, scoped, tag = 'input window, operand 3, single buffered']
    #allocation3 [shape = 's32[1]{0}', space=sflag, size = 0x4, scoped, tag = 'scoped memory for transformer_encoder.1']
    #allocation4 [shape = 's32[1]{0}', space=sflag, size = 0x4, scoped, tag = 'scoped memory for transformer_encoder.1']
    #allocation5 [shape = 'u8[16384]{0}', space=vmem, size = 0x4000, scoped, tag = 'output window, operand 0, single buffered']
    %9 = vsyncpa [#allocation3], 0
    %10 = vsyncpa [#allocation4], 0
    // Predicated region
    $region2: #{transformer_encoder.1} parent=1 // pred_check
      _
    $region3: #{transformer_encoder.1} parent=1 // pred_check_branch
      %12 = sbr.rel (0) target = $region5
    $region4: #{transformer_encoder.1} parent=1 // pred_region
      _
    $region5: #{transformer_encoder.1} parent=1 // pred_fallthru
      _
    // Predicated region
    $region6: #{transformer_encoder.1} parent=1 // pred_check
      _
    $region7: #{transformer_encoder.1} parent=1 // pred_check_branch
      %14 = sbr.rel (0) target = $region9
    $region8: #{transformer_encoder.1} parent=1 // pred_region
      _
    $region9: #{transformer_encoder.1} parent=1 // pred_fallthru
      _
    // Predicated region
    $region10: #{transformer_encoder.1} parent=1 // pred_check
      _
    $region11: #{transformer_encoder.1} parent=1 // pred_check_branch
      %16 = sbr.rel (0) target = $region13
    $region12: #{transformer_encoder.1} parent=1 // pred_region
      _
    $region13: #{transformer_encoder.1} parent=1 // pred_fallthru
      _
    // Predicated region
    $region14: #{transformer_encoder.1} parent=1 // pred_check
      _
    $region15: #{transformer_encoder.1} parent=1 // pred_check_branch
      %18 = sbr.rel (0) target = $region17
    $region16: #{transformer_encoder.1} parent=1 // pred_region
      %s20 = ssub.s32 128, 128
      %21 = vsyncadd [#allocation3], %s20
      %s23 = sshll.u32 [#allocation2], 4
      %s24 = int_to_ptr.vmem [resolvable:$true] %s23
      %26 = dma.hbm_to_vmem [thread:$0]  %s3, 128, %s24, [#allocation3]
    $region17: #{transformer_encoder.1} parent=1 // pred_fallthru
      _
    // Predicated region
    $region18: #{transformer_encoder.1} parent=1 // pred_check
      _
    $region19: #{transformer_encoder.1} parent=1 // pred_check_branch
      %28 = sbr.rel (0) target = $region21
    $region20: #{transformer_encoder.1} parent=1 // pred_region
      %29 = dma.done [#allocation3], 128
    $region21: #{transformer_encoder.1} parent=1 // pred_fallthru
      _
    %v30 = vld [vmem:[%s0] sm:$0xff]
    %v31 = vld [vmem:[%s0 + $0x8] sm:$0xff]
    %v32 = vld [vmem:[%s0 + $0x10] sm:$0xff]
    %v33 = vld [vmem:[%s0 + $0x18] sm:$0xff]
    %v34 = vld [vmem:[#allocation2] sm:$0x1]
    %v35 = vlaneseq
    %v36 = vshrl.u32 %v35, 7
    %v37 = vsub.s32 0, %v36
    %v38 = vrot.slane %v34, %v37
    %v39 = vld [vmem:[#allocation2 + $0x1] sm:$0x1]
    %v40 = vlaneseq
    %v41 = vshrl.u32 %v40, 7
    %v42 = vsub.s32 0, %v41
    %v43 = vrot.slane %v39, %v42
    %v44 = vld [vmem:[#allocation2 + $0x2] sm:$0x1]
    %v45 = vlaneseq
    %v46 = vshrl.u32 %v45, 7
    %v47 = vsub.s32 0, %v46
    %v48 = vrot.slane %v44, %v47
    %v49 = vld [vmem:[#allocation2 + $0x3] sm:$0x1]
    %v50 = vlaneseq
    %v51 = vshrl.u32 %v50, 7
    %v52 = vsub.s32 0, %v51
    %v53 = vrot.slane %v49, %v52
    %v54 = vld [vmem:[#allocation2 + $0x4] sm:$0x1]
    %v55 = vlaneseq
    %v56 = vshrl.u32 %v55, 7
    %v57 = vsub.s32 0, %v56
    %v58 = vrot.slane %v54, %v57
    %v59 = vld [vmem:[#allocation2 + $0x5] sm:$0x1]
    %v60 = vlaneseq
    %v61 = vshrl.u32 %v60, 7
    %v62 = vsub.s32 0, %v61
    %v63 = vrot.slane %v59, %v62
    %v64 = vld [vmem:[#allocation2 + $0x6] sm:$0x1]
    %v65 = vlaneseq
    %v66 = vshrl.u32 %v65, 7
    %v67 = vsub.s32 0, %v66
    %v68 = vrot.slane %v64, %v67
    %v69 = vld [vmem:[#allocation2 + $0x7] sm:$0x1]
    %v70 = vlaneseq
    %v71 = vshrl.u32 %v70, 7
    %v72 = vsub.s32 0, %v71
    %v73 = vrot.slane %v69, %v72
    %v74 = vld [vmem:[%s1] sm:$0xff]
    %v75 = vld [vmem:[%s1 + $0x10] sm:$0xff]
    %v76 = vld [vmem:[%s1 + $0x20] sm:$0xff]
    %v77 = vld [vmem:[%s1 + $0x30] sm:$0xff]
    %vm78 = vcmask 261120
    %v80 = vsel %vm78, %v30, 0
    %v83 = vsel %vm78, %v31, 0
    %v86 = vsel %vm78, %v32, 0
    %v89 = vsel %vm78, %v33, 0
    %91 = vmatprep.subr.mxu0 0.0
    %92 = vmatpush1.msra.mxu0 0.0
    %93 = vmatprep.subr.mxu0 0.0
    %94 = vmatpush1.msra.mxu0 0.0
    %95 = vmatprep.subr.mxu0 0.0
    %96 = vmatpush1.msra.mxu0 0.0
    %97 = vmatprep.subr.mxu0 0.0
    %98 = vmatpush1.msra.mxu0 0.0
    %99 = vmatprep.subr.mxu0 0.0
    %100 = vmatpush1.msra.mxu0 0.0
    %101 = vmatprep.subr.mxu0 0.0
    %102 = vmatpush1.msra.mxu0 0.0
    %103 = vmatprep.subr.mxu0 0.0
    %104 = vmatpush1.msra.mxu0 0.0
    %105 = vmatprep.subr.mxu0 0.0
    %106 = vmatpush1.msra.mxu0 0.0
    %107 = vmatprep.subr.mxu0 0.0
    %108 = vmatpush1.msra.mxu0 0.0
    %109 = vmatprep.subr.mxu0 0.0
    %110 = vmatpush1.msra.mxu0 0.0
    %111 = vmatprep.subr.mxu0 0.0
    %112 = vmatpush1.msra.mxu0 0.0
    %113 = vmatprep.subr.mxu0 0.0
    %114 = vmatpush1.msra.mxu0 0.0
    %115 = vmatprep.subr.mxu0 0.0
    %116 = vmatpush1.msra.mxu0 %v77
    %117 = vmatprep.subr.mxu0 0.0
    %118 = vmatpush1.msra.mxu0 %v76
    %119 = vmatprep.subr.mxu0 0.0
    %120 = vmatpush1.msra.mxu0 %v75
    %121 = vmatprep.subr.mxu0 0.0
    %122 = vmatpush1.msra.mxu0 %v74
    %123 = vmatprep.subr.mxu0 0.0
    %124 = vmatpush2.msra.mxu0 0.0
    %125 = vmatprep.subr.mxu0 0.0
    %126 = vmatpush2.msra.mxu0 0.0
    %127 = vmatprep.subr.mxu0 0.0
    %128 = vmatpush2.msra.mxu0 0.0
    %129 = vmatprep.subr.mxu0 0.0
    %130 = vmatpush2.msra.mxu0 0.0
    %131 = vmatprep.subr.mxu0 0.0
    %132 = vmatpush2.msra.mxu0 0.0
    %133 = vmatprep.subr.mxu0 0.0
    %134 = vmatpush2.msra.mxu0 0.0
    %135 = vmatprep.subr.mxu0 0.0
    %136 = vmatpush2.msra.mxu0 0.0
    %137 = vmatprep.subr.mxu0 0.0
    %138 = vmatpush2.msra.mxu0 0.0
    %139 = vmatprep.subr.mxu0 0.0
    %140 = vmatpush2.msra.mxu0 0.0
    %141 = vmatprep.subr.mxu0 0.0
    %142 = vmatpush2.msra.mxu0 0.0
    %143 = vmatprep.subr.mxu0 0.0
    %144 = vmatpush2.msra.mxu0 0.0
    %145 = vmatprep.subr.mxu0 0.0
    %146 = vmatpush2.msra.mxu0 0.0
    %147 = vmatprep.subr.mxu0 0.0
    %148 = vmatpush2.msra.mxu0 0.0
    %149 = vmatprep.subr.mxu0 0.0
    %150 = vmatpush2.msra.mxu0 0.0
    %151 = vmatprep.subr.mxu0 0.0
    %152 = vmatpush2.msra.mxu0 0.0
    %153 = vmatprep.subr.mxu0 0.0
    %154 = vmatpush2.msra.mxu0 0.0
    %155 = vmatprep.mubr.f32.mxu0 0.0
    %156 = vmatmul.mubr.f32.gmra.mxu0 %v80
    %v157 = vpop.f32.mrf.mxu0
    %v158 = vadd.f32 %v38, %v157
    %v159 = vpop.f32.mrf.mxu0
    %160 = vmatprep.mubr.f32.mxu0 0.0
    %161 = vmatmul.mubr.f32.gmra.mxu0 %v83
    %v162 = vpop.f32.mrf.mxu0
    %v163 = vadd.f32 %v38, %v162
    %v164 = vpop.f32.mrf.mxu0
    %165 = vmatprep.mubr.f32.mxu0 0.0
    %166 = vmatmul.mubr.f32.gmra.mxu0 %v86
    %v167 = vpop.f32.mrf.mxu0
    %v168 = vadd.f32 %v38, %v167
    %v169 = vpop.f32.mrf.mxu0
    %170 = vmatprep.mubr.f32.mxu0 0.0
    %171 = vmatmul.mubr.f32.gmra.mxu0 %v89
    %v172 = vpop.f32.mrf.mxu0
    %v173 = vadd.f32 %v38, %v172
    %v174 = vpop.f32.mrf.mxu0
    %175 = vdwg.mxu0
    %180 = vrot.lane.b32.xlu0 %v158, 120
    %v181 = vpop.permute.xlu0 %180
    %182 = vrot.lane.b32.xlu0 %v163, 120
    %v183 = vpop.permute.xlu0 %182
    %184 = vrot.lane.b32.xlu0 %v168, 120
    %v185 = vpop.permute.xlu0 %184
    %186 = vrot.lane.b32.xlu0 %v173, 120
    %v187 = vpop.permute.xlu0 %186
    %188 = vrot.lane.b32.xlu0 %v158, 112
    %v189 = vpop.permute.xlu0 %188
    %190 = vrot.lane.b32.xlu0 %v163, 112
    %v191 = vpop.permute.xlu0 %190
    %192 = vrot.lane.b32.xlu0 %v168, 112
    %v193 = vpop.permute.xlu0 %192
    %194 = vrot.lane.b32.xlu0 %v173, 112
    %v195 = vpop.permute.xlu0 %194
    %196 = vrot.lane.b32.xlu0 %v158, 104
    %v197 = vpop.permute.xlu0 %196
    %198 = vrot.lane.b32.xlu0 %v163, 104
    %v199 = vpop.permute.xlu0 %198
    %200 = vrot.lane.b32.xlu0 %v168, 104
    %v201 = vpop.permute.xlu0 %200
    %202 = vrot.lane.b32.xlu0 %v173, 104
    %v203 = vpop.permute.xlu0 %202
    %204 = vrot.lane.b32.xlu0 %v158, 96
    %v205 = vpop.permute.xlu0 %204
    %206 = vrot.lane.b32.xlu0 %v163, 96
    %v207 = vpop.permute.xlu0 %206
    %vm208 = vcmask 64512
    %v209 = vsel %vm208, %v158, 0
    %v211 = vsel %vm208, %v163, 0
    %v213 = vsel %vm208, %v205, 0
    %v215 = vsel %vm208, %v207, 0
    %217 = vmatprep.subr.mxu0 0.0
    %218 = vmatpush1.xpose.msra.mxu0 0.0
    %219 = vmatprep.subr.mxu0 0.0
    %220 = vmatpush1.xpose.msra.mxu0 0.0
    %221 = vmatprep.subr.mxu0 0.0
    %222 = vmatpush1.xpose.msra.mxu0 0.0
    %223 = vmatprep.subr.mxu0 0.0
    %224 = vmatpush1.xpose.msra.mxu0 0.0
    %225 = vmatprep.subr.mxu0 0.0
    %226 = vmatpush1.xpose.msra.mxu0 0.0
    %227 = vmatprep.subr.mxu0 0.0
    %228 = vmatpush1.xpose.msra.mxu0 0.0
    %229 = vmatprep.subr.mxu0 0.0
    %230 = vmatpush1.xpose.msra.mxu0 0.0
    %231 = vmatprep.subr.mxu0 0.0
    %232 = vmatpush1.xpose.msra.mxu0 0.0
    %233 = vmatprep.subr.mxu0 0.0
    %234 = vmatpush1.xpose.msra.mxu0 0.0
    %235 = vmatprep.subr.mxu0 0.0
    %236 = vmatpush1.xpose.msra.mxu0 0.0
    %237 = vmatprep.subr.mxu0 0.0
    %238 = vmatpush1.xpose.msra.mxu0 0.0
    %239 = vmatprep.subr.mxu0 0.0
    %240 = vmatpush1.xpose.msra.mxu0 0.0
    %241 = vmatprep.subr.mxu0 0.0
    %242 = vmatpush1.xpose.msra.mxu0 0.0
    %243 = vmatprep.subr.mxu0 0.0
    %244 = vmatpush1.xpose.msra.mxu0 0.0
    %245 = vmatprep.subr.mxu0 0.0
    %246 = vmatpush1.xpose.msra.mxu0 %v215
    %247 = vmatprep.subr.mxu0 0.0
    %248 = vmatpush1.xpose.msra.mxu0 %v213
    %249 = vmatprep.subr.mxu0 0.0
    %250 = vmatpush2.xpose.msra.mxu0 0.0
    %251 = vmatprep.subr.mxu0 0.0
    %252 = vmatpush2.xpose.msra.mxu0 0.0
    %253 = vmatprep.subr.mxu0 0.0
    %254 = vmatpush2.xpose.msra.mxu0 0.0
    %255 = vmatprep.subr.mxu0 0.0
    %256 = vmatpush2.xpose.msra.mxu0 0.0
    %257 = vmatprep.subr.mxu0 0.0
    %258 = vmatpush2.xpose.msra.mxu0 0.0
    %259 = vmatprep.subr.mxu0 0.0
    %260 = vmatpush2.xpose.msra.mxu0 0.0
    %261 = vmatprep.subr.mxu0 0.0
    %262 = vmatpush2.xpose.msra.mxu0 0.0
    %263 = vmatprep.subr.mxu0 0.0
    %264 = vmatpush2.xpose.msra.mxu0 0.0
    %265 = vmatprep.subr.mxu0 0.0
    %266 = vmatpush2.xpose.msra.mxu0 0.0
    %267 = vmatprep.subr.mxu0 0.0
    %268 = vmatpush2.xpose.msra.mxu0 0.0
    %269 = vmatprep.subr.mxu0 0.0
    %270 = vmatpush2.xpose.msra.mxu0 0.0
    %271 = vmatprep.subr.mxu0 0.0
    %272 = vmatpush2.xpose.msra.mxu0 0.0
    %273 = vmatprep.subr.mxu0 0.0
    %274 = vmatpush2.xpose.msra.mxu0 0.0
    %275 = vmatprep.subr.mxu0 0.0
    %276 = vmatpush2.xpose.msra.mxu0 0.0
    %277 = vmatprep.subr.mxu0 0.0
    %278 = vmatpush2.xpose.msra.mxu0 0.0
    %279 = vmatprep.subr.mxu0 0.0
    %280 = vmatpush2.xpose.msra.mxu0 0.0
    %281 = vmatprep.mubr.f32.mxu0 0.0
    %282 = vmatmul.mubr.f32.gmra.mxu0 %v209
    %v283 = vpop.f32.mrf.mxu0
    %v284 = vadd.f32 0.0, %v283
    %v285 = vpop.f32.mrf.mxu0
    %286 = vmatprep.mubr.f32.mxu0 0.0
    %287 = vmatmul.mubr.f32.gmra.mxu0 %v211
    %v288 = vpop.f32.mrf.mxu0
    %v289 = vadd.f32 0.0, %v288
    %v290 = vpop.f32.mrf.mxu0
    %291 = vdwg.mxu0
    %292 = vrot.lane.b32.xlu0 %v168, 96
    %v293 = vpop.permute.xlu0 %292
    %294 = vrot.lane.b32.xlu0 %v173, 96
    %v295 = vpop.permute.xlu0 %294
    %v296 = vsel %vm208, %v168, 0
    %v298 = vsel %vm208, %v173, 0
    %v300 = vsel %vm208, %v293, 0
    %v302 = vsel %vm208, %v295, 0
    %304 = vmatprep.subr.mxu0 0.0
    %305 = vmatpush1.xpose.msra.mxu0 0.0
    %306 = vmatprep.subr.mxu0 0.0
    %307 = vmatpush1.xpose.msra.mxu0 0.0
    %308 = vmatprep.subr.mxu0 0.0
    %309 = vmatpush1.xpose.msra.mxu0 0.0
    %310 = vmatprep.subr.mxu0 0.0
    %311 = vmatpush1.xpose.msra.mxu0 0.0
    %312 = vmatprep.subr.mxu0 0.0
    %313 = vmatpush1.xpose.msra.mxu0 0.0
    %314 = vmatprep.subr.mxu0 0.0
    %315 = vmatpush1.xpose.msra.mxu0 0.0
    %316 = vmatprep.subr.mxu0 0.0
    %317 = vmatpush1.xpose.msra.mxu0 0.0
    %318 = vmatprep.subr.mxu0 0.0
    %319 = vmatpush1.xpose.msra.mxu0 0.0
    %320 = vmatprep.subr.mxu0 0.0
    %321 = vmatpush1.xpose.msra.mxu0 0.0
    %322 = vmatprep.subr.mxu0 0.0
    %323 = vmatpush1.xpose.msra.mxu0 0.0
    %324 = vmatprep.subr.mxu0 0.0
    %325 = vmatpush1.xpose.msra.mxu0 0.0
    %326 = vmatprep.subr.mxu0 0.0
    %327 = vmatpush1.xpose.msra.mxu0 0.0
    %328 = vmatprep.subr.mxu0 0.0
    %329 = vmatpush1.xpose.msra.mxu0 0.0
    %330 = vmatprep.subr.mxu0 0.0
    %331 = vmatpush1.xpose.msra.mxu0 0.0
    %332 = vmatprep.subr.mxu0 0.0
    %333 = vmatpush1.xpose.msra.mxu0 %v302
    %334 = vmatprep.subr.mxu0 0.0
    %335 = vmatpush1.xpose.msra.mxu0 %v300
    %336 = vmatprep.subr.mxu0 0.0
    %337 = vmatpush2.xpose.msra.mxu0 0.0
    %338 = vmatprep.subr.mxu0 0.0
    %339 = vmatpush2.xpose.msra.mxu0 0.0
    %340 = vmatprep.subr.mxu0 0.0
    %341 = vmatpush2.xpose.msra.mxu0 0.0
    %342 = vmatprep.subr.mxu0 0.0
    %343 = vmatpush2.xpose.msra.mxu0 0.0
    %344 = vmatprep.subr.mxu0 0.0
    %345 = vmatpush2.xpose.msra.mxu0 0.0
    %346 = vmatprep.subr.mxu0 0.0
    %347 = vmatpush2.xpose.msra.mxu0 0.0
    %348 = vmatprep.subr.mxu0 0.0
    %349 = vmatpush2.xpose.msra.mxu0 0.0
    %350 = vmatprep.subr.mxu0 0.0
    %351 = vmatpush2.xpose.msra.mxu0 0.0
    %352 = vmatprep.subr.mxu0 0.0
    %353 = vmatpush2.xpose.msra.mxu0 0.0
    %354 = vmatprep.subr.mxu0 0.0
    %355 = vmatpush2.xpose.msra.mxu0 0.0
    %356 = vmatprep.subr.mxu0 0.0
    %357 = vmatpush2.xpose.msra.mxu0 0.0
    %358 = vmatprep.subr.mxu0 0.0
    %359 = vmatpush2.xpose.msra.mxu0 0.0
    %360 = vmatprep.subr.mxu0 0.0
    %361 = vmatpush2.xpose.msra.mxu0 0.0
    %362 = vmatprep.subr.mxu0 0.0
    %363 = vmatpush2.xpose.msra.mxu0 0.0
    %364 = vmatprep.subr.mxu0 0.0
    %365 = vmatpush2.xpose.msra.mxu0 0.0
    %366 = vmatprep.subr.mxu0 0.0
    %367 = vmatpush2.xpose.msra.mxu0 0.0
    %368 = vmatprep.mubr.f32.mxu0 0.0
    %369 = vmatmul.mubr.f32.gmra.mxu0 %v296
    %v370 = vpop.f32.mrf.mxu0
    %v371 = vadd.f32 0.0, %v370
    %v372 = vpop.f32.mrf.mxu0
    %373 = vmatprep.mubr.f32.mxu0 0.0
    %374 = vmatmul.mubr.f32.gmra.mxu0 %v298
    %v375 = vpop.f32.mrf.mxu0
    %v376 = vadd.f32 0.0, %v375
    %v377 = vpop.f32.mrf.mxu0
    %378 = vdwg.mxu0
    %379 = vrot.lane.b32.xlu0 %v181, 96
    %v380 = vpop.permute.xlu0 %379
    %381 = vrot.lane.b32.xlu0 %v183, 96
    %v382 = vpop.permute.xlu0 %381
    %v383 = vsel %vm208, %v181, 0
    %v385 = vsel %vm208, %v183, 0
    %v387 = vsel %vm208, %v380, 0
    %v389 = vsel %vm208, %v382, 0
    %391 = vmatprep.subr.mxu0 0.0
    %392 = vmatpush1.xpose.msra.mxu0 0.0
    %393 = vmatprep.subr.mxu0 0.0
    %394 = vmatpush1.xpose.msra.mxu0 0.0
    %395 = vmatprep.subr.mxu0 0.0
    %396 = vmatpush1.xpose.msra.mxu0 0.0
    %397 = vmatprep.subr.mxu0 0.0
    %398 = vmatpush1.xpose.msra.mxu0 0.0
    %399 = vmatprep.subr.mxu0 0.0
    %400 = vmatpush1.xpose.msra.mxu0 0.0
    %401 = vmatprep.subr.mxu0 0.0
    %402 = vmatpush1.xpose.msra.mxu0 0.0
    %403 = vmatprep.subr.mxu0 0.0
    %404 = vmatpush1.xpose.msra.mxu0 0.0
    %405 = vmatprep.subr.mxu0 0.0
    %406 = vmatpush1.xpose.msra.mxu0 0.0
    %407 = vmatprep.subr.mxu0 0.0
    %408 = vmatpush1.xpose.msra.mxu0 0.0
    %409 = vmatprep.subr.mxu0 0.0
    %410 = vmatpush1.xpose.msra.mxu0 0.0
    %411 = vmatprep.subr.mxu0 0.0
    %412 = vmatpush1.xpose.msra.mxu0 0.0
    %413 = vmatprep.subr.mxu0 0.0
    %414 = vmatpush1.xpose.msra.mxu0 0.0
    %415 = vmatprep.subr.mxu0 0.0
    %416 = vmatpush1.xpose.msra.mxu0 0.0
    %417 = vmatprep.subr.mxu0 0.0
    %418 = vmatpush1.xpose.msra.mxu0 0.0
    %419 = vmatprep.subr.mxu0 0.0
    %420 = vmatpush1.xpose.msra.mxu0 %v389
    %421 = vmatprep.subr.mxu0 0.0
    %422 = vmatpush1.xpose.msra.mxu0 %v387
    %423 = vmatprep.subr.mxu0 0.0
    %424 = vmatpush2.xpose.msra.mxu0 0.0
    %425 = vmatprep.subr.mxu0 0.0
    %426 = vmatpush2.xpose.msra.mxu0 0.0
    %427 = vmatprep.subr.mxu0 0.0
    %428 = vmatpush2.xpose.msra.mxu0 0.0
    %429 = vmatprep.subr.mxu0 0.0
    %430 = vmatpush2.xpose.msra.mxu0 0.0
    %431 = vmatprep.subr.mxu0 0.0
    %432 = vmatpush2.xpose.msra.mxu0 0.0
    %433 = vmatprep.subr.mxu0 0.0
    %434 = vmatpush2.xpose.msra.mxu0 0.0
    %435 = vmatprep.subr.mxu0 0.0
    %436 = vmatpush2.xpose.msra.mxu0 0.0
    %437 = vmatprep.subr.mxu0 0.0
    %438 = vmatpush2.xpose.msra.mxu0 0.0
    %439 = vmatprep.subr.mxu0 0.0
    %440 = vmatpush2.xpose.msra.mxu0 0.0
    %441 = vmatprep.subr.mxu0 0.0
    %442 = vmatpush2.xpose.msra.mxu0 0.0
    %443 = vmatprep.subr.mxu0 0.0
    %444 = vmatpush2.xpose.msra.mxu0 0.0
    %445 = vmatprep.subr.mxu0 0.0
    %446 = vmatpush2.xpose.msra.mxu0 0.0
    %447 = vmatprep.subr.mxu0 0.0
    %448 = vmatpush2.xpose.msra.mxu0 0.0
    %449 = vmatprep.subr.mxu0 0.0
    %450 = vmatpush2.xpose.msra.mxu0 0.0
    %451 = vmatprep.subr.mxu0 0.0
    %452 = vmatpush2.xpose.msra.mxu0 0.0
    %453 = vmatprep.subr.mxu0 0.0
    %454 = vmatpush2.xpose.msra.mxu0 0.0
    %455 = vmatprep.mubr.f32.mxu0 0.0
    %456 = vmatmul.mubr.f32.gmra.mxu0 %v383
    %v457 = vpop.f32.mrf.mxu0
    %v458 = vadd.f32 0.0, %v457
    %v459 = vpop.f32.mrf.mxu0
    %460 = vmatprep.mubr.f32.mxu0 0.0
    %461 = vmatmul.mubr.f32.gmra.mxu0 %v385
    %v462 = vpop.f32.mrf.mxu0
    %v463 = vadd.f32 0.0, %v462
    %v464 = vpop.f32.mrf.mxu0
    %465 = vdwg.mxu0
    %466 = vrot.lane.b32.xlu0 %v185, 96
    %v467 = vpop.permute.xlu0 %466
    %468 = vrot.lane.b32.xlu0 %v187, 96
    %v469 = vpop.permute.xlu0 %468
    %v470 = vsel %vm208, %v185, 0
    %v472 = vsel %vm208, %v187, 0
    %v474 = vsel %vm208, %v467, 0
    %v476 = vsel %vm208, %v469, 0
    %478 = vmatprep.subr.mxu0 0.0
    %479 = vmatpush1.xpose.msra.mxu0 0.0
    %480 = vmatprep.subr.mxu0 0.0
    %481 = vmatpush1.xpose.msra.mxu0 0.0
    %482 = vmatprep.subr.mxu0 0.0
    %483 = vmatpush1.xpose.msra.mxu0 0.0
    %484 = vmatprep.subr.mxu0 0.0
    %485 = vmatpush1.xpose.msra.mxu0 0.0
    %486 = vmatprep.subr.mxu0 0.0
    %487 = vmatpush1.xpose.msra.mxu0 0.0
    %488 = vmatprep.subr.mxu0 0.0
    %489 = vmatpush1.xpose.msra.mxu0 0.0
    %490 = vmatprep.subr.mxu0 0.0
    %491 = vmatpush1.xpose.msra.mxu0 0.0
    %492 = vmatprep.subr.mxu0 0.0
    %493 = vmatpush1.xpose.msra.mxu0 0.0
    %494 = vmatprep.subr.mxu0 0.0
    %495 = vmatpush1.xpose.msra.mxu0 0.0
    %496 = vmatprep.subr.mxu0 0.0
    %497 = vmatpush1.xpose.msra.mxu0 0.0
    %498 = vmatprep.subr.mxu0 0.0
    %499 = vmatpush1.xpose.msra.mxu0 0.0
    %500 = vmatprep.subr.mxu0 0.0
    %501 = vmatpush1.xpose.msra.mxu0 0.0
    %502 = vmatprep.subr.mxu0 0.0
    %503 = vmatpush1.xpose.msra.mxu0 0.0
    %504 = vmatprep.subr.mxu0 0.0
    %505 = vmatpush1.xpose.msra.mxu0 0.0
    %506 = vmatprep.subr.mxu0 0.0
    %507 = vmatpush1.xpose.msra.mxu0 %v476
    %508 = vmatprep.subr.mxu0 0.0
    %509 = vmatpush1.xpose.msra.mxu0 %v474
    %510 = vmatprep.subr.mxu0 0.0
    %511 = vmatpush2.xpose.msra.mxu0 0.0
    %512 = vmatprep.subr.mxu0 0.0
    %513 = vmatpush2.xpose.msra.mxu0 0.0
    %514 = vmatprep.subr.mxu0 0.0
    %515 = vmatpush2.xpose.msra.mxu0 0.0
    %516 = vmatprep.subr.mxu0 0.0
    %517 = vmatpush2.xpose.msra.mxu0 0.0
    %518 = vmatprep.subr.mxu0 0.0
    %519 = vmatpush2.xpose.msra.mxu0 0.0
    %520 = vmatprep.subr.mxu0 0.0
    %521 = vmatpush2.xpose.msra.mxu0 0.0
    %522 = vmatprep.subr.mxu0 0.0
    %523 = vmatpush2.xpose.msra.mxu0 0.0
    %524 = vmatprep.subr.mxu0 0.0
    %525 = vmatpush2.xpose.msra.mxu0 0.0
    %526 = vmatprep.subr.mxu0 0.0
    %527 = vmatpush2.xpose.msra.mxu0 0.0
    %528 = vmatprep.subr.mxu0 0.0
    %529 = vmatpush2.xpose.msra.mxu0 0.0
    %530 = vmatprep.subr.mxu0 0.0
    %531 = vmatpush2.xpose.msra.mxu0 0.0
    %532 = vmatprep.subr.mxu0 0.0
    %533 = vmatpush2.xpose.msra.mxu0 0.0
    %534 = vmatprep.subr.mxu0 0.0
    %535 = vmatpush2.xpose.msra.mxu0 0.0
    %536 = vmatprep.subr.mxu0 0.0
    %537 = vmatpush2.xpose.msra.mxu0 0.0
    %538 = vmatprep.subr.mxu0 0.0
    %539 = vmatpush2.xpose.msra.mxu0 0.0
    %540 = vmatprep.subr.mxu0 0.0
    %541 = vmatpush2.xpose.msra.mxu0 0.0
    %542 = vmatprep.mubr.f32.mxu0 0.0
    %543 = vmatmul.mubr.f32.gmra.mxu0 %v470
    %v544 = vpop.f32.mrf.mxu0
    %v545 = vadd.f32 0.0, %v544
    %v546 = vpop.f32.mrf.mxu0
    %547 = vmatprep.mubr.f32.mxu0 0.0
    %548 = vmatmul.mubr.f32.gmra.mxu0 %v472
    %v549 = vpop.f32.mrf.mxu0
    %v550 = vadd.f32 0.0, %v549
    %v551 = vpop.f32.mrf.mxu0
    %552 = vdwg.mxu0
    %553 = vrot.lane.b32.xlu0 %v189, 96
    %v554 = vpop.permute.xlu0 %553
    %555 = vrot.lane.b32.xlu0 %v191, 96
    %v556 = vpop.permute.xlu0 %555
    %v557 = vsel %vm208, %v189, 0
    %v559 = vsel %vm208, %v191, 0
    %v561 = vsel %vm208, %v554, 0
    %v563 = vsel %vm208, %v556, 0
    %565 = vmatprep.subr.mxu0 0.0
    %566 = vmatpush1.xpose.msra.mxu0 0.0
    %567 = vmatprep.subr.mxu0 0.0
    %568 = vmatpush1.xpose.msra.mxu0 0.0
    %569 = vmatprep.subr.mxu0 0.0
    %570 = vmatpush1.xpose.msra.mxu0 0.0
    %571 = vmatprep.subr.mxu0 0.0
    %572 = vmatpush1.xpose.msra.mxu0 0.0
    %573 = vmatprep.subr.mxu0 0.0
    %574 = vmatpush1.xpose.msra.mxu0 0.0
    %575 = vmatprep.subr.mxu0 0.0
    %576 = vmatpush1.xpose.msra.mxu0 0.0
    %577 = vmatprep.subr.mxu0 0.0
    %578 = vmatpush1.xpose.msra.mxu0 0.0
    %579 = vmatprep.subr.mxu0 0.0
    %580 = vmatpush1.xpose.msra.mxu0 0.0
    %581 = vmatprep.subr.mxu0 0.0
    %582 = vmatpush1.xpose.msra.mxu0 0.0
    %583 = vmatprep.subr.mxu0 0.0
    %584 = vmatpush1.xpose.msra.mxu0 0.0
    %585 = vmatprep.subr.mxu0 0.0
    %586 = vmatpush1.xpose.msra.mxu0 0.0
    %587 = vmatprep.subr.mxu0 0.0
    %588 = vmatpush1.xpose.msra.mxu0 0.0
    %589 = vmatprep.subr.mxu0 0.0
    %590 = vmatpush1.xpose.msra.mxu0 0.0
    %591 = vmatprep.subr.mxu0 0.0
    %592 = vmatpush1.xpose.msra.mxu0 0.0
    %593 = vmatprep.subr.mxu0 0.0
    %594 = vmatpush1.xpose.msra.mxu0 %v563
    %595 = vmatprep.subr.mxu0 0.0
    %596 = vmatpush1.xpose.msra.mxu0 %v561
    %597 = vmatprep.subr.mxu0 0.0
    %598 = vmatpush2.xpose.msra.mxu0 0.0
    %599 = vmatprep.subr.mxu0 0.0
    %600 = vmatpush2.xpose.msra.mxu0 0.0
    %601 = vmatprep.subr.mxu0 0.0
    %602 = vmatpush2.xpose.msra.mxu0 0.0
    %603 = vmatprep.subr.mxu0 0.0
    %604 = vmatpush2.xpose.msra.mxu0 0.0
    %605 = vmatprep.subr.mxu0 0.0
    %606 = vmatpush2.xpose.msra.mxu0 0.0
    %607 = vmatprep.subr.mxu0 0.0
    %608 = vmatpush2.xpose.msra.mxu0 0.0
    %609 = vmatprep.subr.mxu0 0.0
    %610 = vmatpush2.xpose.msra.mxu0 0.0
    %611 = vmatprep.subr.mxu0 0.0
    %612 = vmatpush2.xpose.msra.mxu0 0.0
    %613 = vmatprep.subr.mxu0 0.0
    %614 = vmatpush2.xpose.msra.mxu0 0.0
    %615 = vmatprep.subr.mxu0 0.0
    %616 = vmatpush2.xpose.msra.mxu0 0.0
    %617 = vmatprep.subr.mxu0 0.0
    %618 = vmatpush2.xpose.msra.mxu0 0.0
    %619 = vmatprep.subr.mxu0 0.0
    %620 = vmatpush2.xpose.msra.mxu0 0.0
    %621 = vmatprep.subr.mxu0 0.0
    %622 = vmatpush2.xpose.msra.mxu0 0.0
    %623 = vmatprep.subr.mxu0 0.0
    %624 = vmatpush2.xpose.msra.mxu0 0.0
    %625 = vmatprep.subr.mxu0 0.0
    %626 = vmatpush2.xpose.msra.mxu0 0.0
    %627 = vmatprep.subr.mxu0 0.0
    %628 = vmatpush2.xpose.msra.mxu0 0.0
    %629 = vmatprep.mubr.f32.mxu0 0.0
    %630 = vmatmul.mubr.f32.gmra.mxu0 %v557
    %v631 = vpop.f32.mrf.mxu0
    %v632 = vadd.f32 0.0, %v631
    %v633 = vpop.f32.mrf.mxu0
    %634 = vmatprep.mubr.f32.mxu0 0.0
    %635 = vmatmul.mubr.f32.gmra.mxu0 %v559
    %v636 = vpop.f32.mrf.mxu0
    %v637 = vadd.f32 0.0, %v636
    %v638 = vpop.f32.mrf.mxu0
    %639 = vdwg.mxu0
    %640 = vrot.lane.b32.xlu0 %v193, 96
    %v641 = vpop.permute.xlu0 %640
    %642 = vrot.lane.b32.xlu0 %v195, 96
    %v643 = vpop.permute.xlu0 %642
    %v644 = vsel %vm208, %v193, 0
    %v646 = vsel %vm208, %v195, 0
    %v648 = vsel %vm208, %v641, 0
    %v650 = vsel %vm208, %v643, 0
    %652 = vmatprep.subr.mxu0 0.0
    %653 = vmatpush1.xpose.msra.mxu0 0.0
    %654 = vmatprep.subr.mxu0 0.0
    %655 = vmatpush1.xpose.msra.mxu0 0.0
    %656 = vmatprep.subr.mxu0 0.0
    %657 = vmatpush1.xpose.msra.mxu0 0.0
    %658 = vmatprep.subr.mxu0 0.0
    %659 = vmatpush1.xpose.msra.mxu0 0.0
    %660 = vmatprep.subr.mxu0 0.0
    %661 = vmatpush1.xpose.msra.mxu0 0.0
    %662 = vmatprep.subr.mxu0 0.0
    %663 = vmatpush1.xpose.msra.mxu0 0.0
    %664 = vmatprep.subr.mxu0 0.0
    %665 = vmatpush1.xpose.msra.mxu0 0.0
    %666 = vmatprep.subr.mxu0 0.0
    %667 = vmatpush1.xpose.msra.mxu0 0.0
    %668 = vmatprep.subr.mxu0 0.0
    %669 = vmatpush1.xpose.msra.mxu0 0.0
    %670 = vmatprep.subr.mxu0 0.0
    %671 = vmatpush1.xpose.msra.mxu0 0.0
    %672 = vmatprep.subr.mxu0 0.0
    %673 = vmatpush1.xpose.msra.mxu0 0.0
    %674 = vmatprep.subr.mxu0 0.0
    %675 = vmatpush1.xpose.msra.mxu0 0.0
    %676 = vmatprep.subr.mxu0 0.0
    %677 = vmatpush1.xpose.msra.mxu0 0.0
    %678 = vmatprep.subr.mxu0 0.0
    %679 = vmatpush1.xpose.msra.mxu0 0.0
    %680 = vmatprep.subr.mxu0 0.0
    %681 = vmatpush1.xpose.msra.mxu0 %v650
    %682 = vmatprep.subr.mxu0 0.0
    %683 = vmatpush1.xpose.msra.mxu0 %v648
    %684 = vmatprep.subr.mxu0 0.0
    %685 = vmatpush2.xpose.msra.mxu0 0.0
    %686 = vmatprep.subr.mxu0 0.0
    %687 = vmatpush2.xpose.msra.mxu0 0.0
    %688 = vmatprep.subr.mxu0 0.0
    %689 = vmatpush2.xpose.msra.mxu0 0.0
    %690 = vmatprep.subr.mxu0 0.0
    %691 = vmatpush2.xpose.msra.mxu0 0.0
    %692 = vmatprep.subr.mxu0 0.0
    %693 = vmatpush2.xpose.msra.mxu0 0.0
    %694 = vmatprep.subr.mxu0 0.0
    %695 = vmatpush2.xpose.msra.mxu0 0.0
    %696 = vmatprep.subr.mxu0 0.0
    %697 = vmatpush2.xpose.msra.mxu0 0.0
    %698 = vmatprep.subr.mxu0 0.0
    %699 = vmatpush2.xpose.msra.mxu0 0.0
    %700 = vmatprep.subr.mxu0 0.0
    %701 = vmatpush2.xpose.msra.mxu0 0.0
    %702 = vmatprep.subr.mxu0 0.0
    %703 = vmatpush2.xpose.msra.mxu0 0.0
    %704 = vmatprep.subr.mxu0 0.0
    %705 = vmatpush2.xpose.msra.mxu0 0.0
    %706 = vmatprep.subr.mxu0 0.0
    %707 = vmatpush2.xpose.msra.mxu0 0.0
    %708 = vmatprep.subr.mxu0 0.0
    %709 = vmatpush2.xpose.msra.mxu0 0.0
    %710 = vmatprep.subr.mxu0 0.0
    %711 = vmatpush2.xpose.msra.mxu0 0.0
    %712 = vmatprep.subr.mxu0 0.0
    %713 = vmatpush2.xpose.msra.mxu0 0.0
    %714 = vmatprep.subr.mxu0 0.0
    %715 = vmatpush2.xpose.msra.mxu0 0.0
    %716 = vmatprep.mubr.f32.mxu0 0.0
    %717 = vmatmul.mubr.f32.gmra.mxu0 %v644
    %v718 = vpop.f32.mrf.mxu0
    %v719 = vadd.f32 0.0, %v718
    %v720 = vpop.f32.mrf.mxu0
    %721 = vmatprep.mubr.f32.mxu0 0.0
    %722 = vmatmul.mubr.f32.gmra.mxu0 %v646
    %v723 = vpop.f32.mrf.mxu0
    %v724 = vadd.f32 0.0, %v723
    %v725 = vpop.f32.mrf.mxu0
    %726 = vdwg.mxu0
    %727 = vrot.lane.b32.xlu0 %v197, 96
    %v728 = vpop.permute.xlu0 %727
    %729 = vrot.lane.b32.xlu0 %v199, 96
    %v730 = vpop.permute.xlu0 %729
    %v731 = vsel %vm208, %v197, 0
    %v733 = vsel %vm208, %v199, 0
    %v735 = vsel %vm208, %v728, 0
    %v737 = vsel %vm208, %v730, 0
    %739 = vmatprep.subr.mxu0 0.0
    %740 = vmatpush1.xpose.msra.mxu0 0.0
    %741 = vmatprep.subr.mxu0 0.0
    %742 = vmatpush1.xpose.msra.mxu0 0.0
    %743 = vmatprep.subr.mxu0 0.0
    %744 = vmatpush1.xpose.msra.mxu0 0.0
    %745 = vmatprep.subr.mxu0 0.0
    %746 = vmatpush1.xpose.msra.mxu0 0.0
    %747 = vmatprep.subr.mxu0 0.0
    %748 = vmatpush1.xpose.msra.mxu0 0.0
    %749 = vmatprep.subr.mxu0 0.0
    %750 = vmatpush1.xpose.msra.mxu0 0.0
    %751 = vmatprep.subr.mxu0 0.0
    %752 = vmatpush1.xpose.msra.mxu0 0.0
    %753 = vmatprep.subr.mxu0 0.0
    %754 = vmatpush1.xpose.msra.mxu0 0.0
    %755 = vmatprep.subr.mxu0 0.0
    %756 = vmatpush1.xpose.msra.mxu0 0.0
    %757 = vmatprep.subr.mxu0 0.0
    %758 = vmatpush1.xpose.msra.mxu0 0.0
    %759 = vmatprep.subr.mxu0 0.0
    %760 = vmatpush1.xpose.msra.mxu0 0.0
    %761 = vmatprep.subr.mxu0 0.0
    %762 = vmatpush1.xpose.msra.mxu0 0.0
    %763 = vmatprep.subr.mxu0 0.0
    %764 = vmatpush1.xpose.msra.mxu0 0.0
    %765 = vmatprep.subr.mxu0 0.0
    %766 = vmatpush1.xpose.msra.mxu0 0.0
    %767 = vmatprep.subr.mxu0 0.0
    %768 = vmatpush1.xpose.msra.mxu0 %v737
    %769 = vmatprep.subr.mxu0 0.0
    %770 = vmatpush1.xpose.msra.mxu0 %v735
    %771 = vmatprep.subr.mxu0 0.0
    %772 = vmatpush2.xpose.msra.mxu0 0.0
    %773 = vmatprep.subr.mxu0 0.0
    %774 = vmatpush2.xpose.msra.mxu0 0.0
    %775 = vmatprep.subr.mxu0 0.0
    %776 = vmatpush2.xpose.msra.mxu0 0.0
    %777 = vmatprep.subr.mxu0 0.0
    %778 = vmatpush2.xpose.msra.mxu0 0.0
    %779 = vmatprep.subr.mxu0 0.0
    %780 = vmatpush2.xpose.msra.mxu0 0.0
    %781 = vmatprep.subr.mxu0 0.0
    %782 = vmatpush2.xpose.msra.mxu0 0.0
    %783 = vmatprep.subr.mxu0 0.0
    %784 = vmatpush2.xpose.msra.mxu0 0.0
    %785 = vmatprep.subr.mxu0 0.0
    %786 = vmatpush2.xpose.msra.mxu0 0.0
    %787 = vmatprep.subr.mxu0 0.0
    %788 = vmatpush2.xpose.msra.mxu0 0.0
    %789 = vmatprep.subr.mxu0 0.0
    %790 = vmatpush2.xpose.msra.mxu0 0.0
    %791 = vmatprep.subr.mxu0 0.0
    %792 = vmatpush2.xpose.msra.mxu0 0.0
    %793 = vmatprep.subr.mxu0 0.0
    %794 = vmatpush2.xpose.msra.mxu0 0.0
    %795 = vmatprep.subr.mxu0 0.0
    %796 = vmatpush2.xpose.msra.mxu0 0.0
    %797 = vmatprep.subr.mxu0 0.0
    %798 = vmatpush2.xpose.msra.mxu0 0.0
    %799 = vmatprep.subr.mxu0 0.0
    %800 = vmatpush2.xpose.msra.mxu0 0.0
    %801 = vmatprep.subr.mxu0 0.0
    %802 = vmatpush2.xpose.msra.mxu0 0.0
    %803 = vmatprep.mubr.f32.mxu0 0.0
    %804 = vmatmul.mubr.f32.gmra.mxu0 %v731
    %v805 = vpop.f32.mrf.mxu0
    %v806 = vadd.f32 0.0, %v805
    %v807 = vpop.f32.mrf.mxu0
    %808 = vmatprep.mubr.f32.mxu0 0.0
    %809 = vmatmul.mubr.f32.gmra.mxu0 %v733
    %v810 = vpop.f32.mrf.mxu0
    %v811 = vadd.f32 0.0, %v810
    %v812 = vpop.f32.mrf.mxu0
    %813 = vdwg.mxu0
    %814 = vrot.lane.b32.xlu0 %v201, 96
    %v815 = vpop.permute.xlu0 %814
    %816 = vrot.lane.b32.xlu0 %v203, 96
    %v817 = vpop.permute.xlu0 %816
    %v818 = vsel %vm208, %v201, 0
    %v820 = vsel %vm208, %v203, 0
    %v822 = vsel %vm208, %v815, 0
    %v824 = vsel %vm208, %v817, 0
    %826 = vmatprep.subr.mxu0 0.0
    %827 = vmatpush1.xpose.msra.mxu0 0.0
    %828 = vmatprep.subr.mxu0 0.0
    %829 = vmatpush1.xpose.msra.mxu0 0.0
    %830 = vmatprep.subr.mxu0 0.0
    %831 = vmatpush1.xpose.msra.mxu0 0.0
    %832 = vmatprep.subr.mxu0 0.0
    %833 = vmatpush1.xpose.msra.mxu0 0.0
    %834 = vmatprep.subr.mxu0 0.0
    %835 = vmatpush1.xpose.msra.mxu0 0.0
    %836 = vmatprep.subr.mxu0 0.0
    %837 = vmatpush1.xpose.msra.mxu0 0.0
    %838 = vmatprep.subr.mxu0 0.0
    %839 = vmatpush1.xpose.msra.mxu0 0.0
    %840 = vmatprep.subr.mxu0 0.0
    %841 = vmatpush1.xpose.msra.mxu0 0.0
    %842 = vmatprep.subr.mxu0 0.0
    %843 = vmatpush1.xpose.msra.mxu0 0.0
    %844 = vmatprep.subr.mxu0 0.0
    %845 = vmatpush1.xpose.msra.mxu0 0.0
    %846 = vmatprep.subr.mxu0 0.0
    %847 = vmatpush1.xpose.msra.mxu0 0.0
    %848 = vmatprep.subr.mxu0 0.0
    %849 = vmatpush1.xpose.msra.mxu0 0.0
    %850 = vmatprep.subr.mxu0 0.0
    %851 = vmatpush1.xpose.msra.mxu0 0.0
    %852 = vmatprep.subr.mxu0 0.0
    %853 = vmatpush1.xpose.msra.mxu0 0.0
    %854 = vmatprep.subr.mxu0 0.0
    %855 = vmatpush1.xpose.msra.mxu0 %v824
    %856 = vmatprep.subr.mxu0 0.0
    %857 = vmatpush1.xpose.msra.mxu0 %v822
    %858 = vmatprep.subr.mxu0 0.0
    %859 = vmatpush2.xpose.msra.mxu0 0.0
    %860 = vmatprep.subr.mxu0 0.0
    %861 = vmatpush2.xpose.msra.mxu0 0.0
    %862 = vmatprep.subr.mxu0 0.0
    %863 = vmatpush2.xpose.msra.mxu0 0.0
    %864 = vmatprep.subr.mxu0 0.0
    %865 = vmatpush2.xpose.msra.mxu0 0.0
    %866 = vmatprep.subr.mxu0 0.0
    %867 = vmatpush2.xpose.msra.mxu0 0.0
    %868 = vmatprep.subr.mxu0 0.0
    %869 = vmatpush2.xpose.msra.mxu0 0.0
    %870 = vmatprep.subr.mxu0 0.0
    %871 = vmatpush2.xpose.msra.mxu0 0.0
    %872 = vmatprep.subr.mxu0 0.0
    %873 = vmatpush2.xpose.msra.mxu0 0.0
    %874 = vmatprep.subr.mxu0 0.0
    %875 = vmatpush2.xpose.msra.mxu0 0.0
    %876 = vmatprep.subr.mxu0 0.0
    %877 = vmatpush2.xpose.msra.mxu0 0.0
    %878 = vmatprep.subr.mxu0 0.0
    %879 = vmatpush2.xpose.msra.mxu0 0.0
    %880 = vmatprep.subr.mxu0 0.0
    %881 = vmatpush2.xpose.msra.mxu0 0.0
    %882 = vmatprep.subr.mxu0 0.0
    %883 = vmatpush2.xpose.msra.mxu0 0.0
    %884 = vmatprep.subr.mxu0 0.0
    %885 = vmatpush2.xpose.msra.mxu0 0.0
    %886 = vmatprep.subr.mxu0 0.0
    %887 = vmatpush2.xpose.msra.mxu0 0.0
    %888 = vmatprep.subr.mxu0 0.0
    %889 = vmatpush2.xpose.msra.mxu0 0.0
    %890 = vmatprep.mubr.f32.mxu0 0.0
    %891 = vmatmul.mubr.f32.gmra.mxu0 %v818
    %v892 = vpop.f32.mrf.mxu0
    %v893 = vadd.f32 0.0, %v892
    %v894 = vpop.f32.mrf.mxu0
    %895 = vmatprep.mubr.f32.mxu0 0.0
    %896 = vmatmul.mubr.f32.gmra.mxu0 %v820
    %v897 = vpop.f32.mrf.mxu0
    %v898 = vadd.f32 0.0, %v897
    %v899 = vpop.f32.mrf.mxu0
    %900 = vdwg.mxu0
    %vm901 = vcmask 130048
    %v902 = vsel %vm901, %v284, -inf
    %903 = vmax.xlane.f32.xlu0 %v902
    %v904 = vpop.xlane.xlu0 %903
    %v905 = vsel %vm901, %v289, -inf
    %906 = vmax.xlane.f32.xlu0 %v905
    %v907 = vpop.xlane.xlu0 %906
    %v908 = vsel %vm901, %v371, -inf
    %909 = vmax.xlane.f32.xlu0 %v908
    %v910 = vpop.xlane.xlu0 %909
    %v911 = vsel %vm901, %v376, -inf
    %912 = vmax.xlane.f32.xlu0 %v911
    %v913 = vpop.xlane.xlu0 %912
    %v914 = vsel %vm901, %v458, -inf
    %915 = vmax.xlane.f32.xlu0 %v914
    %v916 = vpop.xlane.xlu0 %915
    %v917 = vsel %vm901, %v463, -inf
    %918 = vmax.xlane.f32.xlu0 %v917
    %v919 = vpop.xlane.xlu0 %918
    %v920 = vsel %vm901, %v545, -inf
    %921 = vmax.xlane.f32.xlu0 %v920
    %v922 = vpop.xlane.xlu0 %921
    %v923 = vsel %vm901, %v550, -inf
    %924 = vmax.xlane.f32.xlu0 %v923
    %v925 = vpop.xlane.xlu0 %924
    %v926 = vsel %vm901, %v632, -inf
    %927 = vmax.xlane.f32.xlu0 %v926
    %v928 = vpop.xlane.xlu0 %927
    %v929 = vsel %vm901, %v637, -inf
    %930 = vmax.xlane.f32.xlu0 %v929
    %v931 = vpop.xlane.xlu0 %930
    %v932 = vsel %vm901, %v719, -inf
    %933 = vmax.xlane.f32.xlu0 %v932
    %v934 = vpop.xlane.xlu0 %933
    %v935 = vsel %vm901, %v724, -inf
    %936 = vmax.xlane.f32.xlu0 %v935
    %v937 = vpop.xlane.xlu0 %936
    %v938 = vsel %vm901, %v806, -inf
    %939 = vmax.xlane.f32.xlu0 %v938
    %v940 = vpop.xlane.xlu0 %939
    %v941 = vsel %vm901, %v811, -inf
    %942 = vmax.xlane.f32.xlu0 %v941
    %v943 = vpop.xlane.xlu0 %942
    %v944 = vsel %vm901, %v893, -inf
    %945 = vmax.xlane.f32.xlu0 %v944
    %v946 = vpop.xlane.xlu0 %945
    %v947 = vsel %vm901, %v898, -inf
    %948 = vmax.xlane.f32.xlu0 %v947
    %v949 = vpop.xlane.xlu0 %948
    %v950 = vsub.f32 %v284, %v904
    %v951 = vsub.f32 %v289, %v907
    %v952 = vsub.f32 %v371, %v910
    %v953 = vsub.f32 %v376, %v913
    %v954 = vsub.f32 %v458, %v916
    %v955 = vsub.f32 %v463, %v919
    %v956 = vsub.f32 %v545, %v922
    %v957 = vsub.f32 %v550, %v925
    %v958 = vsub.f32 %v632, %v928
    %v959 = vsub.f32 %v637, %v931
    %v960 = vsub.f32 %v719, %v934
    %v961 = vsub.f32 %v724, %v937
    %v962 = vsub.f32 %v806, %v940
    %v963 = vsub.f32 %v811, %v943
    %v964 = vsub.f32 %v893, %v946
    %v965 = vsub.f32 %v898, %v949
    %v966 = vmul.f32 %v950, 1.442695
    %v967 = vpow.pop %v966
    %v968 = vmul.f32 %v951, 1.442695
    %v969 = vpow.pop %v968
    %v970 = vmul.f32 %v952, 1.442695
    %v971 = vpow.pop %v970
    %v972 = vmul.f32 %v953, 1.442695
    %v973 = vpow.pop %v972
    %v974 = vmul.f32 %v954, 1.442695
    %v975 = vpow.pop %v974
    %v976 = vmul.f32 %v955, 1.442695
    %v977 = vpow.pop %v976
    %v978 = vmul.f32 %v956, 1.442695
    %v979 = vpow.pop %v978
    %v980 = vmul.f32 %v957, 1.442695
    %v981 = vpow.pop %v980
    %v982 = vmul.f32 %v958, 1.442695
    %v983 = vpow.pop %v982
    %v984 = vmul.f32 %v959, 1.442695
    %v985 = vpow.pop %v984
    %v986 = vmul.f32 %v960, 1.442695
    %v987 = vpow.pop %v986
    %v988 = vmul.f32 %v961, 1.442695
    %v989 = vpow.pop %v988
    %v990 = vmul.f32 %v962, 1.442695
    %v991 = vpow.pop %v990
    %v992 = vmul.f32 %v963, 1.442695
    %v993 = vpow.pop %v992
    %v994 = vmul.f32 %v964, 1.442695
    %v995 = vpow.pop %v994
    %v996 = vmul.f32 %v965, 1.442695
    %v997 = vpow.pop %v996
    %v998 = vsel %vm901, %v967, 0.0
    %999 = vadd.xlane.f32.xlu0 %v998
    %v1000 = vpop.xlane.xlu0 %999
    %v1001 = vsel %vm901, %v969, 0.0
    %1002 = vadd.xlane.f32.xlu0 %v1001
    %v1003 = vpop.xlane.xlu0 %1002
    %v1004 = vsel %vm901, %v971, 0.0
    %1005 = vadd.xlane.f32.xlu0 %v1004
    %v1006 = vpop.xlane.xlu0 %1005
    %v1007 = vsel %vm901, %v973, 0.0
    %1008 = vadd.xlane.f32.xlu0 %v1007
    %v1009 = vpop.xlane.xlu0 %1008
    %v1010 = vsel %vm901, %v975, 0.0
    %1011 = vadd.xlane.f32.xlu0 %v1010
    %v1012 = vpop.xlane.xlu0 %1011
    %v1013 = vsel %vm901, %v977, 0.0
    %1014 = vadd.xlane.f32.xlu0 %v1013
    %v1015 = vpop.xlane.xlu0 %1014
    %v1016 = vsel %vm901, %v979, 0.0
    %1017 = vadd.xlane.f32.xlu0 %v1016
    %v1018 = vpop.xlane.xlu0 %1017
    %v1019 = vsel %vm901, %v981, 0.0
    %1020 = vadd.xlane.f32.xlu0 %v1019
    %v1021 = vpop.xlane.xlu0 %1020
    %v1022 = vsel %vm901, %v983, 0.0
    %1023 = vadd.xlane.f32.xlu0 %v1022
    %v1024 = vpop.xlane.xlu0 %1023
    %v1025 = vsel %vm901, %v985, 0.0
    %1026 = vadd.xlane.f32.xlu0 %v1025
    %v1027 = vpop.xlane.xlu0 %1026
    %v1028 = vsel %vm901, %v987, 0.0
    %1029 = vadd.xlane.f32.xlu0 %v1028
    %v1030 = vpop.xlane.xlu0 %1029
    %v1031 = vsel %vm901, %v989, 0.0
    %1032 = vadd.xlane.f32.xlu0 %v1031
    %v1033 = vpop.xlane.xlu0 %1032
    %v1034 = vsel %vm901, %v991, 0.0
    %1035 = vadd.xlane.f32.xlu0 %v1034
    %v1036 = vpop.xlane.xlu0 %1035
    %v1037 = vsel %vm901, %v993, 0.0
    %1038 = vadd.xlane.f32.xlu0 %v1037
    %v1039 = vpop.xlane.xlu0 %1038
    %v1040 = vsel %vm901, %v995, 0.0
    %1041 = vadd.xlane.f32.xlu0 %v1040
    %v1042 = vpop.xlane.xlu0 %1041
    %v1043 = vsel %vm901, %v997, 0.0
    %1044 = vadd.xlane.f32.xlu0 %v1043
    %v1045 = vpop.xlane.xlu0 %1044
    %v1046 = vrcp.pop %v1000
    %v1047 = vrcp.pop %v1003
    %v1048 = vrcp.pop %v1006
    %v1049 = vrcp.pop %v1009
    %v1050 = vrcp.pop %v1012
    %v1051 = vrcp.pop %v1015
    %v1052 = vrcp.pop %v1018
    %v1053 = vrcp.pop %v1021
    %v1054 = vrcp.pop %v1024
    %v1055 = vrcp.pop %v1027
    %v1056 = vrcp.pop %v1030
    %v1057 = vrcp.pop %v1033
    %v1058 = vrcp.pop %v1036
    %v1059 = vrcp.pop %v1039
    %v1060 = vrcp.pop %v1042
    %v1061 = vrcp.pop %v1045
    %v1062 = vmul.f32 %v1000, %v1046
    %v1063 = vmul.f32 %v1003, %v1047
    %v1064 = vmul.f32 %v1006, %v1048
    %v1065 = vmul.f32 %v1009, %v1049
    %v1066 = vmul.f32 %v1012, %v1050
    %v1067 = vmul.f32 %v1015, %v1051
    %v1068 = vmul.f32 %v1018, %v1052
    %v1069 = vmul.f32 %v1021, %v1053
    %v1070 = vmul.f32 %v1024, %v1054
    %v1071 = vmul.f32 %v1027, %v1055
    %v1072 = vmul.f32 %v1030, %v1056
    %v1073 = vmul.f32 %v1033, %v1057
    %v1074 = vmul.f32 %v1036, %v1058
    %v1075 = vmul.f32 %v1039, %v1059
    %v1076 = vmul.f32 %v1042, %v1060
    %v1077 = vmul.f32 %v1045, %v1061
    %v1078 = vsub.f32 2.0, %v1062
    %v1079 = vsub.f32 2.0, %v1063
    %v1080 = vsub.f32 2.0, %v1064
    %v1081 = vsub.f32 2.0, %v1065
    %v1082 = vsub.f32 2.0, %v1066
    %v1083 = vsub.f32 2.0, %v1067
    %v1084 = vsub.f32 2.0, %v1068
    %v1085 = vsub.f32 2.0, %v1069
    %v1086 = vsub.f32 2.0, %v1070
    %v1087 = vsub.f32 2.0, %v1071
    %v1088 = vsub.f32 2.0, %v1072
    %v1089 = vsub.f32 2.0, %v1073
    %v1090 = vsub.f32 2.0, %v1074
    %v1091 = vsub.f32 2.0, %v1075
    %v1092 = vsub.f32 2.0, %v1076
    %v1093 = vsub.f32 2.0, %v1077
    %v1094 = vmul.f32 %v1046, %v1078
    %v1095 = vmul.f32 %v1047, %v1079
    %v1096 = vmul.f32 %v1048, %v1080
    %v1097 = vmul.f32 %v1049, %v1081
    %v1098 = vmul.f32 %v1050, %v1082
    %v1099 = vmul.f32 %v1051, %v1083
    %v1100 = vmul.f32 %v1052, %v1084
    %v1101 = vmul.f32 %v1053, %v1085
    %v1102 = vmul.f32 %v1054, %v1086
    %v1103 = vmul.f32 %v1055, %v1087
    %v1104 = vmul.f32 %v1056, %v1088
    %v1105 = vmul.f32 %v1057, %v1089
    %v1106 = vmul.f32 %v1058, %v1090
    %v1107 = vmul.f32 %v1059, %v1091
    %v1108 = vmul.f32 %v1060, %v1092
    %v1109 = vmul.f32 %v1061, %v1093
    %v1110 = vmul.f32 %v967, %v1094
    %v1111 = vmul.f32 %v969, %v1095
    %v1112 = vmul.f32 %v971, %v1096
    %v1113 = vmul.f32 %v973, %v1097
    %v1114 = vmul.f32 %v975, %v1098
    %v1115 = vmul.f32 %v977, %v1099
    %v1116 = vmul.f32 %v979, %v1100
    %v1117 = vmul.f32 %v981, %v1101
    %v1118 = vmul.f32 %v983, %v1102
    %v1119 = vmul.f32 %v985, %v1103
    %v1120 = vmul.f32 %v987, %v1104
    %v1121 = vmul.f32 %v989, %v1105
    %v1122 = vmul.f32 %v991, %v1106
    %v1123 = vmul.f32 %v993, %v1107
    %v1124 = vmul.f32 %v995, %v1108
    %v1125 = vmul.f32 %v997, %v1109
    %1126 = vrot.lane.b32.xlu0 %v158, 64
    %v1127 = vpop.permute.xlu0 %1126
    %1128 = vrot.lane.b32.xlu0 %v163, 64
    %v1129 = vpop.permute.xlu0 %1128
    %v1133 = vsel %vm901, %v1110, 0
    %v1136 = vsel %vm901, %v1111, 0
    %1138 = vmatprep.subr.mxu0 0.0
    %1139 = vmatpush1.msra.mxu0 0.0
    %1140 = vmatprep.subr.mxu0 0.0
    %1141 = vmatpush1.msra.mxu0 0.0
    %1142 = vmatprep.subr.mxu0 0.0
    %1143 = vmatpush1.msra.mxu0 0.0
    %1144 = vmatprep.subr.mxu0 0.0
    %1145 = vmatpush1.msra.mxu0 0.0
    %1146 = vmatprep.subr.mxu0 0.0
    %1147 = vmatpush1.msra.mxu0 0.0
    %1148 = vmatprep.subr.mxu0 0.0
    %1149 = vmatpush1.msra.mxu0 0.0
    %1150 = vmatprep.subr.mxu0 0.0
    %1151 = vmatpush1.msra.mxu0 0.0
    %1152 = vmatprep.subr.mxu0 0.0
    %1153 = vmatpush1.msra.mxu0 0.0
    %1154 = vmatprep.subr.mxu0 0.0
    %1155 = vmatpush1.msra.mxu0 0.0
    %1156 = vmatprep.subr.mxu0 0.0
    %1157 = vmatpush1.msra.mxu0 0.0
    %1158 = vmatprep.subr.mxu0 0.0
    %1159 = vmatpush1.msra.mxu0 0.0
    %1160 = vmatprep.subr.mxu0 0.0
    %1161 = vmatpush1.msra.mxu0 0.0
    %1162 = vmatprep.subr.mxu0 0.0
    %1163 = vmatpush1.msra.mxu0 0.0
    %1164 = vmatprep.subr.mxu0 0.0
    %1165 = vmatpush1.msra.mxu0 0.0
    %1166 = vmatprep.subr.mxu0 0.0
    %1167 = vmatpush1.msra.mxu0 %v1129
    %1168 = vmatprep.subr.mxu0 0.0
    %1169 = vmatpush1.msra.mxu0 %v1127
    %1170 = vmatprep.subr.mxu0 0.0
    %1171 = vmatpush2.msra.mxu0 0.0
    %1172 = vmatprep.subr.mxu0 0.0
    %1173 = vmatpush2.msra.mxu0 0.0
    %1174 = vmatprep.subr.mxu0 0.0
    %1175 = vmatpush2.msra.mxu0 0.0
    %1176 = vmatprep.subr.mxu0 0.0
    %1177 = vmatpush2.msra.mxu0 0.0
    %1178 = vmatprep.subr.mxu0 0.0
    %1179 = vmatpush2.msra.mxu0 0.0
    %1180 = vmatprep.subr.mxu0 0.0
    %1181 = vmatpush2.msra.mxu0 0.0
    %1182 = vmatprep.subr.mxu0 0.0
    %1183 = vmatpush2.msra.mxu0 0.0
    %1184 = vmatprep.subr.mxu0 0.0
    %1185 = vmatpush2.msra.mxu0 0.0
    %1186 = vmatprep.subr.mxu0 0.0
    %1187 = vmatpush2.msra.mxu0 0.0
    %1188 = vmatprep.subr.mxu0 0.0
    %1189 = vmatpush2.msra.mxu0 0.0
    %1190 = vmatprep.subr.mxu0 0.0
    %1191 = vmatpush2.msra.mxu0 0.0
    %1192 = vmatprep.subr.mxu0 0.0
    %1193 = vmatpush2.msra.mxu0 0.0
    %1194 = vmatprep.subr.mxu0 0.0
    %1195 = vmatpush2.msra.mxu0 0.0
    %1196 = vmatprep.subr.mxu0 0.0
    %1197 = vmatpush2.msra.mxu0 0.0
    %1198 = vmatprep.subr.mxu0 0.0
    %1199 = vmatpush2.msra.mxu0 0.0
    %1200 = vmatprep.subr.mxu0 0.0
    %1201 = vmatpush2.msra.mxu0 0.0
    %1202 = vmatprep.mubr.f32.mxu0 0.0
    %1203 = vmatmul.mubr.f32.gmra.mxu0 %v1133
    %v1204 = vpop.f32.mrf.mxu0
    %v1205 = vadd.f32 0.0, %v1204
    %v1206 = vpop.f32.mrf.mxu0
    %1207 = vmatprep.mubr.f32.mxu0 0.0
    %1208 = vmatmul.mubr.f32.gmra.mxu0 %v1136
    %v1209 = vpop.f32.mrf.mxu0
    %v1210 = vadd.f32 0.0, %v1209
    %v1211 = vpop.f32.mrf.mxu0
    %1212 = vdwg.mxu0
    %1213 = vrot.lane.b32.xlu0 %v168, 64
    %v1214 = vpop.permute.xlu0 %1213
    %1215 = vrot.lane.b32.xlu0 %v173, 64
    %v1216 = vpop.permute.xlu0 %1215
    %v1220 = vsel %vm901, %v1112, 0
    %v1223 = vsel %vm901, %v1113, 0
    %1225 = vmatprep.subr.mxu0 0.0
    %1226 = vmatpush1.msra.mxu0 0.0
    %1227 = vmatprep.subr.mxu0 0.0
    %1228 = vmatpush1.msra.mxu0 0.0
    %1229 = vmatprep.subr.mxu0 0.0
    %1230 = vmatpush1.msra.mxu0 0.0
    %1231 = vmatprep.subr.mxu0 0.0
    %1232 = vmatpush1.msra.mxu0 0.0
    %1233 = vmatprep.subr.mxu0 0.0
    %1234 = vmatpush1.msra.mxu0 0.0
    %1235 = vmatprep.subr.mxu0 0.0
    %1236 = vmatpush1.msra.mxu0 0.0
    %1237 = vmatprep.subr.mxu0 0.0
    %1238 = vmatpush1.msra.mxu0 0.0
    %1239 = vmatprep.subr.mxu0 0.0
    %1240 = vmatpush1.msra.mxu0 0.0
    %1241 = vmatprep.subr.mxu0 0.0
    %1242 = vmatpush1.msra.mxu0 0.0
    %1243 = vmatprep.subr.mxu0 0.0
    %1244 = vmatpush1.msra.mxu0 0.0
    %1245 = vmatprep.subr.mxu0 0.0
    %1246 = vmatpush1.msra.mxu0 0.0
    %1247 = vmatprep.subr.mxu0 0.0
    %1248 = vmatpush1.msra.mxu0 0.0
    %1249 = vmatprep.subr.mxu0 0.0
    %1250 = vmatpush1.msra.mxu0 0.0
    %1251 = vmatprep.subr.mxu0 0.0
    %1252 = vmatpush1.msra.mxu0 0.0
    %1253 = vmatprep.subr.mxu0 0.0
    %1254 = vmatpush1.msra.mxu0 %v1216
    %1255 = vmatprep.subr.mxu0 0.0
    %1256 = vmatpush1.msra.mxu0 %v1214
    %1257 = vmatprep.subr.mxu0 0.0
    %1258 = vmatpush2.msra.mxu0 0.0
    %1259 = vmatprep.subr.mxu0 0.0
    %1260 = vmatpush2.msra.mxu0 0.0
    %1261 = vmatprep.subr.mxu0 0.0
    %1262 = vmatpush2.msra.mxu0 0.0
    %1263 = vmatprep.subr.mxu0 0.0
    %1264 = vmatpush2.msra.mxu0 0.0
    %1265 = vmatprep.subr.mxu0 0.0
    %1266 = vmatpush2.msra.mxu0 0.0
    %1267 = vmatprep.subr.mxu0 0.0
    %1268 = vmatpush2.msra.mxu0 0.0
    %1269 = vmatprep.subr.mxu0 0.0
    %1270 = vmatpush2.msra.mxu0 0.0
    %1271 = vmatprep.subr.mxu0 0.0
    %1272 = vmatpush2.msra.mxu0 0.0
    %1273 = vmatprep.subr.mxu0 0.0
    %1274 = vmatpush2.msra.mxu0 0.0
    %1275 = vmatprep.subr.mxu0 0.0
    %1276 = vmatpush2.msra.mxu0 0.0
    %1277 = vmatprep.subr.mxu0 0.0
    %1278 = vmatpush2.msra.mxu0 0.0
    %1279 = vmatprep.subr.mxu0 0.0
    %1280 = vmatpush2.msra.mxu0 0.0
    %1281 = vmatprep.subr.mxu0 0.0
    %1282 = vmatpush2.msra.mxu0 0.0
    %1283 = vmatprep.subr.mxu0 0.0
    %1284 = vmatpush2.msra.mxu0 0.0
    %1285 = vmatprep.subr.mxu0 0.0
    %1286 = vmatpush2.msra.mxu0 0.0
    %1287 = vmatprep.subr.mxu0 0.0
    %1288 = vmatpush2.msra.mxu0 0.0
    %1289 = vmatprep.mubr.f32.mxu0 0.0
    %1290 = vmatmul.mubr.f32.gmra.mxu0 %v1220
    %v1291 = vpop.f32.mrf.mxu0
    %v1292 = vadd.f32 0.0, %v1291
    %v1293 = vpop.f32.mrf.mxu0
    %1294 = vmatprep.mubr.f32.mxu0 0.0
    %1295 = vmatmul.mubr.f32.gmra.mxu0 %v1223
    %v1296 = vpop.f32.mrf.mxu0
    %v1297 = vadd.f32 0.0, %v1296
    %v1298 = vpop.f32.mrf.mxu0
    %1299 = vdwg.mxu0
    %1300 = vrot.lane.b32.xlu0 %v181, 64
    %v1301 = vpop.permute.xlu0 %1300
    %1302 = vrot.lane.b32.xlu0 %v183, 64
    %v1303 = vpop.permute.xlu0 %1302
    %v1307 = vsel %vm901, %v1114, 0
    %v1310 = vsel %vm901, %v1115, 0
    %1312 = vmatprep.subr.mxu0 0.0
    %1313 = vmatpush1.msra.mxu0 0.0
    %1314 = vmatprep.subr.mxu0 0.0
    %1315 = vmatpush1.msra.mxu0 0.0
    %1316 = vmatprep.subr.mxu0 0.0
    %1317 = vmatpush1.msra.mxu0 0.0
    %1318 = vmatprep.subr.mxu0 0.0
    %1319 = vmatpush1.msra.mxu0 0.0
    %1320 = vmatprep.subr.mxu0 0.0
    %1321 = vmatpush1.msra.mxu0 0.0
    %1322 = vmatprep.subr.mxu0 0.0
    %1323 = vmatpush1.msra.mxu0 0.0
    %1324 = vmatprep.subr.mxu0 0.0
    %1325 = vmatpush1.msra.mxu0 0.0
    %1326 = vmatprep.subr.mxu0 0.0
    %1327 = vmatpush1.msra.mxu0 0.0
    %1328 = vmatprep.subr.mxu0 0.0
    %1329 = vmatpush1.msra.mxu0 0.0
    %1330 = vmatprep.subr.mxu0 0.0
    %1331 = vmatpush1.msra.mxu0 0.0
    %1332 = vmatprep.subr.mxu0 0.0
    %1333 = vmatpush1.msra.mxu0 0.0
    %1334 = vmatprep.subr.mxu0 0.0
    %1335 = vmatpush1.msra.mxu0 0.0
    %1336 = vmatprep.subr.mxu0 0.0
    %1337 = vmatpush1.msra.mxu0 0.0
    %1338 = vmatprep.subr.mxu0 0.0
    %1339 = vmatpush1.msra.mxu0 0.0
    %1340 = vmatprep.subr.mxu0 0.0
    %1341 = vmatpush1.msra.mxu0 %v1303
    %1342 = vmatprep.subr.mxu0 0.0
    %1343 = vmatpush1.msra.mxu0 %v1301
    %1344 = vmatprep.subr.mxu0 0.0
    %1345 = vmatpush2.msra.mxu0 0.0
    %1346 = vmatprep.subr.mxu0 0.0
    %1347 = vmatpush2.msra.mxu0 0.0
    %1348 = vmatprep.subr.mxu0 0.0
    %1349 = vmatpush2.msra.mxu0 0.0
    %1350 = vmatprep.subr.mxu0 0.0
    %1351 = vmatpush2.msra.mxu0 0.0
    %1352 = vmatprep.subr.mxu0 0.0
    %1353 = vmatpush2.msra.mxu0 0.0
    %1354 = vmatprep.subr.mxu0 0.0
    %1355 = vmatpush2.msra.mxu0 0.0
    %1356 = vmatprep.subr.mxu0 0.0
    %1357 = vmatpush2.msra.mxu0 0.0
    %1358 = vmatprep.subr.mxu0 0.0
    %1359 = vmatpush2.msra.mxu0 0.0
    %1360 = vmatprep.subr.mxu0 0.0
    %1361 = vmatpush2.msra.mxu0 0.0
    %1362 = vmatprep.subr.mxu0 0.0
    %1363 = vmatpush2.msra.mxu0 0.0
    %1364 = vmatprep.subr.mxu0 0.0
    %1365 = vmatpush2.msra.mxu0 0.0
    %1366 = vmatprep.subr.mxu0 0.0
    %1367 = vmatpush2.msra.mxu0 0.0
    %1368 = vmatprep.subr.mxu0 0.0
    %1369 = vmatpush2.msra.mxu0 0.0
    %1370 = vmatprep.subr.mxu0 0.0
    %1371 = vmatpush2.msra.mxu0 0.0
    %1372 = vmatprep.subr.mxu0 0.0
    %1373 = vmatpush2.msra.mxu0 0.0
    %1374 = vmatprep.subr.mxu0 0.0
    %1375 = vmatpush2.msra.mxu0 0.0
    %1376 = vmatprep.mubr.f32.mxu0 0.0
    %1377 = vmatmul.mubr.f32.gmra.mxu0 %v1307
    %v1378 = vpop.f32.mrf.mxu0
    %v1379 = vadd.f32 0.0, %v1378
    %v1380 = vpop.f32.mrf.mxu0
    %1381 = vmatprep.mubr.f32.mxu0 0.0
    %1382 = vmatmul.mubr.f32.gmra.mxu0 %v1310
    %v1383 = vpop.f32.mrf.mxu0
    %v1384 = vadd.f32 0.0, %v1383
    %v1385 = vpop.f32.mrf.mxu0
    %1386 = vdwg.mxu0
    %1387 = vrot.lane.b32.xlu0 %v185, 64
    %v1388 = vpop.permute.xlu0 %1387
    %1389 = vrot.lane.b32.xlu0 %v187, 64
    %v1390 = vpop.permute.xlu0 %1389
    %v1394 = vsel %vm901, %v1116, 0
    %v1397 = vsel %vm901, %v1117, 0
    %1399 = vmatprep.subr.mxu0 0.0
    %1400 = vmatpush1.msra.mxu0 0.0
    %1401 = vmatprep.subr.mxu0 0.0
    %1402 = vmatpush1.msra.mxu0 0.0
    %1403 = vmatprep.subr.mxu0 0.0
    %1404 = vmatpush1.msra.mxu0 0.0
    %1405 = vmatprep.subr.mxu0 0.0
    %1406 = vmatpush1.msra.mxu0 0.0
    %1407 = vmatprep.subr.mxu0 0.0
    %1408 = vmatpush1.msra.mxu0 0.0
    %1409 = vmatprep.subr.mxu0 0.0
    %1410 = vmatpush1.msra.mxu0 0.0
    %1411 = vmatprep.subr.mxu0 0.0
    %1412 = vmatpush1.msra.mxu0 0.0
    %1413 = vmatprep.subr.mxu0 0.0
    %1414 = vmatpush1.msra.mxu0 0.0
    %1415 = vmatprep.subr.mxu0 0.0
    %1416 = vmatpush1.msra.mxu0 0.0
    %1417 = vmatprep.subr.mxu0 0.0
    %1418 = vmatpush1.msra.mxu0 0.0
    %1419 = vmatprep.subr.mxu0 0.0
    %1420 = vmatpush1.msra.mxu0 0.0
    %1421 = vmatprep.subr.mxu0 0.0
    %1422 = vmatpush1.msra.mxu0 0.0
    %1423 = vmatprep.subr.mxu0 0.0
    %1424 = vmatpush1.msra.mxu0 0.0
    %1425 = vmatprep.subr.mxu0 0.0
    %1426 = vmatpush1.msra.mxu0 0.0
    %1427 = vmatprep.subr.mxu0 0.0
    %1428 = vmatpush1.msra.mxu0 %v1390
    %1429 = vmatprep.subr.mxu0 0.0
    %1430 = vmatpush1.msra.mxu0 %v1388
    %1431 = vmatprep.subr.mxu0 0.0
    %1432 = vmatpush2.msra.mxu0 0.0
    %1433 = vmatprep.subr.mxu0 0.0
    %1434 = vmatpush2.msra.mxu0 0.0
    %1435 = vmatprep.subr.mxu0 0.0
    %1436 = vmatpush2.msra.mxu0 0.0
    %1437 = vmatprep.subr.mxu0 0.0
    %1438 = vmatpush2.msra.mxu0 0.0
    %1439 = vmatprep.subr.mxu0 0.0
    %1440 = vmatpush2.msra.mxu0 0.0
    %1441 = vmatprep.subr.mxu0 0.0
    %1442 = vmatpush2.msra.mxu0 0.0
    %1443 = vmatprep.subr.mxu0 0.0
    %1444 = vmatpush2.msra.mxu0 0.0
    %1445 = vmatprep.subr.mxu0 0.0
    %1446 = vmatpush2.msra.mxu0 0.0
    %1447 = vmatprep.subr.mxu0 0.0
    %1448 = vmatpush2.msra.mxu0 0.0
    %1449 = vmatprep.subr.mxu0 0.0
    %1450 = vmatpush2.msra.mxu0 0.0
    %1451 = vmatprep.subr.mxu0 0.0
    %1452 = vmatpush2.msra.mxu0 0.0
    %1453 = vmatprep.subr.mxu0 0.0
    %1454 = vmatpush2.msra.mxu0 0.0
    %1455 = vmatprep.subr.mxu0 0.0
    %1456 = vmatpush2.msra.mxu0 0.0
    %1457 = vmatprep.subr.mxu0 0.0
    %1458 = vmatpush2.msra.mxu0 0.0
    %1459 = vmatprep.subr.mxu0 0.0
    %1460 = vmatpush2.msra.mxu0 0.0
    %1461 = vmatprep.subr.mxu0 0.0
    %1462 = vmatpush2.msra.mxu0 0.0
    %1463 = vmatprep.mubr.f32.mxu0 0.0
    %1464 = vmatmul.mubr.f32.gmra.mxu0 %v1394
    %v1465 = vpop.f32.mrf.mxu0
    %v1466 = vadd.f32 0.0, %v1465
    %v1467 = vpop.f32.mrf.mxu0
    %1468 = vmatprep.mubr.f32.mxu0 0.0
    %1469 = vmatmul.mubr.f32.gmra.mxu0 %v1397
    %v1470 = vpop.f32.mrf.mxu0
    %v1471 = vadd.f32 0.0, %v1470
    %v1472 = vpop.f32.mrf.mxu0
    %1473 = vdwg.mxu0
    %1474 = vrot.lane.b32.xlu0 %v189, 64
    %v1475 = vpop.permute.xlu0 %1474
    %1476 = vrot.lane.b32.xlu0 %v191, 64
    %v1477 = vpop.permute.xlu0 %1476
    %v1481 = vsel %vm901, %v1118, 0
    %v1484 = vsel %vm901, %v1119, 0
    %1486 = vmatprep.subr.mxu0 0.0
    %1487 = vmatpush1.msra.mxu0 0.0
    %1488 = vmatprep.subr.mxu0 0.0
    %1489 = vmatpush1.msra.mxu0 0.0
    %1490 = vmatprep.subr.mxu0 0.0
    %1491 = vmatpush1.msra.mxu0 0.0
    %1492 = vmatprep.subr.mxu0 0.0
    %1493 = vmatpush1.msra.mxu0 0.0
    %1494 = vmatprep.subr.mxu0 0.0
    %1495 = vmatpush1.msra.mxu0 0.0
    %1496 = vmatprep.subr.mxu0 0.0
    %1497 = vmatpush1.msra.mxu0 0.0
    %1498 = vmatprep.subr.mxu0 0.0
    %1499 = vmatpush1.msra.mxu0 0.0
    %1500 = vmatprep.subr.mxu0 0.0
    %1501 = vmatpush1.msra.mxu0 0.0
    %1502 = vmatprep.subr.mxu0 0.0
    %1503 = vmatpush1.msra.mxu0 0.0
    %1504 = vmatprep.subr.mxu0 0.0
    %1505 = vmatpush1.msra.mxu0 0.0
    %1506 = vmatprep.subr.mxu0 0.0
    %1507 = vmatpush1.msra.mxu0 0.0
    %1508 = vmatprep.subr.mxu0 0.0
    %1509 = vmatpush1.msra.mxu0 0.0
    %1510 = vmatprep.subr.mxu0 0.0
    %1511 = vmatpush1.msra.mxu0 0.0
    %1512 = vmatprep.subr.mxu0 0.0
    %1513 = vmatpush1.msra.mxu0 0.0
    %1514 = vmatprep.subr.mxu0 0.0
    %1515 = vmatpush1.msra.mxu0 %v1477
    %1516 = vmatprep.subr.mxu0 0.0
    %1517 = vmatpush1.msra.mxu0 %v1475
    %1518 = vmatprep.subr.mxu0 0.0
    %1519 = vmatpush2.msra.mxu0 0.0
    %1520 = vmatprep.subr.mxu0 0.0
    %1521 = vmatpush2.msra.mxu0 0.0
    %1522 = vmatprep.subr.mxu0 0.0
    %1523 = vmatpush2.msra.mxu0 0.0
    %1524 = vmatprep.subr.mxu0 0.0
    %1525 = vmatpush2.msra.mxu0 0.0
    %1526 = vmatprep.subr.mxu0 0.0
    %1527 = vmatpush2.msra.mxu0 0.0
    %1528 = vmatprep.subr.mxu0 0.0
    %1529 = vmatpush2.msra.mxu0 0.0
    %1530 = vmatprep.subr.mxu0 0.0
    %1531 = vmatpush2.msra.mxu0 0.0
    %1532 = vmatprep.subr.mxu0 0.0
    %1533 = vmatpush2.msra.mxu0 0.0
    %1534 = vmatprep.subr.mxu0 0.0
    %1535 = vmatpush2.msra.mxu0 0.0
    %1536 = vmatprep.subr.mxu0 0.0
    %1537 = vmatpush2.msra.mxu0 0.0
    %1538 = vmatprep.subr.mxu0 0.0
    %1539 = vmatpush2.msra.mxu0 0.0
    %1540 = vmatprep.subr.mxu0 0.0
    %1541 = vmatpush2.msra.mxu0 0.0
    %1542 = vmatprep.subr.mxu0 0.0
    %1543 = vmatpush2.msra.mxu0 0.0
    %1544 = vmatprep.subr.mxu0 0.0
    %1545 = vmatpush2.msra.mxu0 0.0
    %1546 = vmatprep.subr.mxu0 0.0
    %1547 = vmatpush2.msra.mxu0 0.0
    %1548 = vmatprep.subr.mxu0 0.0
    %1549 = vmatpush2.msra.mxu0 0.0
    %1550 = vmatprep.mubr.f32.mxu0 0.0
    %1551 = vmatmul.mubr.f32.gmra.mxu0 %v1481
    %v1552 = vpop.f32.mrf.mxu0
    %v1553 = vadd.f32 0.0, %v1552
    %v1554 = vpop.f32.mrf.mxu0
    %1555 = vmatprep.mubr.f32.mxu0 0.0
    %1556 = vmatmul.mubr.f32.gmra.mxu0 %v1484
    %v1557 = vpop.f32.mrf.mxu0
    %v1558 = vadd.f32 0.0, %v1557
    %v1559 = vpop.f32.mrf.mxu0
    %1560 = vdwg.mxu0
    %1561 = vrot.lane.b32.xlu0 %v193, 64
    %v1562 = vpop.permute.xlu0 %1561
    %1563 = vrot.lane.b32.xlu0 %v195, 64
    %v1564 = vpop.permute.xlu0 %1563
    %v1568 = vsel %vm901, %v1120, 0
    %v1571 = vsel %vm901, %v1121, 0
    %1573 = vmatprep.subr.mxu0 0.0
    %1574 = vmatpush1.msra.mxu0 0.0
    %1575 = vmatprep.subr.mxu0 0.0
    %1576 = vmatpush1.msra.mxu0 0.0
    %1577 = vmatprep.subr.mxu0 0.0
    %1578 = vmatpush1.msra.mxu0 0.0
    %1579 = vmatprep.subr.mxu0 0.0
    %1580 = vmatpush1.msra.mxu0 0.0
    %1581 = vmatprep.subr.mxu0 0.0
    %1582 = vmatpush1.msra.mxu0 0.0
    %1583 = vmatprep.subr.mxu0 0.0
    %1584 = vmatpush1.msra.mxu0 0.0
    %1585 = vmatprep.subr.mxu0 0.0
    %1586 = vmatpush1.msra.mxu0 0.0
    %1587 = vmatprep.subr.mxu0 0.0
    %1588 = vmatpush1.msra.mxu0 0.0
    %1589 = vmatprep.subr.mxu0 0.0
    %1590 = vmatpush1.msra.mxu0 0.0
    %1591 = vmatprep.subr.mxu0 0.0
    %1592 = vmatpush1.msra.mxu0 0.0
    %1593 = vmatprep.subr.mxu0 0.0
    %1594 = vmatpush1.msra.mxu0 0.0
    %1595 = vmatprep.subr.mxu0 0.0
    %1596 = vmatpush1.msra.mxu0 0.0
    %1597 = vmatprep.subr.mxu0 0.0
    %1598 = vmatpush1.msra.mxu0 0.0
    %1599 = vmatprep.subr.mxu0 0.0
    %1600 = vmatpush1.msra.mxu0 0.0
    %1601 = vmatprep.subr.mxu0 0.0
    %1602 = vmatpush1.msra.mxu0 %v1564
    %1603 = vmatprep.subr.mxu0 0.0
    %1604 = vmatpush1.msra.mxu0 %v1562
    %1605 = vmatprep.subr.mxu0 0.0
    %1606 = vmatpush2.msra.mxu0 0.0
    %1607 = vmatprep.subr.mxu0 0.0
    %1608 = vmatpush2.msra.mxu0 0.0
    %1609 = vmatprep.subr.mxu0 0.0
    %1610 = vmatpush2.msra.mxu0 0.0
    %1611 = vmatprep.subr.mxu0 0.0
    %1612 = vmatpush2.msra.mxu0 0.0
    %1613 = vmatprep.subr.mxu0 0.0
    %1614 = vmatpush2.msra.mxu0 0.0
    %1615 = vmatprep.subr.mxu0 0.0
    %1616 = vmatpush2.msra.mxu0 0.0
    %1617 = vmatprep.subr.mxu0 0.0
    %1618 = vmatpush2.msra.mxu0 0.0
    %1619 = vmatprep.subr.mxu0 0.0
    %1620 = vmatpush2.msra.mxu0 0.0
    %1621 = vmatprep.subr.mxu0 0.0
    %1622 = vmatpush2.msra.mxu0 0.0
    %1623 = vmatprep.subr.mxu0 0.0
    %1624 = vmatpush2.msra.mxu0 0.0
    %1625 = vmatprep.subr.mxu0 0.0
    %1626 = vmatpush2.msra.mxu0 0.0
    %1627 = vmatprep.subr.mxu0 0.0
    %1628 = vmatpush2.msra.mxu0 0.0
    %1629 = vmatprep.subr.mxu0 0.0
    %1630 = vmatpush2.msra.mxu0 0.0
    %1631 = vmatprep.subr.mxu0 0.0
    %1632 = vmatpush2.msra.mxu0 0.0
    %1633 = vmatprep.subr.mxu0 0.0
    %1634 = vmatpush2.msra.mxu0 0.0
    %1635 = vmatprep.subr.mxu0 0.0
    %1636 = vmatpush2.msra.mxu0 0.0
    %1637 = vmatprep.mubr.f32.mxu0 0.0
    %1638 = vmatmul.mubr.f32.gmra.mxu0 %v1568
    %v1639 = vpop.f32.mrf.mxu0
    %v1640 = vadd.f32 0.0, %v1639
    %v1641 = vpop.f32.mrf.mxu0
    %1642 = vmatprep.mubr.f32.mxu0 0.0
    %1643 = vmatmul.mubr.f32.gmra.mxu0 %v1571
    %v1644 = vpop.f32.mrf.mxu0
    %v1645 = vadd.f32 0.0, %v1644
    %v1646 = vpop.f32.mrf.mxu0
    %1647 = vdwg.mxu0
    %1648 = vrot.lane.b32.xlu0 %v197, 64
    %v1649 = vpop.permute.xlu0 %1648
    %1650 = vrot.lane.b32.xlu0 %v199, 64
    %v1651 = vpop.permute.xlu0 %1650
    %v1655 = vsel %vm901, %v1122, 0
    %v1658 = vsel %vm901, %v1123, 0
    %1660 = vmatprep.subr.mxu0 0.0
    %1661 = vmatpush1.msra.mxu0 0.0
    %1662 = vmatprep.subr.mxu0 0.0
    %1663 = vmatpush1.msra.mxu0 0.0
    %1664 = vmatprep.subr.mxu0 0.0
    %1665 = vmatpush1.msra.mxu0 0.0
    %1666 = vmatprep.subr.mxu0 0.0
    %1667 = vmatpush1.msra.mxu0 0.0
    %1668 = vmatprep.subr.mxu0 0.0
    %1669 = vmatpush1.msra.mxu0 0.0
    %1670 = vmatprep.subr.mxu0 0.0
    %1671 = vmatpush1.msra.mxu0 0.0
    %1672 = vmatprep.subr.mxu0 0.0
    %1673 = vmatpush1.msra.mxu0 0.0
    %1674 = vmatprep.subr.mxu0 0.0
    %1675 = vmatpush1.msra.mxu0 0.0
    %1676 = vmatprep.subr.mxu0 0.0
    %1677 = vmatpush1.msra.mxu0 0.0
    %1678 = vmatprep.subr.mxu0 0.0
    %1679 = vmatpush1.msra.mxu0 0.0
    %1680 = vmatprep.subr.mxu0 0.0
    %1681 = vmatpush1.msra.mxu0 0.0
    %1682 = vmatprep.subr.mxu0 0.0
    %1683 = vmatpush1.msra.mxu0 0.0
    %1684 = vmatprep.subr.mxu0 0.0
    %1685 = vmatpush1.msra.mxu0 0.0
    %1686 = vmatprep.subr.mxu0 0.0
    %1687 = vmatpush1.msra.mxu0 0.0
    %1688 = vmatprep.subr.mxu0 0.0
    %1689 = vmatpush1.msra.mxu0 %v1651
    %1690 = vmatprep.subr.mxu0 0.0
    %1691 = vmatpush1.msra.mxu0 %v1649
    %1692 = vmatprep.subr.mxu0 0.0
    %1693 = vmatpush2.msra.mxu0 0.0
    %1694 = vmatprep.subr.mxu0 0.0
    %1695 = vmatpush2.msra.mxu0 0.0
    %1696 = vmatprep.subr.mxu0 0.0
    %1697 = vmatpush2.msra.mxu0 0.0
    %1698 = vmatprep.subr.mxu0 0.0
    %1699 = vmatpush2.msra.mxu0 0.0
    %1700 = vmatprep.subr.mxu0 0.0
    %1701 = vmatpush2.msra.mxu0 0.0
    %1702 = vmatprep.subr.mxu0 0.0
    %1703 = vmatpush2.msra.mxu0 0.0
    %1704 = vmatprep.subr.mxu0 0.0
    %1705 = vmatpush2.msra.mxu0 0.0
    %1706 = vmatprep.subr.mxu0 0.0
    %1707 = vmatpush2.msra.mxu0 0.0
    %1708 = vmatprep.subr.mxu0 0.0
    %1709 = vmatpush2.msra.mxu0 0.0
    %1710 = vmatprep.subr.mxu0 0.0
    %1711 = vmatpush2.msra.mxu0 0.0
    %1712 = vmatprep.subr.mxu0 0.0
    %1713 = vmatpush2.msra.mxu0 0.0
    %1714 = vmatprep.subr.mxu0 0.0
    %1715 = vmatpush2.msra.mxu0 0.0
    %1716 = vmatprep.subr.mxu0 0.0
    %1717 = vmatpush2.msra.mxu0 0.0
    %1718 = vmatprep.subr.mxu0 0.0
    %1719 = vmatpush2.msra.mxu0 0.0
    %1720 = vmatprep.subr.mxu0 0.0
    %1721 = vmatpush2.msra.mxu0 0.0
    %1722 = vmatprep.subr.mxu0 0.0
    %1723 = vmatpush2.msra.mxu0 0.0
    %1724 = vmatprep.mubr.f32.mxu0 0.0
    %1725 = vmatmul.mubr.f32.gmra.mxu0 %v1655
    %v1726 = vpop.f32.mrf.mxu0
    %v1727 = vadd.f32 0.0, %v1726
    %v1728 = vpop.f32.mrf.mxu0
    %1729 = vmatprep.mubr.f32.mxu0 0.0
    %1730 = vmatmul.mubr.f32.gmra.mxu0 %v1658
    %v1731 = vpop.f32.mrf.mxu0
    %v1732 = vadd.f32 0.0, %v1731
    %v1733 = vpop.f32.mrf.mxu0
    %1734 = vdwg.mxu0
    %1735 = vrot.lane.b32.xlu0 %v201, 64
    %v1736 = vpop.permute.xlu0 %1735
    %1737 = vrot.lane.b32.xlu0 %v203, 64
    %v1738 = vpop.permute.xlu0 %1737
    %v1742 = vsel %vm901, %v1124, 0
    %v1745 = vsel %vm901, %v1125, 0
    %1747 = vmatprep.subr.mxu0 0.0
    %1748 = vmatpush1.msra.mxu0 0.0
    %1749 = vmatprep.subr.mxu0 0.0
    %1750 = vmatpush1.msra.mxu0 0.0
    %1751 = vmatprep.subr.mxu0 0.0
    %1752 = vmatpush1.msra.mxu0 0.0
    %1753 = vmatprep.subr.mxu0 0.0
    %1754 = vmatpush1.msra.mxu0 0.0
    %1755 = vmatprep.subr.mxu0 0.0
    %1756 = vmatpush1.msra.mxu0 0.0
    %1757 = vmatprep.subr.mxu0 0.0
    %1758 = vmatpush1.msra.mxu0 0.0
    %1759 = vmatprep.subr.mxu0 0.0
    %1760 = vmatpush1.msra.mxu0 0.0
    %1761 = vmatprep.subr.mxu0 0.0
    %1762 = vmatpush1.msra.mxu0 0.0
    %1763 = vmatprep.subr.mxu0 0.0
    %1764 = vmatpush1.msra.mxu0 0.0
    %1765 = vmatprep.subr.mxu0 0.0
    %1766 = vmatpush1.msra.mxu0 0.0
    %1767 = vmatprep.subr.mxu0 0.0
    %1768 = vmatpush1.msra.mxu0 0.0
    %1769 = vmatprep.subr.mxu0 0.0
    %1770 = vmatpush1.msra.mxu0 0.0
    %1771 = vmatprep.subr.mxu0 0.0
    %1772 = vmatpush1.msra.mxu0 0.0
    %1773 = vmatprep.subr.mxu0 0.0
    %1774 = vmatpush1.msra.mxu0 0.0
    %1775 = vmatprep.subr.mxu0 0.0
    %1776 = vmatpush1.msra.mxu0 %v1738
    %1777 = vmatprep.subr.mxu0 0.0
    %1778 = vmatpush1.msra.mxu0 %v1736
    %1779 = vmatprep.subr.mxu0 0.0
    %1780 = vmatpush2.msra.mxu0 0.0
    %1781 = vmatprep.subr.mxu0 0.0
    %1782 = vmatpush2.msra.mxu0 0.0
    %1783 = vmatprep.subr.mxu0 0.0
    %1784 = vmatpush2.msra.mxu0 0.0
    %1785 = vmatprep.subr.mxu0 0.0
    %1786 = vmatpush2.msra.mxu0 0.0
    %1787 = vmatprep.subr.mxu0 0.0
    %1788 = vmatpush2.msra.mxu0 0.0
    %1789 = vmatprep.subr.mxu0 0.0
    %1790 = vmatpush2.msra.mxu0 0.0
    %1791 = vmatprep.subr.mxu0 0.0
    %1792 = vmatpush2.msra.mxu0 0.0
    %1793 = vmatprep.subr.mxu0 0.0
    %1794 = vmatpush2.msra.mxu0 0.0
    %1795 = vmatprep.subr.mxu0 0.0
    %1796 = vmatpush2.msra.mxu0 0.0
    %1797 = vmatprep.subr.mxu0 0.0
    %1798 = vmatpush2.msra.mxu0 0.0
    %1799 = vmatprep.subr.mxu0 0.0
    %1800 = vmatpush2.msra.mxu0 0.0
    %1801 = vmatprep.subr.mxu0 0.0
    %1802 = vmatpush2.msra.mxu0 0.0
    %1803 = vmatprep.subr.mxu0 0.0
    %1804 = vmatpush2.msra.mxu0 0.0
    %1805 = vmatprep.subr.mxu0 0.0
    %1806 = vmatpush2.msra.mxu0 0.0
    %1807 = vmatprep.subr.mxu0 0.0
    %1808 = vmatpush2.msra.mxu0 0.0
    %1809 = vmatprep.subr.mxu0 0.0
    %1810 = vmatpush2.msra.mxu0 0.0
    %1811 = vmatprep.mubr.f32.mxu0 0.0
    %1812 = vmatmul.mubr.f32.gmra.mxu0 %v1742
    %v1813 = vpop.f32.mrf.mxu0
    %v1814 = vadd.f32 0.0, %v1813
    %v1815 = vpop.f32.mrf.mxu0
    %1816 = vmatprep.mubr.f32.mxu0 0.0
    %1817 = vmatmul.mubr.f32.gmra.mxu0 %v1745
    %v1818 = vpop.f32.mrf.mxu0
    %v1819 = vadd.f32 0.0, %v1818
    %v1820 = vpop.f32.mrf.mxu0
    %1821 = vdwg.mxu0
    %1826 = vrot.lane.b32.xlu0 %v1379, 8
    %v1827 = vpop.permute.xlu0 %1826
    %1828 = vrot.lane.b32.xlu0 %v1384, 8
    %v1829 = vpop.permute.xlu0 %1828
    %1830 = vrot.lane.b32.xlu0 %v1466, 8
    %v1831 = vpop.permute.xlu0 %1830
    %1832 = vrot.lane.b32.xlu0 %v1471, 8
    %v1833 = vpop.permute.xlu0 %1832
    %1842 = vrot.lane.b32.xlu0 %v1553, 16
    %v1843 = vpop.permute.xlu0 %1842
    %1844 = vrot.lane.b32.xlu0 %v1558, 16
    %v1845 = vpop.permute.xlu0 %1844
    %1846 = vrot.lane.b32.xlu0 %v1640, 16
    %v1847 = vpop.permute.xlu0 %1846
    %1848 = vrot.lane.b32.xlu0 %v1645, 16
    %v1849 = vpop.permute.xlu0 %1848
    %1858 = vrot.lane.b32.xlu0 %v1727, 24
    %v1859 = vpop.permute.xlu0 %1858
    %1860 = vrot.lane.b32.xlu0 %v1732, 24
    %v1861 = vpop.permute.xlu0 %1860
    %1862 = vrot.lane.b32.xlu0 %v1814, 24
    %v1863 = vpop.permute.xlu0 %1862
    %1864 = vrot.lane.b32.xlu0 %v1819, 24
    %v1865 = vpop.permute.xlu0 %1864
    %v1870 = vsel %vm208, %v1205, %v1827
    %v1871 = vsel %vm208, %v1210, %v1829
    %v1872 = vsel %vm208, %v1292, %v1831
    %v1873 = vsel %vm208, %v1297, %v1833
    %v1874 = vsel %vm901, %v1870, %v1843
    %v1875 = vsel %vm901, %v1871, %v1845
    %v1876 = vsel %vm901, %v1872, %v1847
    %v1877 = vsel %vm901, %v1873, %v1849
    %vm1878 = vcmask 195584
    %v1879 = vsel %vm1878, %v1874, %v1859
    %v1880 = vsel %vm1878, %v1875, %v1861
    %v1881 = vsel %vm1878, %v1876, %v1863
    %v1882 = vsel %vm1878, %v1877, %v1865
    %v1883 = vld [vmem:[%s1] sm:$0xff]
    %v1884 = vld [vmem:[%s1 + $0x10] sm:$0xff]
    %v1885 = vld [vmem:[%s1 + $0x20] sm:$0xff]
    %v1886 = vld [vmem:[%s1 + $0x30] sm:$0xff]
    %1891 = vrot.lane.b32.xlu0 %v1883, 32
    %v1892 = vpop.permute.xlu0 %1891
    %1893 = vrot.lane.b32.xlu0 %v1884, 32
    %v1894 = vpop.permute.xlu0 %1893
    %1895 = vrot.lane.b32.xlu0 %v1885, 32
    %v1896 = vpop.permute.xlu0 %1895
    %1897 = vrot.lane.b32.xlu0 %v1886, 32
    %v1898 = vpop.permute.xlu0 %1897
    %v1904 = vsel %vm78, %v1879, 0
    %v1907 = vsel %vm78, %v1880, 0
    %v1910 = vsel %vm78, %v1881, 0
    %v1913 = vsel %vm78, %v1882, 0
    %1915 = vmatprep.subr.mxu0 0.0
    %1916 = vmatpush1.msra.mxu0 0.0
    %1917 = vmatprep.subr.mxu0 0.0
    %1918 = vmatpush1.msra.mxu0 0.0
    %1919 = vmatprep.subr.mxu0 0.0
    %1920 = vmatpush1.msra.mxu0 0.0
    %1921 = vmatprep.subr.mxu0 0.0
    %1922 = vmatpush1.msra.mxu0 0.0
    %1923 = vmatprep.subr.mxu0 0.0
    %1924 = vmatpush1.msra.mxu0 0.0
    %1925 = vmatprep.subr.mxu0 0.0
    %1926 = vmatpush1.msra.mxu0 0.0
    %1927 = vmatprep.subr.mxu0 0.0
    %1928 = vmatpush1.msra.mxu0 0.0
    %1929 = vmatprep.subr.mxu0 0.0
    %1930 = vmatpush1.msra.mxu0 0.0
    %1931 = vmatprep.subr.mxu0 0.0
    %1932 = vmatpush1.msra.mxu0 0.0
    %1933 = vmatprep.subr.mxu0 0.0
    %1934 = vmatpush1.msra.mxu0 0.0
    %1935 = vmatprep.subr.mxu0 0.0
    %1936 = vmatpush1.msra.mxu0 0.0
    %1937 = vmatprep.subr.mxu0 0.0
    %1938 = vmatpush1.msra.mxu0 0.0
    %1939 = vmatprep.subr.mxu0 0.0
    %1940 = vmatpush1.msra.mxu0 %v1898
    %1941 = vmatprep.subr.mxu0 0.0
    %1942 = vmatpush1.msra.mxu0 %v1896
    %1943 = vmatprep.subr.mxu0 0.0
    %1944 = vmatpush1.msra.mxu0 %v1894
    %1945 = vmatprep.subr.mxu0 0.0
    %1946 = vmatpush1.msra.mxu0 %v1892
    %1947 = vmatprep.subr.mxu0 0.0
    %1948 = vmatpush2.msra.mxu0 0.0
    %1949 = vmatprep.subr.mxu0 0.0
    %1950 = vmatpush2.msra.mxu0 0.0
    %1951 = vmatprep.subr.mxu0 0.0
    %1952 = vmatpush2.msra.mxu0 0.0
    %1953 = vmatprep.subr.mxu0 0.0
    %1954 = vmatpush2.msra.mxu0 0.0
    %1955 = vmatprep.subr.mxu0 0.0
    %1956 = vmatpush2.msra.mxu0 0.0
    %1957 = vmatprep.subr.mxu0 0.0
    %1958 = vmatpush2.msra.mxu0 0.0
    %1959 = vmatprep.subr.mxu0 0.0
    %1960 = vmatpush2.msra.mxu0 0.0
    %1961 = vmatprep.subr.mxu0 0.0
    %1962 = vmatpush2.msra.mxu0 0.0
    %1963 = vmatprep.subr.mxu0 0.0
    %1964 = vmatpush2.msra.mxu0 0.0
    %1965 = vmatprep.subr.mxu0 0.0
    %1966 = vmatpush2.msra.mxu0 0.0
    %1967 = vmatprep.subr.mxu0 0.0
    %1968 = vmatpush2.msra.mxu0 0.0
    %1969 = vmatprep.subr.mxu0 0.0
    %1970 = vmatpush2.msra.mxu0 0.0
    %1971 = vmatprep.subr.mxu0 0.0
    %1972 = vmatpush2.msra.mxu0 0.0
    %1973 = vmatprep.subr.mxu0 0.0
    %1974 = vmatpush2.msra.mxu0 0.0
    %1975 = vmatprep.subr.mxu0 0.0
    %1976 = vmatpush2.msra.mxu0 0.0
    %1977 = vmatprep.subr.mxu0 0.0
    %1978 = vmatpush2.msra.mxu0 0.0
    %1979 = vmatprep.mubr.f32.mxu0 0.0
    %1980 = vmatmul.mubr.f32.gmra.mxu0 %v1904
    %v1981 = vpop.f32.mrf.mxu0
    %v1982 = vadd.f32 %v43, %v1981
    %v1983 = vpop.f32.mrf.mxu0
    %1984 = vmatprep.mubr.f32.mxu0 0.0
    %1985 = vmatmul.mubr.f32.gmra.mxu0 %v1907
    %v1986 = vpop.f32.mrf.mxu0
    %v1987 = vadd.f32 %v43, %v1986
    %v1988 = vpop.f32.mrf.mxu0
    %1989 = vmatprep.mubr.f32.mxu0 0.0
    %1990 = vmatmul.mubr.f32.gmra.mxu0 %v1910
    %v1991 = vpop.f32.mrf.mxu0
    %v1992 = vadd.f32 %v43, %v1991
    %v1993 = vpop.f32.mrf.mxu0
    %1994 = vmatprep.mubr.f32.mxu0 0.0
    %1995 = vmatmul.mubr.f32.gmra.mxu0 %v1913
    %v1996 = vpop.f32.mrf.mxu0
    %v1997 = vadd.f32 %v43, %v1996
    %v1998 = vpop.f32.mrf.mxu0
    %1999 = vdwg.mxu0
    %v2000 = vadd.f32 %v30, %v1982
    %v2001 = vadd.f32 %v31, %v1987
    %v2002 = vadd.f32 %v32, %v1992
    %v2003 = vadd.f32 %v33, %v1997
    %v2004 = vsel %vm78, %v2000, 0.0
    %2005 = vadd.xlane.f32.xlu0 %v2004
    %v2006 = vpop.xlane.xlu0 %2005
    %v2007 = vsel %vm78, %v2001, 0.0
    %2008 = vadd.xlane.f32.xlu0 %v2007
    %v2009 = vpop.xlane.xlu0 %2008
    %v2010 = vsel %vm78, %v2002, 0.0
    %2011 = vadd.xlane.f32.xlu0 %v2010
    %v2012 = vpop.xlane.xlu0 %2011
    %v2013 = vsel %vm78, %v2003, 0.0
    %2014 = vadd.xlane.f32.xlu0 %v2013
    %v2015 = vpop.xlane.xlu0 %2014
    %v2016 = vrcp.pop 32.0
    %v2017 = vmul.f32 %v2006, %v2016
    %v2018 = vmul.f32 %v2009, %v2016
    %v2019 = vmul.f32 %v2012, %v2016
    %v2020 = vmul.f32 %v2015, %v2016
    %v2021 = vsub.f32 %v2000, %v2017
    %v2022 = vsub.f32 %v2001, %v2018
    %v2023 = vsub.f32 %v2002, %v2019
    %v2024 = vsub.f32 %v2003, %v2020
    %v2025 = vmul.f32 %v2021, %v2021
    %v2026 = vmul.f32 %v2022, %v2022
    %v2027 = vmul.f32 %v2023, %v2023
    %v2028 = vmul.f32 %v2024, %v2024
    %v2029 = vsel %vm78, %v2025, 0.0
    %2030 = vadd.xlane.f32.xlu0 %v2029
    %v2031 = vpop.xlane.xlu0 %2030
    %v2032 = vsel %vm78, %v2026, 0.0
    %2033 = vadd.xlane.f32.xlu0 %v2032
    %v2034 = vpop.xlane.xlu0 %2033
    %v2035 = vsel %vm78, %v2027, 0.0
    %2036 = vadd.xlane.f32.xlu0 %v2035
    %v2037 = vpop.xlane.xlu0 %2036
    %v2038 = vsel %vm78, %v2028, 0.0
    %2039 = vadd.xlane.f32.xlu0 %v2038
    %v2040 = vpop.xlane.xlu0 %2039
    %v2041 = vmul.f32 %v2031, %v2016
    %v2042 = vmul.f32 %v2034, %v2016
    %v2043 = vmul.f32 %v2037, %v2016
    %v2044 = vmul.f32 %v2040, %v2016
    %v2045 = vadd.f32 %v2041, 1e-05
    %v2046 = vadd.f32 %v2042, 1e-05
    %v2047 = vadd.f32 %v2043, 1e-05
    %v2048 = vadd.f32 %v2044, 1e-05
    %v2049 = vrsqrt.pop %v2045
    %v2050 = vrsqrt.pop %v2046
    %v2051 = vrsqrt.pop %v2047
    %v2052 = vrsqrt.pop %v2048
    %v2053 = vmul.f32 %v2021, %v2049
    %v2054 = vmul.f32 %v2022, %v2050
    %v2055 = vmul.f32 %v2023, %v2051
    %v2056 = vmul.f32 %v2024, %v2052
    %v2057 = vmul.f32 %v2053, %v48
    %v2058 = vmul.f32 %v2054, %v48
    %v2059 = vmul.f32 %v2055, %v48
    %v2060 = vmul.f32 %v2056, %v48
    %v2061 = vadd.f32 %v2057, %v53
    %v2062 = vadd.f32 %v2058, %v53
    %v2063 = vadd.f32 %v2059, %v53
    %v2064 = vadd.f32 %v2060, %v53
    %v2065 = vld [vmem:[%s1 + $0x8] sm:$0xff]
    %v2066 = vld [vmem:[%s1 + $0x18] sm:$0xff]
    %v2067 = vld [vmem:[%s1 + $0x28] sm:$0xff]
    %v2068 = vld [vmem:[%s1 + $0x38] sm:$0xff]
    %v2070 = vsel %vm78, %v2061, 0
    %v2073 = vsel %vm78, %v2062, 0
    %v2076 = vsel %vm78, %v2063, 0
    %v2079 = vsel %vm78, %v2064, 0
    %2081 = vmatprep.subr.mxu0 0.0
    %2082 = vmatpush1.msra.mxu0 0.0
    %2083 = vmatprep.subr.mxu0 0.0
    %2084 = vmatpush1.msra.mxu0 0.0
    %2085 = vmatprep.subr.mxu0 0.0
    %2086 = vmatpush1.msra.mxu0 0.0
    %2087 = vmatprep.subr.mxu0 0.0
    %2088 = vmatpush1.msra.mxu0 0.0
    %2089 = vmatprep.subr.mxu0 0.0
    %2090 = vmatpush1.msra.mxu0 0.0
    %2091 = vmatprep.subr.mxu0 0.0
    %2092 = vmatpush1.msra.mxu0 0.0
    %2093 = vmatprep.subr.mxu0 0.0
    %2094 = vmatpush1.msra.mxu0 0.0
    %2095 = vmatprep.subr.mxu0 0.0
    %2096 = vmatpush1.msra.mxu0 0.0
    %2097 = vmatprep.subr.mxu0 0.0
    %2098 = vmatpush1.msra.mxu0 0.0
    %2099 = vmatprep.subr.mxu0 0.0
    %2100 = vmatpush1.msra.mxu0 0.0
    %2101 = vmatprep.subr.mxu0 0.0
    %2102 = vmatpush1.msra.mxu0 0.0
    %2103 = vmatprep.subr.mxu0 0.0
    %2104 = vmatpush1.msra.mxu0 0.0
    %2105 = vmatprep.subr.mxu0 0.0
    %2106 = vmatpush1.msra.mxu0 %v2068
    %2107 = vmatprep.subr.mxu0 0.0
    %2108 = vmatpush1.msra.mxu0 %v2067
    %2109 = vmatprep.subr.mxu0 0.0
    %2110 = vmatpush1.msra.mxu0 %v2066
    %2111 = vmatprep.subr.mxu0 0.0
    %2112 = vmatpush1.msra.mxu0 %v2065
    %2113 = vmatprep.subr.mxu0 0.0
    %2114 = vmatpush2.msra.mxu0 0.0
    %2115 = vmatprep.subr.mxu0 0.0
    %2116 = vmatpush2.msra.mxu0 0.0
    %2117 = vmatprep.subr.mxu0 0.0
    %2118 = vmatpush2.msra.mxu0 0.0
    %2119 = vmatprep.subr.mxu0 0.0
    %2120 = vmatpush2.msra.mxu0 0.0
    %2121 = vmatprep.subr.mxu0 0.0
    %2122 = vmatpush2.msra.mxu0 0.0
    %2123 = vmatprep.subr.mxu0 0.0
    %2124 = vmatpush2.msra.mxu0 0.0
    %2125 = vmatprep.subr.mxu0 0.0
    %2126 = vmatpush2.msra.mxu0 0.0
    %2127 = vmatprep.subr.mxu0 0.0
    %2128 = vmatpush2.msra.mxu0 0.0
    %2129 = vmatprep.subr.mxu0 0.0
    %2130 = vmatpush2.msra.mxu0 0.0
    %2131 = vmatprep.subr.mxu0 0.0
    %2132 = vmatpush2.msra.mxu0 0.0
    %2133 = vmatprep.subr.mxu0 0.0
    %2134 = vmatpush2.msra.mxu0 0.0
    %2135 = vmatprep.subr.mxu0 0.0
    %2136 = vmatpush2.msra.mxu0 0.0
    %2137 = vmatprep.subr.mxu0 0.0
    %2138 = vmatpush2.msra.mxu0 0.0
    %2139 = vmatprep.subr.mxu0 0.0
    %2140 = vmatpush2.msra.mxu0 0.0
    %2141 = vmatprep.subr.mxu0 0.0
    %2142 = vmatpush2.msra.mxu0 0.0
    %2143 = vmatprep.subr.mxu0 0.0
    %2144 = vmatpush2.msra.mxu0 0.0
    %2145 = vmatprep.mubr.f32.mxu0 0.0
    %2146 = vmatmul.mubr.f32.gmra.mxu0 %v2070
    %v2147 = vpop.f32.mrf.mxu0
    %v2148 = vadd.f32 %v58, %v2147
    %v2149 = vpop.f32.mrf.mxu0
    %2150 = vmatprep.mubr.f32.mxu0 0.0
    %2151 = vmatmul.mubr.f32.gmra.mxu0 %v2073
    %v2152 = vpop.f32.mrf.mxu0
    %v2153 = vadd.f32 %v58, %v2152
    %v2154 = vpop.f32.mrf.mxu0
    %2155 = vmatprep.mubr.f32.mxu0 0.0
    %2156 = vmatmul.mubr.f32.gmra.mxu0 %v2076
    %v2157 = vpop.f32.mrf.mxu0
    %v2158 = vadd.f32 %v58, %v2157
    %v2159 = vpop.f32.mrf.mxu0
    %2160 = vmatprep.mubr.f32.mxu0 0.0
    %2161 = vmatmul.mubr.f32.gmra.mxu0 %v2079
    %v2162 = vpop.f32.mrf.mxu0
    %v2163 = vadd.f32 %v58, %v2162
    %v2164 = vpop.f32.mrf.mxu0
    %2165 = vdwg.mxu0
    %v2166 = vmax.f32 %v2148, 0.0
    %v2167 = vmax.f32 %v2153, 0.0
    %v2168 = vmax.f32 %v2158, 0.0
    %v2169 = vmax.f32 %v2163, 0.0
    %v2170 = vld [vmem:[%s2] sm:$0xff]
    %v2171 = vld [vmem:[%s2 + $0x8] sm:$0xff]
    %v2172 = vld [vmem:[%s2 + $0x10] sm:$0xff]
    %v2173 = vld [vmem:[%s2 + $0x18] sm:$0xff]
    %v2174 = vld [vmem:[%s2 + $0x20] sm:$0xff]
    %v2175 = vld [vmem:[%s2 + $0x28] sm:$0xff]
    %v2176 = vld [vmem:[%s2 + $0x30] sm:$0xff]
    %v2177 = vld [vmem:[%s2 + $0x38] sm:$0xff]
    %vm2178 = vcmask 523264
    %v2180 = vsel %vm2178, %v2166, 0
    %v2183 = vsel %vm2178, %v2167, 0
    %v2186 = vsel %vm2178, %v2168, 0
    %v2189 = vsel %vm2178, %v2169, 0
    %2191 = vmatprep.subr.mxu0 0.0
    %2192 = vmatpush1.msra.mxu0 0.0
    %2193 = vmatprep.subr.mxu0 0.0
    %2194 = vmatpush1.msra.mxu0 0.0
    %2195 = vmatprep.subr.mxu0 0.0
    %2196 = vmatpush1.msra.mxu0 0.0
    %2197 = vmatprep.subr.mxu0 0.0
    %2198 = vmatpush1.msra.mxu0 0.0
    %2199 = vmatprep.subr.mxu0 0.0
    %2200 = vmatpush1.msra.mxu0 0.0
    %2201 = vmatprep.subr.mxu0 0.0
    %2202 = vmatpush1.msra.mxu0 0.0
    %2203 = vmatprep.subr.mxu0 0.0
    %2204 = vmatpush1.msra.mxu0 0.0
    %2205 = vmatprep.subr.mxu0 0.0
    %2206 = vmatpush1.msra.mxu0 0.0
    %2207 = vmatprep.subr.mxu0 0.0
    %2208 = vmatpush1.msra.mxu0 %v2177
    %2209 = vmatprep.subr.mxu0 0.0
    %2210 = vmatpush1.msra.mxu0 %v2176
    %2211 = vmatprep.subr.mxu0 0.0
    %2212 = vmatpush1.msra.mxu0 %v2175
    %2213 = vmatprep.subr.mxu0 0.0
    %2214 = vmatpush1.msra.mxu0 %v2174
    %2215 = vmatprep.subr.mxu0 0.0
    %2216 = vmatpush1.msra.mxu0 %v2173
    %2217 = vmatprep.subr.mxu0 0.0
    %2218 = vmatpush1.msra.mxu0 %v2172
    %2219 = vmatprep.subr.mxu0 0.0
    %2220 = vmatpush1.msra.mxu0 %v2171
    %2221 = vmatprep.subr.mxu0 0.0
    %2222 = vmatpush1.msra.mxu0 %v2170
    %2223 = vmatprep.subr.mxu0 0.0
    %2224 = vmatpush2.msra.mxu0 0.0
    %2225 = vmatprep.subr.mxu0 0.0
    %2226 = vmatpush2.msra.mxu0 0.0
    %2227 = vmatprep.subr.mxu0 0.0
    %2228 = vmatpush2.msra.mxu0 0.0
    %2229 = vmatprep.subr.mxu0 0.0
    %2230 = vmatpush2.msra.mxu0 0.0
    %2231 = vmatprep.subr.mxu0 0.0
    %2232 = vmatpush2.msra.mxu0 0.0
    %2233 = vmatprep.subr.mxu0 0.0
    %2234 = vmatpush2.msra.mxu0 0.0
    %2235 = vmatprep.subr.mxu0 0.0
    %2236 = vmatpush2.msra.mxu0 0.0
    %2237 = vmatprep.subr.mxu0 0.0
    %2238 = vmatpush2.msra.mxu0 0.0
    %2239 = vmatprep.subr.mxu0 0.0
    %2240 = vmatpush2.msra.mxu0 0.0
    %2241 = vmatprep.subr.mxu0 0.0
    %2242 = vmatpush2.msra.mxu0 0.0
    %2243 = vmatprep.subr.mxu0 0.0
    %2244 = vmatpush2.msra.mxu0 0.0
    %2245 = vmatprep.subr.mxu0 0.0
    %2246 = vmatpush2.msra.mxu0 0.0
    %2247 = vmatprep.subr.mxu0 0.0
    %2248 = vmatpush2.msra.mxu0 0.0
    %2249 = vmatprep.subr.mxu0 0.0
    %2250 = vmatpush2.msra.mxu0 0.0
    %2251 = vmatprep.subr.mxu0 0.0
    %2252 = vmatpush2.msra.mxu0 0.0
    %2253 = vmatprep.subr.mxu0 0.0
    %2254 = vmatpush2.msra.mxu0 0.0
    %2255 = vmatprep.mubr.f32.mxu0 0.0
    %2256 = vmatmul.mubr.f32.gmra.mxu0 %v2180
    %v2257 = vpop.f32.mrf.mxu0
    %v2258 = vadd.f32 %v63, %v2257
    %v2259 = vpop.f32.mrf.mxu0
    %2260 = vmatprep.mubr.f32.mxu0 0.0
    %2261 = vmatmul.mubr.f32.gmra.mxu0 %v2183
    %v2262 = vpop.f32.mrf.mxu0
    %v2263 = vadd.f32 %v63, %v2262
    %v2264 = vpop.f32.mrf.mxu0
    %2265 = vmatprep.mubr.f32.mxu0 0.0
    %2266 = vmatmul.mubr.f32.gmra.mxu0 %v2186
    %v2267 = vpop.f32.mrf.mxu0
    %v2268 = vadd.f32 %v63, %v2267
    %v2269 = vpop.f32.mrf.mxu0
    %2270 = vmatprep.mubr.f32.mxu0 0.0
    %2271 = vmatmul.mubr.f32.gmra.mxu0 %v2189
    %v2272 = vpop.f32.mrf.mxu0
    %v2273 = vadd.f32 %v63, %v2272
    %v2274 = vpop.f32.mrf.mxu0
    %2275 = vdwg.mxu0
    %v2276 = vadd.f32 %v2061, %v2258
    %v2277 = vadd.f32 %v2062, %v2263
    %v2278 = vadd.f32 %v2063, %v2268
    %v2279 = vadd.f32 %v2064, %v2273
    %v2280 = vsel %vm78, %v2276, 0.0
    %2281 = vadd.xlane.f32.xlu0 %v2280
    %v2282 = vpop.xlane.xlu0 %2281
    %v2283 = vsel %vm78, %v2277, 0.0
    %2284 = vadd.xlane.f32.xlu0 %v2283
    %v2285 = vpop.xlane.xlu0 %2284
    %v2286 = vsel %vm78, %v2278, 0.0
    %2287 = vadd.xlane.f32.xlu0 %v2286
    %v2288 = vpop.xlane.xlu0 %2287
    %v2289 = vsel %vm78, %v2279, 0.0
    %2290 = vadd.xlane.f32.xlu0 %v2289
    %v2291 = vpop.xlane.xlu0 %2290
    %v2292 = vmul.f32 %v2282, %v2016
    %v2293 = vmul.f32 %v2285, %v2016
    %v2294 = vmul.f32 %v2288, %v2016
    %v2295 = vmul.f32 %v2291, %v2016
    %v2296 = vsub.f32 %v2276, %v2292
    %v2297 = vsub.f32 %v2277, %v2293
    %v2298 = vsub.f32 %v2278, %v2294
    %v2299 = vsub.f32 %v2279, %v2295
    %v2300 = vmul.f32 %v2296, %v2296
    %v2301 = vmul.f32 %v2297, %v2297
    %v2302 = vmul.f32 %v2298, %v2298
    %v2303 = vmul.f32 %v2299, %v2299
    %v2304 = vsel %vm78, %v2300, 0.0
    %2305 = vadd.xlane.f32.xlu0 %v2304
    %v2306 = vpop.xlane.xlu0 %2305
    %v2307 = vsel %vm78, %v2301, 0.0
    %2308 = vadd.xlane.f32.xlu0 %v2307
    %v2309 = vpop.xlane.xlu0 %2308
    %v2310 = vsel %vm78, %v2302, 0.0
    %2311 = vadd.xlane.f32.xlu0 %v2310
    %v2312 = vpop.xlane.xlu0 %2311
    %v2313 = vsel %vm78, %v2303, 0.0
    %2314 = vadd.xlane.f32.xlu0 %v2313
    %v2315 = vpop.xlane.xlu0 %2314
    %v2316 = vmul.f32 %v2306, %v2016
    %v2317 = vmul.f32 %v2309, %v2016
    %v2318 = vmul.f32 %v2312, %v2016
    %v2319 = vmul.f32 %v2315, %v2016
    %v2320 = vadd.f32 %v2316, 1e-05
    %v2321 = vadd.f32 %v2317, 1e-05
    %v2322 = vadd.f32 %v2318, 1e-05
    %v2323 = vadd.f32 %v2319, 1e-05
    %v2324 = vrsqrt.pop %v2320
    %v2325 = vrsqrt.pop %v2321
    %v2326 = vrsqrt.pop %v2322
    %v2327 = vrsqrt.pop %v2323
    %v2328 = vmul.f32 %v2296, %v2324
    %v2329 = vmul.f32 %v2297, %v2325
    %v2330 = vmul.f32 %v2298, %v2326
    %v2331 = vmul.f32 %v2299, %v2327
    %v2332 = vmul.f32 %v2328, %v68
    %v2333 = vmul.f32 %v2329, %v68
    %v2334 = vmul.f32 %v2330, %v68
    %v2335 = vmul.f32 %v2331, %v68
    %v2336 = vadd.f32 %v2332, %v73
    %v2337 = vadd.f32 %v2333, %v73
    %v2338 = vadd.f32 %v2334, %v73
    %v2339 = vadd.f32 %v2335, %v73
    %v2341 = vsel %vm78, %v2336, 0
    %v2344 = vsel %vm78, %v2337, 0
    %v2347 = vsel %vm78, %v2338, 0
    %v2350 = vsel %vm78, %v2339, 0
    %2352 = vmatprep.subr.mxu0 0.0
    %2353 = vmatpush1.msra.mxu0 0.0
    %2354 = vmatprep.subr.mxu0 0.0
    %2355 = vmatpush1.msra.mxu0 0.0
    %2356 = vmatprep.subr.mxu0 0.0
    %2357 = vmatpush1.msra.mxu0 0.0
    %2358 = vmatprep.subr.mxu0 0.0
    %2359 = vmatpush1.msra.mxu0 0.0
    %2360 = vmatprep.subr.mxu0 0.0
    %2361 = vmatpush1.msra.mxu0 0.0
    %2362 = vmatprep.subr.mxu0 0.0
    %2363 = vmatpush1.msra.mxu0 0.0
    %2364 = vmatprep.subr.mxu0 0.0
    %2365 = vmatpush1.msra.mxu0 0.0
    %2366 = vmatprep.subr.mxu0 0.0
    %2367 = vmatpush1.msra.mxu0 0.0
    %2368 = vmatprep.subr.mxu0 0.0
    %2369 = vmatpush1.msra.mxu0 0.0
    %2370 = vmatprep.subr.mxu0 0.0
    %2371 = vmatpush1.msra.mxu0 0.0
    %2372 = vmatprep.subr.mxu0 0.0
    %2373 = vmatpush1.msra.mxu0 0.0
    %2374 = vmatprep.subr.mxu0 0.0
    %2375 = vmatpush1.msra.mxu0 0.0
    %2376 = vmatprep.subr.mxu0 0.0
    %2377 = vmatpush1.msra.mxu0 %v1886
    %2378 = vmatprep.subr.mxu0 0.0
    %2379 = vmatpush1.msra.mxu0 %v1885
    %2380 = vmatprep.subr.mxu0 0.0
    %2381 = vmatpush1.msra.mxu0 %v1884
    %2382 = vmatprep.subr.mxu0 0.0
    %2383 = vmatpush1.msra.mxu0 %v1883
    %2384 = vmatprep.subr.mxu0 0.0
    %2385 = vmatpush2.msra.mxu0 0.0
    %2386 = vmatprep.subr.mxu0 0.0
    %2387 = vmatpush2.msra.mxu0 0.0
    %2388 = vmatprep.subr.mxu0 0.0
    %2389 = vmatpush2.msra.mxu0 0.0
    %2390 = vmatprep.subr.mxu0 0.0
    %2391 = vmatpush2.msra.mxu0 0.0
    %2392 = vmatprep.subr.mxu0 0.0
    %2393 = vmatpush2.msra.mxu0 0.0
    %2394 = vmatprep.subr.mxu0 0.0
    %2395 = vmatpush2.msra.mxu0 0.0
    %2396 = vmatprep.subr.mxu0 0.0
    %2397 = vmatpush2.msra.mxu0 0.0
    %2398 = vmatprep.subr.mxu0 0.0
    %2399 = vmatpush2.msra.mxu0 0.0
    %2400 = vmatprep.subr.mxu0 0.0
    %2401 = vmatpush2.msra.mxu0 0.0
    %2402 = vmatprep.subr.mxu0 0.0
    %2403 = vmatpush2.msra.mxu0 0.0
    %2404 = vmatprep.subr.mxu0 0.0
    %2405 = vmatpush2.msra.mxu0 0.0
    %2406 = vmatprep.subr.mxu0 0.0
    %2407 = vmatpush2.msra.mxu0 0.0
    %2408 = vmatprep.subr.mxu0 0.0
    %2409 = vmatpush2.msra.mxu0 0.0
    %2410 = vmatprep.subr.mxu0 0.0
    %2411 = vmatpush2.msra.mxu0 0.0
    %2412 = vmatprep.subr.mxu0 0.0
    %2413 = vmatpush2.msra.mxu0 0.0
    %2414 = vmatprep.subr.mxu0 0.0
    %2415 = vmatpush2.msra.mxu0 0.0
    %2416 = vmatprep.mubr.f32.mxu0 0.0
    %2417 = vmatmul.mubr.f32.gmra.mxu0 %v2341
    %v2418 = vpop.f32.mrf.mxu0
    %v2419 = vadd.f32 %v38, %v2418
    %v2420 = vpop.f32.mrf.mxu0
    %2421 = vmatprep.mubr.f32.mxu0 0.0
    %2422 = vmatmul.mubr.f32.gmra.mxu0 %v2344
    %v2423 = vpop.f32.mrf.mxu0
    %v2424 = vadd.f32 %v38, %v2423
    %v2425 = vpop.f32.mrf.mxu0
    %2426 = vmatprep.mubr.f32.mxu0 0.0
    %2427 = vmatmul.mubr.f32.gmra.mxu0 %v2347
    %v2428 = vpop.f32.mrf.mxu0
    %v2429 = vadd.f32 %v38, %v2428
    %v2430 = vpop.f32.mrf.mxu0
    %2431 = vmatprep.mubr.f32.mxu0 0.0
    %2432 = vmatmul.mubr.f32.gmra.mxu0 %v2350
    %v2433 = vpop.f32.mrf.mxu0
    %v2434 = vadd.f32 %v38, %v2433
    %v2435 = vpop.f32.mrf.mxu0
    %2436 = vdwg.mxu0
    %2441 = vrot.lane.b32.xlu0 %v2419, 120
    %v2442 = vpop.permute.xlu0 %2441
    %2443 = vrot.lane.b32.xlu0 %v2424, 120
    %v2444 = vpop.permute.xlu0 %2443
    %2445 = vrot.lane.b32.xlu0 %v2429, 120
    %v2446 = vpop.permute.xlu0 %2445
    %2447 = vrot.lane.b32.xlu0 %v2434, 120
    %v2448 = vpop.permute.xlu0 %2447
    %2449 = vrot.lane.b32.xlu0 %v2419, 112
    %v2450 = vpop.permute.xlu0 %2449
    %2451 = vrot.lane.b32.xlu0 %v2424, 112
    %v2452 = vpop.permute.xlu0 %2451
    %2453 = vrot.lane.b32.xlu0 %v2429, 112
    %v2454 = vpop.permute.xlu0 %2453
    %2455 = vrot.lane.b32.xlu0 %v2434, 112
    %v2456 = vpop.permute.xlu0 %2455
    %2457 = vrot.lane.b32.xlu0 %v2419, 104
    %v2458 = vpop.permute.xlu0 %2457
    %2459 = vrot.lane.b32.xlu0 %v2424, 104
    %v2460 = vpop.permute.xlu0 %2459
    %2461 = vrot.lane.b32.xlu0 %v2429, 104
    %v2462 = vpop.permute.xlu0 %2461
    %2463 = vrot.lane.b32.xlu0 %v2434, 104
    %v2464 = vpop.permute.xlu0 %2463
    %2465 = vrot.lane.b32.xlu0 %v2419, 96
    %v2466 = vpop.permute.xlu0 %2465
    %2467 = vrot.lane.b32.xlu0 %v2424, 96
    %v2468 = vpop.permute.xlu0 %2467
    %v2469 = vsel %vm208, %v2419, 0
    %v2471 = vsel %vm208, %v2424, 0
    %v2473 = vsel %vm208, %v2466, 0
    %v2475 = vsel %vm208, %v2468, 0
    %2477 = vmatprep.subr.mxu0 0.0
    %2478 = vmatpush1.xpose.msra.mxu0 0.0
    %2479 = vmatprep.subr.mxu0 0.0
    %2480 = vmatpush1.xpose.msra.mxu0 0.0
    %2481 = vmatprep.subr.mxu0 0.0
    %2482 = vmatpush1.xpose.msra.mxu0 0.0
    %2483 = vmatprep.subr.mxu0 0.0
    %2484 = vmatpush1.xpose.msra.mxu0 0.0
    %2485 = vmatprep.subr.mxu0 0.0
    %2486 = vmatpush1.xpose.msra.mxu0 0.0
    %2487 = vmatprep.subr.mxu0 0.0
    %2488 = vmatpush1.xpose.msra.mxu0 0.0
    %2489 = vmatprep.subr.mxu0 0.0
    %2490 = vmatpush1.xpose.msra.mxu0 0.0
    %2491 = vmatprep.subr.mxu0 0.0
    %2492 = vmatpush1.xpose.msra.mxu0 0.0
    %2493 = vmatprep.subr.mxu0 0.0
    %2494 = vmatpush1.xpose.msra.mxu0 0.0
    %2495 = vmatprep.subr.mxu0 0.0
    %2496 = vmatpush1.xpose.msra.mxu0 0.0
    %2497 = vmatprep.subr.mxu0 0.0
    %2498 = vmatpush1.xpose.msra.mxu0 0.0
    %2499 = vmatprep.subr.mxu0 0.0
    %2500 = vmatpush1.xpose.msra.mxu0 0.0
    %2501 = vmatprep.subr.mxu0 0.0
    %2502 = vmatpush1.xpose.msra.mxu0 0.0
    %2503 = vmatprep.subr.mxu0 0.0
    %2504 = vmatpush1.xpose.msra.mxu0 0.0
    %2505 = vmatprep.subr.mxu0 0.0
    %2506 = vmatpush1.xpose.msra.mxu0 %v2475
    %2507 = vmatprep.subr.mxu0 0.0
    %2508 = vmatpush1.xpose.msra.mxu0 %v2473
    %2509 = vmatprep.subr.mxu0 0.0
    %2510 = vmatpush2.xpose.msra.mxu0 0.0
    %2511 = vmatprep.subr.mxu0 0.0
    %2512 = vmatpush2.xpose.msra.mxu0 0.0
    %2513 = vmatprep.subr.mxu0 0.0
    %2514 = vmatpush2.xpose.msra.mxu0 0.0
    %2515 = vmatprep.subr.mxu0 0.0
    %2516 = vmatpush2.xpose.msra.mxu0 0.0
    %2517 = vmatprep.subr.mxu0 0.0
    %2518 = vmatpush2.xpose.msra.mxu0 0.0
    %2519 = vmatprep.subr.mxu0 0.0
    %2520 = vmatpush2.xpose.msra.mxu0 0.0
    %2521 = vmatprep.subr.mxu0 0.0
    %2522 = vmatpush2.xpose.msra.mxu0 0.0
    %2523 = vmatprep.subr.mxu0 0.0
    %2524 = vmatpush2.xpose.msra.mxu0 0.0
    %2525 = vmatprep.subr.mxu0 0.0
    %2526 = vmatpush2.xpose.msra.mxu0 0.0
    %2527 = vmatprep.subr.mxu0 0.0
    %2528 = vmatpush2.xpose.msra.mxu0 0.0
    %2529 = vmatprep.subr.mxu0 0.0
    %2530 = vmatpush2.xpose.msra.mxu0 0.0
    %2531 = vmatprep.subr.mxu0 0.0
    %2532 = vmatpush2.xpose.msra.mxu0 0.0
    %2533 = vmatprep.subr.mxu0 0.0
    %2534 = vmatpush2.xpose.msra.mxu0 0.0
    %2535 = vmatprep.subr.mxu0 0.0
    %2536 = vmatpush2.xpose.msra.mxu0 0.0
    %2537 = vmatprep.subr.mxu0 0.0
    %2538 = vmatpush2.xpose.msra.mxu0 0.0
    %2539 = vmatprep.subr.mxu0 0.0
    %2540 = vmatpush2.xpose.msra.mxu0 0.0
    %2541 = vmatprep.mubr.f32.mxu0 0.0
    %2542 = vmatmul.mubr.f32.gmra.mxu0 %v2469
    %v2543 = vpop.f32.mrf.mxu0
    %v2544 = vadd.f32 0.0, %v2543
    %v2545 = vpop.f32.mrf.mxu0
    %2546 = vmatprep.mubr.f32.mxu0 0.0
    %2547 = vmatmul.mubr.f32.gmra.mxu0 %v2471
    %v2548 = vpop.f32.mrf.mxu0
    %v2549 = vadd.f32 0.0, %v2548
    %v2550 = vpop.f32.mrf.mxu0
    %2551 = vdwg.mxu0
    %2552 = vrot.lane.b32.xlu0 %v2429, 96
    %v2553 = vpop.permute.xlu0 %2552
    %2554 = vrot.lane.b32.xlu0 %v2434, 96
    %v2555 = vpop.permute.xlu0 %2554
    %v2556 = vsel %vm208, %v2429, 0
    %v2558 = vsel %vm208, %v2434, 0
    %v2560 = vsel %vm208, %v2553, 0
    %v2562 = vsel %vm208, %v2555, 0
    %2564 = vmatprep.subr.mxu0 0.0
    %2565 = vmatpush1.xpose.msra.mxu0 0.0
    %2566 = vmatprep.subr.mxu0 0.0
    %2567 = vmatpush1.xpose.msra.mxu0 0.0
    %2568 = vmatprep.subr.mxu0 0.0
    %2569 = vmatpush1.xpose.msra.mxu0 0.0
    %2570 = vmatprep.subr.mxu0 0.0
    %2571 = vmatpush1.xpose.msra.mxu0 0.0
    %2572 = vmatprep.subr.mxu0 0.0
    %2573 = vmatpush1.xpose.msra.mxu0 0.0
    %2574 = vmatprep.subr.mxu0 0.0
    %2575 = vmatpush1.xpose.msra.mxu0 0.0
    %2576 = vmatprep.subr.mxu0 0.0
    %2577 = vmatpush1.xpose.msra.mxu0 0.0
    %2578 = vmatprep.subr.mxu0 0.0
    %2579 = vmatpush1.xpose.msra.mxu0 0.0
    %2580 = vmatprep.subr.mxu0 0.0
    %2581 = vmatpush1.xpose.msra.mxu0 0.0
    %2582 = vmatprep.subr.mxu0 0.0
    %2583 = vmatpush1.xpose.msra.mxu0 0.0
    %2584 = vmatprep.subr.mxu0 0.0
    %2585 = vmatpush1.xpose.msra.mxu0 0.0
    %2586 = vmatprep.subr.mxu0 0.0
    %2587 = vmatpush1.xpose.msra.mxu0 0.0
    %2588 = vmatprep.subr.mxu0 0.0
    %2589 = vmatpush1.xpose.msra.mxu0 0.0
    %2590 = vmatprep.subr.mxu0 0.0
    %2591 = vmatpush1.xpose.msra.mxu0 0.0
    %2592 = vmatprep.subr.mxu0 0.0
    %2593 = vmatpush1.xpose.msra.mxu0 %v2562
    %2594 = vmatprep.subr.mxu0 0.0
    %2595 = vmatpush1.xpose.msra.mxu0 %v2560
    %2596 = vmatprep.subr.mxu0 0.0
    %2597 = vmatpush2.xpose.msra.mxu0 0.0
    %2598 = vmatprep.subr.mxu0 0.0
    %2599 = vmatpush2.xpose.msra.mxu0 0.0
    %2600 = vmatprep.subr.mxu0 0.0
    %2601 = vmatpush2.xpose.msra.mxu0 0.0
    %2602 = vmatprep.subr.mxu0 0.0
    %2603 = vmatpush2.xpose.msra.mxu0 0.0
    %2604 = vmatprep.subr.mxu0 0.0
    %2605 = vmatpush2.xpose.msra.mxu0 0.0
    %2606 = vmatprep.subr.mxu0 0.0
    %2607 = vmatpush2.xpose.msra.mxu0 0.0
    %2608 = vmatprep.subr.mxu0 0.0
    %2609 = vmatpush2.xpose.msra.mxu0 0.0
    %2610 = vmatprep.subr.mxu0 0.0
    %2611 = vmatpush2.xpose.msra.mxu0 0.0
    %2612 = vmatprep.subr.mxu0 0.0
    %2613 = vmatpush2.xpose.msra.mxu0 0.0
    %2614 = vmatprep.subr.mxu0 0.0
    %2615 = vmatpush2.xpose.msra.mxu0 0.0
    %2616 = vmatprep.subr.mxu0 0.0
    %2617 = vmatpush2.xpose.msra.mxu0 0.0
    %2618 = vmatprep.subr.mxu0 0.0
    %2619 = vmatpush2.xpose.msra.mxu0 0.0
    %2620 = vmatprep.subr.mxu0 0.0
    %2621 = vmatpush2.xpose.msra.mxu0 0.0
    %2622 = vmatprep.subr.mxu0 0.0
    %2623 = vmatpush2.xpose.msra.mxu0 0.0
    %2624 = vmatprep.subr.mxu0 0.0
    %2625 = vmatpush2.xpose.msra.mxu0 0.0
    %2626 = vmatprep.subr.mxu0 0.0
    %2627 = vmatpush2.xpose.msra.mxu0 0.0
    %2628 = vmatprep.mubr.f32.mxu0 0.0
    %2629 = vmatmul.mubr.f32.gmra.mxu0 %v2556
    %v2630 = vpop.f32.mrf.mxu0
    %v2631 = vadd.f32 0.0, %v2630
    %v2632 = vpop.f32.mrf.mxu0
    %2633 = vmatprep.mubr.f32.mxu0 0.0
    %2634 = vmatmul.mubr.f32.gmra.mxu0 %v2558
    %v2635 = vpop.f32.mrf.mxu0
    %v2636 = vadd.f32 0.0, %v2635
    %v2637 = vpop.f32.mrf.mxu0
    %2638 = vdwg.mxu0
    %2639 = vrot.lane.b32.xlu0 %v2442, 96
    %v2640 = vpop.permute.xlu0 %2639
    %2641 = vrot.lane.b32.xlu0 %v2444, 96
    %v2642 = vpop.permute.xlu0 %2641
    %v2643 = vsel %vm208, %v2442, 0
    %v2645 = vsel %vm208, %v2444, 0
    %v2647 = vsel %vm208, %v2640, 0
    %v2649 = vsel %vm208, %v2642, 0
    %2651 = vmatprep.subr.mxu0 0.0
    %2652 = vmatpush1.xpose.msra.mxu0 0.0
    %2653 = vmatprep.subr.mxu0 0.0
    %2654 = vmatpush1.xpose.msra.mxu0 0.0
    %2655 = vmatprep.subr.mxu0 0.0
    %2656 = vmatpush1.xpose.msra.mxu0 0.0
    %2657 = vmatprep.subr.mxu0 0.0
    %2658 = vmatpush1.xpose.msra.mxu0 0.0
    %2659 = vmatprep.subr.mxu0 0.0
    %2660 = vmatpush1.xpose.msra.mxu0 0.0
    %2661 = vmatprep.subr.mxu0 0.0
    %2662 = vmatpush1.xpose.msra.mxu0 0.0
    %2663 = vmatprep.subr.mxu0 0.0
    %2664 = vmatpush1.xpose.msra.mxu0 0.0
    %2665 = vmatprep.subr.mxu0 0.0
    %2666 = vmatpush1.xpose.msra.mxu0 0.0
    %2667 = vmatprep.subr.mxu0 0.0
    %2668 = vmatpush1.xpose.msra.mxu0 0.0
    %2669 = vmatprep.subr.mxu0 0.0
    %2670 = vmatpush1.xpose.msra.mxu0 0.0
    %2671 = vmatprep.subr.mxu0 0.0
    %2672 = vmatpush1.xpose.msra.mxu0 0.0
    %2673 = vmatprep.subr.mxu0 0.0
    %2674 = vmatpush1.xpose.msra.mxu0 0.0
    %2675 = vmatprep.subr.mxu0 0.0
    %2676 = vmatpush1.xpose.msra.mxu0 0.0
    %2677 = vmatprep.subr.mxu0 0.0
    %2678 = vmatpush1.xpose.msra.mxu0 0.0
    %2679 = vmatprep.subr.mxu0 0.0
    %2680 = vmatpush1.xpose.msra.mxu0 %v2649
    %2681 = vmatprep.subr.mxu0 0.0
    %2682 = vmatpush1.xpose.msra.mxu0 %v2647
    %2683 = vmatprep.subr.mxu0 0.0
    %2684 = vmatpush2.xpose.msra.mxu0 0.0
    %2685 = vmatprep.subr.mxu0 0.0
    %2686 = vmatpush2.xpose.msra.mxu0 0.0
    %2687 = vmatprep.subr.mxu0 0.0
    %2688 = vmatpush2.xpose.msra.mxu0 0.0
    %2689 = vmatprep.subr.mxu0 0.0
    %2690 = vmatpush2.xpose.msra.mxu0 0.0
    %2691 = vmatprep.subr.mxu0 0.0
    %2692 = vmatpush2.xpose.msra.mxu0 0.0
    %2693 = vmatprep.subr.mxu0 0.0
    %2694 = vmatpush2.xpose.msra.mxu0 0.0
    %2695 = vmatprep.subr.mxu0 0.0
    %2696 = vmatpush2.xpose.msra.mxu0 0.0
    %2697 = vmatprep.subr.mxu0 0.0
    %2698 = vmatpush2.xpose.msra.mxu0 0.0
    %2699 = vmatprep.subr.mxu0 0.0
    %2700 = vmatpush2.xpose.msra.mxu0 0.0
    %2701 = vmatprep.subr.mxu0 0.0
    %2702 = vmatpush2.xpose.msra.mxu0 0.0
    %2703 = vmatprep.subr.mxu0 0.0
    %2704 = vmatpush2.xpose.msra.mxu0 0.0
    %2705 = vmatprep.subr.mxu0 0.0
    %2706 = vmatpush2.xpose.msra.mxu0 0.0
    %2707 = vmatprep.subr.mxu0 0.0
    %2708 = vmatpush2.xpose.msra.mxu0 0.0
    %2709 = vmatprep.subr.mxu0 0.0
    %2710 = vmatpush2.xpose.msra.mxu0 0.0
    %2711 = vmatprep.subr.mxu0 0.0
    %2712 = vmatpush2.xpose.msra.mxu0 0.0
    %2713 = vmatprep.subr.mxu0 0.0
    %2714 = vmatpush2.xpose.msra.mxu0 0.0
    %2715 = vmatprep.mubr.f32.mxu0 0.0
    %2716 = vmatmul.mubr.f32.gmra.mxu0 %v2643
    %v2717 = vpop.f32.mrf.mxu0
    %v2718 = vadd.f32 0.0, %v2717
    %v2719 = vpop.f32.mrf.mxu0
    %2720 = vmatprep.mubr.f32.mxu0 0.0
    %2721 = vmatmul.mubr.f32.gmra.mxu0 %v2645
    %v2722 = vpop.f32.mrf.mxu0
    %v2723 = vadd.f32 0.0, %v2722
    %v2724 = vpop.f32.mrf.mxu0
    %2725 = vdwg.mxu0
    %2726 = vrot.lane.b32.xlu0 %v2446, 96
    %v2727 = vpop.permute.xlu0 %2726
    %2728 = vrot.lane.b32.xlu0 %v2448, 96
    %v2729 = vpop.permute.xlu0 %2728
    %v2730 = vsel %vm208, %v2446, 0
    %v2732 = vsel %vm208, %v2448, 0
    %v2734 = vsel %vm208, %v2727, 0
    %v2736 = vsel %vm208, %v2729, 0
    %2738 = vmatprep.subr.mxu0 0.0
    %2739 = vmatpush1.xpose.msra.mxu0 0.0
    %2740 = vmatprep.subr.mxu0 0.0
    %2741 = vmatpush1.xpose.msra.mxu0 0.0
    %2742 = vmatprep.subr.mxu0 0.0
    %2743 = vmatpush1.xpose.msra.mxu0 0.0
    %2744 = vmatprep.subr.mxu0 0.0
    %2745 = vmatpush1.xpose.msra.mxu0 0.0
    %2746 = vmatprep.subr.mxu0 0.0
    %2747 = vmatpush1.xpose.msra.mxu0 0.0
    %2748 = vmatprep.subr.mxu0 0.0
    %2749 = vmatpush1.xpose.msra.mxu0 0.0
    %2750 = vmatprep.subr.mxu0 0.0
    %2751 = vmatpush1.xpose.msra.mxu0 0.0
    %2752 = vmatprep.subr.mxu0 0.0
    %2753 = vmatpush1.xpose.msra.mxu0 0.0
    %2754 = vmatprep.subr.mxu0 0.0
    %2755 = vmatpush1.xpose.msra.mxu0 0.0
    %2756 = vmatprep.subr.mxu0 0.0
    %2757 = vmatpush1.xpose.msra.mxu0 0.0
    %2758 = vmatprep.subr.mxu0 0.0
    %2759 = vmatpush1.xpose.msra.mxu0 0.0
    %2760 = vmatprep.subr.mxu0 0.0
    %2761 = vmatpush1.xpose.msra.mxu0 0.0
    %2762 = vmatprep.subr.mxu0 0.0
    %2763 = vmatpush1.xpose.msra.mxu0 0.0
    %2764 = vmatprep.subr.mxu0 0.0
    %2765 = vmatpush1.xpose.msra.mxu0 0.0
    %2766 = vmatprep.subr.mxu0 0.0
    %2767 = vmatpush1.xpose.msra.mxu0 %v2736
    %2768 = vmatprep.subr.mxu0 0.0
    %2769 = vmatpush1.xpose.msra.mxu0 %v2734
    %2770 = vmatprep.subr.mxu0 0.0
    %2771 = vmatpush2.xpose.msra.mxu0 0.0
    %2772 = vmatprep.subr.mxu0 0.0
    %2773 = vmatpush2.xpose.msra.mxu0 0.0
    %2774 = vmatprep.subr.mxu0 0.0
    %2775 = vmatpush2.xpose.msra.mxu0 0.0
    %2776 = vmatprep.subr.mxu0 0.0
    %2777 = vmatpush2.xpose.msra.mxu0 0.0
    %2778 = vmatprep.subr.mxu0 0.0
    %2779 = vmatpush2.xpose.msra.mxu0 0.0
    %2780 = vmatprep.subr.mxu0 0.0
    %2781 = vmatpush2.xpose.msra.mxu0 0.0
    %2782 = vmatprep.subr.mxu0 0.0
    %2783 = vmatpush2.xpose.msra.mxu0 0.0
    %2784 = vmatprep.subr.mxu0 0.0
    %2785 = vmatpush2.xpose.msra.mxu0 0.0
    %2786 = vmatprep.subr.mxu0 0.0
    %2787 = vmatpush2.xpose.msra.mxu0 0.0
    %2788 = vmatprep.subr.mxu0 0.0
    %2789 = vmatpush2.xpose.msra.mxu0 0.0
    %2790 = vmatprep.subr.mxu0 0.0
    %2791 = vmatpush2.xpose.msra.mxu0 0.0
    %2792 = vmatprep.subr.mxu0 0.0
    %2793 = vmatpush2.xpose.msra.mxu0 0.0
    %2794 = vmatprep.subr.mxu0 0.0
    %2795 = vmatpush2.xpose.msra.mxu0 0.0
    %2796 = vmatprep.subr.mxu0 0.0
    %2797 = vmatpush2.xpose.msra.mxu0 0.0
    %2798 = vmatprep.subr.mxu0 0.0
    %2799 = vmatpush2.xpose.msra.mxu0 0.0
    %2800 = vmatprep.subr.mxu0 0.0
    %2801 = vmatpush2.xpose.msra.mxu0 0.0
    %2802 = vmatprep.mubr.f32.mxu0 0.0
    %2803 = vmatmul.mubr.f32.gmra.mxu0 %v2730
    %v2804 = vpop.f32.mrf.mxu0
    %v2805 = vadd.f32 0.0, %v2804
    %v2806 = vpop.f32.mrf.mxu0
    %2807 = vmatprep.mubr.f32.mxu0 0.0
    %2808 = vmatmul.mubr.f32.gmra.mxu0 %v2732
    %v2809 = vpop.f32.mrf.mxu0
    %v2810 = vadd.f32 0.0, %v2809
    %v2811 = vpop.f32.mrf.mxu0
    %2812 = vdwg.mxu0
    %2813 = vrot.lane.b32.xlu0 %v2450, 96
    %v2814 = vpop.permute.xlu0 %2813
    %2815 = vrot.lane.b32.xlu0 %v2452, 96
    %v2816 = vpop.permute.xlu0 %2815
    %v2817 = vsel %vm208, %v2450, 0
    %v2819 = vsel %vm208, %v2452, 0
    %v2821 = vsel %vm208, %v2814, 0
    %v2823 = vsel %vm208, %v2816, 0
    %2825 = vmatprep.subr.mxu0 0.0
    %2826 = vmatpush1.xpose.msra.mxu0 0.0
    %2827 = vmatprep.subr.mxu0 0.0
    %2828 = vmatpush1.xpose.msra.mxu0 0.0
    %2829 = vmatprep.subr.mxu0 0.0
    %2830 = vmatpush1.xpose.msra.mxu0 0.0
    %2831 = vmatprep.subr.mxu0 0.0
    %2832 = vmatpush1.xpose.msra.mxu0 0.0
    %2833 = vmatprep.subr.mxu0 0.0
    %2834 = vmatpush1.xpose.msra.mxu0 0.0
    %2835 = vmatprep.subr.mxu0 0.0
    %2836 = vmatpush1.xpose.msra.mxu0 0.0
    %2837 = vmatprep.subr.mxu0 0.0
    %2838 = vmatpush1.xpose.msra.mxu0 0.0
    %2839 = vmatprep.subr.mxu0 0.0
    %2840 = vmatpush1.xpose.msra.mxu0 0.0
    %2841 = vmatprep.subr.mxu0 0.0
    %2842 = vmatpush1.xpose.msra.mxu0 0.0
    %2843 = vmatprep.subr.mxu0 0.0
    %2844 = vmatpush1.xpose.msra.mxu0 0.0
    %2845 = vmatprep.subr.mxu0 0.0
    %2846 = vmatpush1.xpose.msra.mxu0 0.0
    %2847 = vmatprep.subr.mxu0 0.0
    %2848 = vmatpush1.xpose.msra.mxu0 0.0
    %2849 = vmatprep.subr.mxu0 0.0
    %2850 = vmatpush1.xpose.msra.mxu0 0.0
    %2851 = vmatprep.subr.mxu0 0.0
    %2852 = vmatpush1.xpose.msra.mxu0 0.0
    %2853 = vmatprep.subr.mxu0 0.0
    %2854 = vmatpush1.xpose.msra.mxu0 %v2823
    %2855 = vmatprep.subr.mxu0 0.0
    %2856 = vmatpush1.xpose.msra.mxu0 %v2821
    %2857 = vmatprep.subr.mxu0 0.0
    %2858 = vmatpush2.xpose.msra.mxu0 0.0
    %2859 = vmatprep.subr.mxu0 0.0
    %2860 = vmatpush2.xpose.msra.mxu0 0.0
    %2861 = vmatprep.subr.mxu0 0.0
    %2862 = vmatpush2.xpose.msra.mxu0 0.0
    %2863 = vmatprep.subr.mxu0 0.0
    %2864 = vmatpush2.xpose.msra.mxu0 0.0
    %2865 = vmatprep.subr.mxu0 0.0
    %2866 = vmatpush2.xpose.msra.mxu0 0.0
    %2867 = vmatprep.subr.mxu0 0.0
    %2868 = vmatpush2.xpose.msra.mxu0 0.0
    %2869 = vmatprep.subr.mxu0 0.0
    %2870 = vmatpush2.xpose.msra.mxu0 0.0
    %2871 = vmatprep.subr.mxu0 0.0
    %2872 = vmatpush2.xpose.msra.mxu0 0.0
    %2873 = vmatprep.subr.mxu0 0.0
    %2874 = vmatpush2.xpose.msra.mxu0 0.0
    %2875 = vmatprep.subr.mxu0 0.0
    %2876 = vmatpush2.xpose.msra.mxu0 0.0
    %2877 = vmatprep.subr.mxu0 0.0
    %2878 = vmatpush2.xpose.msra.mxu0 0.0
    %2879 = vmatprep.subr.mxu0 0.0
    %2880 = vmatpush2.xpose.msra.mxu0 0.0
    %2881 = vmatprep.subr.mxu0 0.0
    %2882 = vmatpush2.xpose.msra.mxu0 0.0
    %2883 = vmatprep.subr.mxu0 0.0
    %2884 = vmatpush2.xpose.msra.mxu0 0.0
    %2885 = vmatprep.subr.mxu0 0.0
    %2886 = vmatpush2.xpose.msra.mxu0 0.0
    %2887 = vmatprep.subr.mxu0 0.0
    %2888 = vmatpush2.xpose.msra.mxu0 0.0
    %2889 = vmatprep.mubr.f32.mxu0 0.0
    %2890 = vmatmul.mubr.f32.gmra.mxu0 %v2817
    %v2891 = vpop.f32.mrf.mxu0
    %v2892 = vadd.f32 0.0, %v2891
    %v2893 = vpop.f32.mrf.mxu0
    %2894 = vmatprep.mubr.f32.mxu0 0.0
    %2895 = vmatmul.mubr.f32.gmra.mxu0 %v2819
    %v2896 = vpop.f32.mrf.mxu0
    %v2897 = vadd.f32 0.0, %v2896
    %v2898 = vpop.f32.mrf.mxu0
    %2899 = vdwg.mxu0
    %2900 = vrot.lane.b32.xlu0 %v2454, 96
    %v2901 = vpop.permute.xlu0 %2900
    %2902 = vrot.lane.b32.xlu0 %v2456, 96
    %v2903 = vpop.permute.xlu0 %2902
    %v2904 = vsel %vm208, %v2454, 0
    %v2906 = vsel %vm208, %v2456, 0
    %v2908 = vsel %vm208, %v2901, 0
    %v2910 = vsel %vm208, %v2903, 0
    %2912 = vmatprep.subr.mxu0 0.0
    %2913 = vmatpush1.xpose.msra.mxu0 0.0
    %2914 = vmatprep.subr.mxu0 0.0
    %2915 = vmatpush1.xpose.msra.mxu0 0.0
    %2916 = vmatprep.subr.mxu0 0.0
    %2917 = vmatpush1.xpose.msra.mxu0 0.0
    %2918 = vmatprep.subr.mxu0 0.0
    %2919 = vmatpush1.xpose.msra.mxu0 0.0
    %2920 = vmatprep.subr.mxu0 0.0
    %2921 = vmatpush1.xpose.msra.mxu0 0.0
    %2922 = vmatprep.subr.mxu0 0.0
    %2923 = vmatpush1.xpose.msra.mxu0 0.0
    %2924 = vmatprep.subr.mxu0 0.0
    %2925 = vmatpush1.xpose.msra.mxu0 0.0
    %2926 = vmatprep.subr.mxu0 0.0
    %2927 = vmatpush1.xpose.msra.mxu0 0.0
    %2928 = vmatprep.subr.mxu0 0.0
    %2929 = vmatpush1.xpose.msra.mxu0 0.0
    %2930 = vmatprep.subr.mxu0 0.0
    %2931 = vmatpush1.xpose.msra.mxu0 0.0
    %2932 = vmatprep.subr.mxu0 0.0
    %2933 = vmatpush1.xpose.msra.mxu0 0.0
    %2934 = vmatprep.subr.mxu0 0.0
    %2935 = vmatpush1.xpose.msra.mxu0 0.0
    %2936 = vmatprep.subr.mxu0 0.0
    %2937 = vmatpush1.xpose.msra.mxu0 0.0
    %2938 = vmatprep.subr.mxu0 0.0
    %2939 = vmatpush1.xpose.msra.mxu0 0.0
    %2940 = vmatprep.subr.mxu0 0.0
    %2941 = vmatpush1.xpose.msra.mxu0 %v2910
    %2942 = vmatprep.subr.mxu0 0.0
    %2943 = vmatpush1.xpose.msra.mxu0 %v2908
    %2944 = vmatprep.subr.mxu0 0.0
    %2945 = vmatpush2.xpose.msra.mxu0 0.0
    %2946 = vmatprep.subr.mxu0 0.0
    %2947 = vmatpush2.xpose.msra.mxu0 0.0
    %2948 = vmatprep.subr.mxu0 0.0
    %2949 = vmatpush2.xpose.msra.mxu0 0.0
    %2950 = vmatprep.subr.mxu0 0.0
    %2951 = vmatpush2.xpose.msra.mxu0 0.0
    %2952 = vmatprep.subr.mxu0 0.0
    %2953 = vmatpush2.xpose.msra.mxu0 0.0
    %2954 = vmatprep.subr.mxu0 0.0
    %2955 = vmatpush2.xpose.msra.mxu0 0.0
    %2956 = vmatprep.subr.mxu0 0.0
    %2957 = vmatpush2.xpose.msra.mxu0 0.0
    %2958 = vmatprep.subr.mxu0 0.0
    %2959 = vmatpush2.xpose.msra.mxu0 0.0
    %2960 = vmatprep.subr.mxu0 0.0
    %2961 = vmatpush2.xpose.msra.mxu0 0.0
    %2962 = vmatprep.subr.mxu0 0.0
    %2963 = vmatpush2.xpose.msra.mxu0 0.0
    %2964 = vmatprep.subr.mxu0 0.0
    %2965 = vmatpush2.xpose.msra.mxu0 0.0
    %2966 = vmatprep.subr.mxu0 0.0
    %2967 = vmatpush2.xpose.msra.mxu0 0.0
    %2968 = vmatprep.subr.mxu0 0.0
    %2969 = vmatpush2.xpose.msra.mxu0 0.0
    %2970 = vmatprep.subr.mxu0 0.0
    %2971 = vmatpush2.xpose.msra.mxu0 0.0
    %2972 = vmatprep.subr.mxu0 0.0
    %2973 = vmatpush2.xpose.msra.mxu0 0.0
    %2974 = vmatprep.subr.mxu0 0.0
    %2975 = vmatpush2.xpose.msra.mxu0 0.0
    %2976 = vmatprep.mubr.f32.mxu0 0.0
    %2977 = vmatmul.mubr.f32.gmra.mxu0 %v2904
    %v2978 = vpop.f32.mrf.mxu0
    %v2979 = vadd.f32 0.0, %v2978
    %v2980 = vpop.f32.mrf.mxu0
    %2981 = vmatprep.mubr.f32.mxu0 0.0
    %2982 = vmatmul.mubr.f32.gmra.mxu0 %v2906
    %v2983 = vpop.f32.mrf.mxu0
    %v2984 = vadd.f32 0.0, %v2983
    %v2985 = vpop.f32.mrf.mxu0
    %2986 = vdwg.mxu0
    %2987 = vrot.lane.b32.xlu0 %v2458, 96
    %v2988 = vpop.permute.xlu0 %2987
    %2989 = vrot.lane.b32.xlu0 %v2460, 96
    %v2990 = vpop.permute.xlu0 %2989
    %v2991 = vsel %vm208, %v2458, 0
    %v2993 = vsel %vm208, %v2460, 0
    %v2995 = vsel %vm208, %v2988, 0
    %v2997 = vsel %vm208, %v2990, 0
    %2999 = vmatprep.subr.mxu0 0.0
    %3000 = vmatpush1.xpose.msra.mxu0 0.0
    %3001 = vmatprep.subr.mxu0 0.0
    %3002 = vmatpush1.xpose.msra.mxu0 0.0
    %3003 = vmatprep.subr.mxu0 0.0
    %3004 = vmatpush1.xpose.msra.mxu0 0.0
    %3005 = vmatprep.subr.mxu0 0.0
    %3006 = vmatpush1.xpose.msra.mxu0 0.0
    %3007 = vmatprep.subr.mxu0 0.0
    %3008 = vmatpush1.xpose.msra.mxu0 0.0
    %3009 = vmatprep.subr.mxu0 0.0
    %3010 = vmatpush1.xpose.msra.mxu0 0.0
    %3011 = vmatprep.subr.mxu0 0.0
    %3012 = vmatpush1.xpose.msra.mxu0 0.0
    %3013 = vmatprep.subr.mxu0 0.0
    %3014 = vmatpush1.xpose.msra.mxu0 0.0
    %3015 = vmatprep.subr.mxu0 0.0
    %3016 = vmatpush1.xpose.msra.mxu0 0.0
    %3017 = vmatprep.subr.mxu0 0.0
    %3018 = vmatpush1.xpose.msra.mxu0 0.0
    %3019 = vmatprep.subr.mxu0 0.0
    %3020 = vmatpush1.xpose.msra.mxu0 0.0
    %3021 = vmatprep.subr.mxu0 0.0
    %3022 = vmatpush1.xpose.msra.mxu0 0.0
    %3023 = vmatprep.subr.mxu0 0.0
    %3024 = vmatpush1.xpose.msra.mxu0 0.0
    %3025 = vmatprep.subr.mxu0 0.0
    %3026 = vmatpush1.xpose.msra.mxu0 0.0
    %3027 = vmatprep.subr.mxu0 0.0
    %3028 = vmatpush1.xpose.msra.mxu0 %v2997
    %3029 = vmatprep.subr.mxu0 0.0
    %3030 = vmatpush1.xpose.msra.mxu0 %v2995
    %3031 = vmatprep.subr.mxu0 0.0
    %3032 = vmatpush2.xpose.msra.mxu0 0.0
    %3033 = vmatprep.subr.mxu0 0.0
    %3034 = vmatpush2.xpose.msra.mxu0 0.0
    %3035 = vmatprep.subr.mxu0 0.0
    %3036 = vmatpush2.xpose.msra.mxu0 0.0
    %3037 = vmatprep.subr.mxu0 0.0
    %3038 = vmatpush2.xpose.msra.mxu0 0.0
    %3039 = vmatprep.subr.mxu0 0.0
    %3040 = vmatpush2.xpose.msra.mxu0 0.0
    %3041 = vmatprep.subr.mxu0 0.0
    %3042 = vmatpush2.xpose.msra.mxu0 0.0
    %3043 = vmatprep.subr.mxu0 0.0
    %3044 = vmatpush2.xpose.msra.mxu0 0.0
    %3045 = vmatprep.subr.mxu0 0.0
    %3046 = vmatpush2.xpose.msra.mxu0 0.0
    %3047 = vmatprep.subr.mxu0 0.0
    %3048 = vmatpush2.xpose.msra.mxu0 0.0
    %3049 = vmatprep.subr.mxu0 0.0
    %3050 = vmatpush2.xpose.msra.mxu0 0.0
    %3051 = vmatprep.subr.mxu0 0.0
    %3052 = vmatpush2.xpose.msra.mxu0 0.0
    %3053 = vmatprep.subr.mxu0 0.0
    %3054 = vmatpush2.xpose.msra.mxu0 0.0
    %3055 = vmatprep.subr.mxu0 0.0
    %3056 = vmatpush2.xpose.msra.mxu0 0.0
    %3057 = vmatprep.subr.mxu0 0.0
    %3058 = vmatpush2.xpose.msra.mxu0 0.0
    %3059 = vmatprep.subr.mxu0 0.0
    %3060 = vmatpush2.xpose.msra.mxu0 0.0
    %3061 = vmatprep.subr.mxu0 0.0
    %3062 = vmatpush2.xpose.msra.mxu0 0.0
    %3063 = vmatprep.mubr.f32.mxu0 0.0
    %3064 = vmatmul.mubr.f32.gmra.mxu0 %v2991
    %v3065 = vpop.f32.mrf.mxu0
    %v3066 = vadd.f32 0.0, %v3065
    %v3067 = vpop.f32.mrf.mxu0
    %3068 = vmatprep.mubr.f32.mxu0 0.0
    %3069 = vmatmul.mubr.f32.gmra.mxu0 %v2993
    %v3070 = vpop.f32.mrf.mxu0
    %v3071 = vadd.f32 0.0, %v3070
    %v3072 = vpop.f32.mrf.mxu0
    %3073 = vdwg.mxu0
    %3074 = vrot.lane.b32.xlu0 %v2462, 96
    %v3075 = vpop.permute.xlu0 %3074
    %3076 = vrot.lane.b32.xlu0 %v2464, 96
    %v3077 = vpop.permute.xlu0 %3076
    %v3078 = vsel %vm208, %v2462, 0
    %v3080 = vsel %vm208, %v2464, 0
    %v3082 = vsel %vm208, %v3075, 0
    %v3084 = vsel %vm208, %v3077, 0
    %3086 = vmatprep.subr.mxu0 0.0
    %3087 = vmatpush1.xpose.msra.mxu0 0.0
    %3088 = vmatprep.subr.mxu0 0.0
    %3089 = vmatpush1.xpose.msra.mxu0 0.0
    %3090 = vmatprep.subr.mxu0 0.0
    %3091 = vmatpush1.xpose.msra.mxu0 0.0
    %3092 = vmatprep.subr.mxu0 0.0
    %3093 = vmatpush1.xpose.msra.mxu0 0.0
    %3094 = vmatprep.subr.mxu0 0.0
    %3095 = vmatpush1.xpose.msra.mxu0 0.0
    %3096 = vmatprep.subr.mxu0 0.0
    %3097 = vmatpush1.xpose.msra.mxu0 0.0
    %3098 = vmatprep.subr.mxu0 0.0
    %3099 = vmatpush1.xpose.msra.mxu0 0.0
    %3100 = vmatprep.subr.mxu0 0.0
    %3101 = vmatpush1.xpose.msra.mxu0 0.0
    %3102 = vmatprep.subr.mxu0 0.0
    %3103 = vmatpush1.xpose.msra.mxu0 0.0
    %3104 = vmatprep.subr.mxu0 0.0
    %3105 = vmatpush1.xpose.msra.mxu0 0.0
    %3106 = vmatprep.subr.mxu0 0.0
    %3107 = vmatpush1.xpose.msra.mxu0 0.0
    %3108 = vmatprep.subr.mxu0 0.0
    %3109 = vmatpush1.xpose.msra.mxu0 0.0
    %3110 = vmatprep.subr.mxu0 0.0
    %3111 = vmatpush1.xpose.msra.mxu0 0.0
    %3112 = vmatprep.subr.mxu0 0.0
    %3113 = vmatpush1.xpose.msra.mxu0 0.0
    %3114 = vmatprep.subr.mxu0 0.0
    %3115 = vmatpush1.xpose.msra.mxu0 %v3084
    %3116 = vmatprep.subr.mxu0 0.0
    %3117 = vmatpush1.xpose.msra.mxu0 %v3082
    %3118 = vmatprep.subr.mxu0 0.0
    %3119 = vmatpush2.xpose.msra.mxu0 0.0
    %3120 = vmatprep.subr.mxu0 0.0
    %3121 = vmatpush2.xpose.msra.mxu0 0.0
    %3122 = vmatprep.subr.mxu0 0.0
    %3123 = vmatpush2.xpose.msra.mxu0 0.0
    %3124 = vmatprep.subr.mxu0 0.0
    %3125 = vmatpush2.xpose.msra.mxu0 0.0
    %3126 = vmatprep.subr.mxu0 0.0
    %3127 = vmatpush2.xpose.msra.mxu0 0.0
    %3128 = vmatprep.subr.mxu0 0.0
    %3129 = vmatpush2.xpose.msra.mxu0 0.0
    %3130 = vmatprep.subr.mxu0 0.0
    %3131 = vmatpush2.xpose.msra.mxu0 0.0
    %3132 = vmatprep.subr.mxu0 0.0
    %3133 = vmatpush2.xpose.msra.mxu0 0.0
    %3134 = vmatprep.subr.mxu0 0.0
    %3135 = vmatpush2.xpose.msra.mxu0 0.0
    %3136 = vmatprep.subr.mxu0 0.0
    %3137 = vmatpush2.xpose.msra.mxu0 0.0
    %3138 = vmatprep.subr.mxu0 0.0
    %3139 = vmatpush2.xpose.msra.mxu0 0.0
    %3140 = vmatprep.subr.mxu0 0.0
    %3141 = vmatpush2.xpose.msra.mxu0 0.0
    %3142 = vmatprep.subr.mxu0 0.0
    %3143 = vmatpush2.xpose.msra.mxu0 0.0
    %3144 = vmatprep.subr.mxu0 0.0
    %3145 = vmatpush2.xpose.msra.mxu0 0.0
    %3146 = vmatprep.subr.mxu0 0.0
    %3147 = vmatpush2.xpose.msra.mxu0 0.0
    %3148 = vmatprep.subr.mxu0 0.0
    %3149 = vmatpush2.xpose.msra.mxu0 0.0
    %3150 = vmatprep.mubr.f32.mxu0 0.0
    %3151 = vmatmul.mubr.f32.gmra.mxu0 %v3078
    %v3152 = vpop.f32.mrf.mxu0
    %v3153 = vadd.f32 0.0, %v3152
    %v3154 = vpop.f32.mrf.mxu0
    %3155 = vmatprep.mubr.f32.mxu0 0.0
    %3156 = vmatmul.mubr.f32.gmra.mxu0 %v3080
    %v3157 = vpop.f32.mrf.mxu0
    %v3158 = vadd.f32 0.0, %v3157
    %v3159 = vpop.f32.mrf.mxu0
    %3160 = vdwg.mxu0
    %v3161 = vsel %vm901, %v2544, -inf
    %3162 = vmax.xlane.f32.xlu0 %v3161
    %v3163 = vpop.xlane.xlu0 %3162
    %v3164 = vsel %vm901, %v2549, -inf
    %3165 = vmax.xlane.f32.xlu0 %v3164
    %v3166 = vpop.xlane.xlu0 %3165
    %v3167 = vsel %vm901, %v2631, -inf
    %3168 = vmax.xlane.f32.xlu0 %v3167
    %v3169 = vpop.xlane.xlu0 %3168
    %v3170 = vsel %vm901, %v2636, -inf
    %3171 = vmax.xlane.f32.xlu0 %v3170
    %v3172 = vpop.xlane.xlu0 %3171
    %v3173 = vsel %vm901, %v2718, -inf
    %3174 = vmax.xlane.f32.xlu0 %v3173
    %v3175 = vpop.xlane.xlu0 %3174
    %v3176 = vsel %vm901, %v2723, -inf
    %3177 = vmax.xlane.f32.xlu0 %v3176
    %v3178 = vpop.xlane.xlu0 %3177
    %v3179 = vsel %vm901, %v2805, -inf
    %3180 = vmax.xlane.f32.xlu0 %v3179
    %v3181 = vpop.xlane.xlu0 %3180
    %v3182 = vsel %vm901, %v2810, -inf
    %3183 = vmax.xlane.f32.xlu0 %v3182
    %v3184 = vpop.xlane.xlu0 %3183
    %v3185 = vsel %vm901, %v2892, -inf
    %3186 = vmax.xlane.f32.xlu0 %v3185
    %v3187 = vpop.xlane.xlu0 %3186
    %v3188 = vsel %vm901, %v2897, -inf
    %3189 = vmax.xlane.f32.xlu0 %v3188
    %v3190 = vpop.xlane.xlu0 %3189
    %v3191 = vsel %vm901, %v2979, -inf
    %3192 = vmax.xlane.f32.xlu0 %v3191
    %v3193 = vpop.xlane.xlu0 %3192
    %v3194 = vsel %vm901, %v2984, -inf
    %3195 = vmax.xlane.f32.xlu0 %v3194
    %v3196 = vpop.xlane.xlu0 %3195
    %v3197 = vsel %vm901, %v3066, -inf
    %3198 = vmax.xlane.f32.xlu0 %v3197
    %v3199 = vpop.xlane.xlu0 %3198
    %v3200 = vsel %vm901, %v3071, -inf
    %3201 = vmax.xlane.f32.xlu0 %v3200
    %v3202 = vpop.xlane.xlu0 %3201
    %v3203 = vsel %vm901, %v3153, -inf
    %3204 = vmax.xlane.f32.xlu0 %v3203
    %v3205 = vpop.xlane.xlu0 %3204
    %v3206 = vsel %vm901, %v3158, -inf
    %3207 = vmax.xlane.f32.xlu0 %v3206
    %v3208 = vpop.xlane.xlu0 %3207
    %v3209 = vsub.f32 %v2544, %v3163
    %v3210 = vsub.f32 %v2549, %v3166
    %v3211 = vsub.f32 %v2631, %v3169
    %v3212 = vsub.f32 %v2636, %v3172
    %v3213 = vsub.f32 %v2718, %v3175
    %v3214 = vsub.f32 %v2723, %v3178
    %v3215 = vsub.f32 %v2805, %v3181
    %v3216 = vsub.f32 %v2810, %v3184
    %v3217 = vsub.f32 %v2892, %v3187
    %v3218 = vsub.f32 %v2897, %v3190
    %v3219 = vsub.f32 %v2979, %v3193
    %v3220 = vsub.f32 %v2984, %v3196
    %v3221 = vsub.f32 %v3066, %v3199
    %v3222 = vsub.f32 %v3071, %v3202
    %v3223 = vsub.f32 %v3153, %v3205
    %v3224 = vsub.f32 %v3158, %v3208
    %v3225 = vmul.f32 %v3209, 1.442695
    %v3226 = vpow.pop %v3225
    %v3227 = vmul.f32 %v3210, 1.442695
    %v3228 = vpow.pop %v3227
    %v3229 = vmul.f32 %v3211, 1.442695
    %v3230 = vpow.pop %v3229
    %v3231 = vmul.f32 %v3212, 1.442695
    %v3232 = vpow.pop %v3231
    %v3233 = vmul.f32 %v3213, 1.442695
    %v3234 = vpow.pop %v3233
    %v3235 = vmul.f32 %v3214, 1.442695
    %v3236 = vpow.pop %v3235
    %v3237 = vmul.f32 %v3215, 1.442695
    %v3238 = vpow.pop %v3237
    %v3239 = vmul.f32 %v3216, 1.442695
    %v3240 = vpow.pop %v3239
    %v3241 = vmul.f32 %v3217, 1.442695
    %v3242 = vpow.pop %v3241
    %v3243 = vmul.f32 %v3218, 1.442695
    %v3244 = vpow.pop %v3243
    %v3245 = vmul.f32 %v3219, 1.442695
    %v3246 = vpow.pop %v3245
    %v3247 = vmul.f32 %v3220, 1.442695
    %v3248 = vpow.pop %v3247
    %v3249 = vmul.f32 %v3221, 1.442695
    %v3250 = vpow.pop %v3249
    %v3251 = vmul.f32 %v3222, 1.442695
    %v3252 = vpow.pop %v3251
    %v3253 = vmul.f32 %v3223, 1.442695
    %v3254 = vpow.pop %v3253
    %v3255 = vmul.f32 %v3224, 1.442695
    %v3256 = vpow.pop %v3255
    %v3257 = vsel %vm901, %v3226, 0.0
    %3258 = vadd.xlane.f32.xlu0 %v3257
    %v3259 = vpop.xlane.xlu0 %3258
    %v3260 = vsel %vm901, %v3228, 0.0
    %3261 = vadd.xlane.f32.xlu0 %v3260
    %v3262 = vpop.xlane.xlu0 %3261
    %v3263 = vsel %vm901, %v3230, 0.0
    %3264 = vadd.xlane.f32.xlu0 %v3263
    %v3265 = vpop.xlane.xlu0 %3264
    %v3266 = vsel %vm901, %v3232, 0.0
    %3267 = vadd.xlane.f32.xlu0 %v3266
    %v3268 = vpop.xlane.xlu0 %3267
    %v3269 = vsel %vm901, %v3234, 0.0
    %3270 = vadd.xlane.f32.xlu0 %v3269
    %v3271 = vpop.xlane.xlu0 %3270
    %v3272 = vsel %vm901, %v3236, 0.0
    %3273 = vadd.xlane.f32.xlu0 %v3272
    %v3274 = vpop.xlane.xlu0 %3273
    %v3275 = vsel %vm901, %v3238, 0.0
    %3276 = vadd.xlane.f32.xlu0 %v3275
    %v3277 = vpop.xlane.xlu0 %3276
    %v3278 = vsel %vm901, %v3240, 0.0
    %3279 = vadd.xlane.f32.xlu0 %v3278
    %v3280 = vpop.xlane.xlu0 %3279
    %v3281 = vsel %vm901, %v3242, 0.0
    %3282 = vadd.xlane.f32.xlu0 %v3281
    %v3283 = vpop.xlane.xlu0 %3282
    %v3284 = vsel %vm901, %v3244, 0.0
    %3285 = vadd.xlane.f32.xlu0 %v3284
    %v3286 = vpop.xlane.xlu0 %3285
    %v3287 = vsel %vm901, %v3246, 0.0
    %3288 = vadd.xlane.f32.xlu0 %v3287
    %v3289 = vpop.xlane.xlu0 %3288
    %v3290 = vsel %vm901, %v3248, 0.0
    %3291 = vadd.xlane.f32.xlu0 %v3290
    %v3292 = vpop.xlane.xlu0 %3291
    %v3293 = vsel %vm901, %v3250, 0.0
    %3294 = vadd.xlane.f32.xlu0 %v3293
    %v3295 = vpop.xlane.xlu0 %3294
    %v3296 = vsel %vm901, %v3252, 0.0
    %3297 = vadd.xlane.f32.xlu0 %v3296
    %v3298 = vpop.xlane.xlu0 %3297
    %v3299 = vsel %vm901, %v3254, 0.0
    %3300 = vadd.xlane.f32.xlu0 %v3299
    %v3301 = vpop.xlane.xlu0 %3300
    %v3302 = vsel %vm901, %v3256, 0.0
    %3303 = vadd.xlane.f32.xlu0 %v3302
    %v3304 = vpop.xlane.xlu0 %3303
    %v3305 = vrcp.pop %v3259
    %v3306 = vrcp.pop %v3262
    %v3307 = vrcp.pop %v3265
    %v3308 = vrcp.pop %v3268
    %v3309 = vrcp.pop %v3271
    %v3310 = vrcp.pop %v3274
    %v3311 = vrcp.pop %v3277
    %v3312 = vrcp.pop %v3280
    %v3313 = vrcp.pop %v3283
    %v3314 = vrcp.pop %v3286
    %v3315 = vrcp.pop %v3289
    %v3316 = vrcp.pop %v3292
    %v3317 = vrcp.pop %v3295
    %v3318 = vrcp.pop %v3298
    %v3319 = vrcp.pop %v3301
    %v3320 = vrcp.pop %v3304
    %v3321 = vmul.f32 %v3259, %v3305
    %v3322 = vmul.f32 %v3262, %v3306
    %v3323 = vmul.f32 %v3265, %v3307
    %v3324 = vmul.f32 %v3268, %v3308
    %v3325 = vmul.f32 %v3271, %v3309
    %v3326 = vmul.f32 %v3274, %v3310
    %v3327 = vmul.f32 %v3277, %v3311
    %v3328 = vmul.f32 %v3280, %v3312
    %v3329 = vmul.f32 %v3283, %v3313
    %v3330 = vmul.f32 %v3286, %v3314
    %v3331 = vmul.f32 %v3289, %v3315
    %v3332 = vmul.f32 %v3292, %v3316
    %v3333 = vmul.f32 %v3295, %v3317
    %v3334 = vmul.f32 %v3298, %v3318
    %v3335 = vmul.f32 %v3301, %v3319
    %v3336 = vmul.f32 %v3304, %v3320
    %v3337 = vsub.f32 2.0, %v3321
    %v3338 = vsub.f32 2.0, %v3322
    %v3339 = vsub.f32 2.0, %v3323
    %v3340 = vsub.f32 2.0, %v3324
    %v3341 = vsub.f32 2.0, %v3325
    %v3342 = vsub.f32 2.0, %v3326
    %v3343 = vsub.f32 2.0, %v3327
    %v3344 = vsub.f32 2.0, %v3328
    %v3345 = vsub.f32 2.0, %v3329
    %v3346 = vsub.f32 2.0, %v3330
    %v3347 = vsub.f32 2.0, %v3331
    %v3348 = vsub.f32 2.0, %v3332
    %v3349 = vsub.f32 2.0, %v3333
    %v3350 = vsub.f32 2.0, %v3334
    %v3351 = vsub.f32 2.0, %v3335
    %v3352 = vsub.f32 2.0, %v3336
    %v3353 = vmul.f32 %v3305, %v3337
    %v3354 = vmul.f32 %v3306, %v3338
    %v3355 = vmul.f32 %v3307, %v3339
    %v3356 = vmul.f32 %v3308, %v3340
    %v3357 = vmul.f32 %v3309, %v3341
    %v3358 = vmul.f32 %v3310, %v3342
    %v3359 = vmul.f32 %v3311, %v3343
    %v3360 = vmul.f32 %v3312, %v3344
    %v3361 = vmul.f32 %v3313, %v3345
    %v3362 = vmul.f32 %v3314, %v3346
    %v3363 = vmul.f32 %v3315, %v3347
    %v3364 = vmul.f32 %v3316, %v3348
    %v3365 = vmul.f32 %v3317, %v3349
    %v3366 = vmul.f32 %v3318, %v3350
    %v3367 = vmul.f32 %v3319, %v3351
    %v3368 = vmul.f32 %v3320, %v3352
    %v3369 = vmul.f32 %v3226, %v3353
    %v3370 = vmul.f32 %v3228, %v3354
    %v3371 = vmul.f32 %v3230, %v3355
    %v3372 = vmul.f32 %v3232, %v3356
    %v3373 = vmul.f32 %v3234, %v3357
    %v3374 = vmul.f32 %v3236, %v3358
    %v3375 = vmul.f32 %v3238, %v3359
    %v3376 = vmul.f32 %v3240, %v3360
    %v3377 = vmul.f32 %v3242, %v3361
    %v3378 = vmul.f32 %v3244, %v3362
    %v3379 = vmul.f32 %v3246, %v3363
    %v3380 = vmul.f32 %v3248, %v3364
    %v3381 = vmul.f32 %v3250, %v3365
    %v3382 = vmul.f32 %v3252, %v3366
    %v3383 = vmul.f32 %v3254, %v3367
    %v3384 = vmul.f32 %v3256, %v3368
    %3385 = vrot.lane.b32.xlu0 %v2419, 64
    %v3386 = vpop.permute.xlu0 %3385
    %3387 = vrot.lane.b32.xlu0 %v2424, 64
    %v3388 = vpop.permute.xlu0 %3387
    %v3392 = vsel %vm901, %v3369, 0
    %v3395 = vsel %vm901, %v3370, 0
    %3397 = vmatprep.subr.mxu0 0.0
    %3398 = vmatpush1.msra.mxu0 0.0
    %3399 = vmatprep.subr.mxu0 0.0
    %3400 = vmatpush1.msra.mxu0 0.0
    %3401 = vmatprep.subr.mxu0 0.0
    %3402 = vmatpush1.msra.mxu0 0.0
    %3403 = vmatprep.subr.mxu0 0.0
    %3404 = vmatpush1.msra.mxu0 0.0
    %3405 = vmatprep.subr.mxu0 0.0
    %3406 = vmatpush1.msra.mxu0 0.0
    %3407 = vmatprep.subr.mxu0 0.0
    %3408 = vmatpush1.msra.mxu0 0.0
    %3409 = vmatprep.subr.mxu0 0.0
    %3410 = vmatpush1.msra.mxu0 0.0
    %3411 = vmatprep.subr.mxu0 0.0
    %3412 = vmatpush1.msra.mxu0 0.0
    %3413 = vmatprep.subr.mxu0 0.0
    %3414 = vmatpush1.msra.mxu0 0.0
    %3415 = vmatprep.subr.mxu0 0.0
    %3416 = vmatpush1.msra.mxu0 0.0
    %3417 = vmatprep.subr.mxu0 0.0
    %3418 = vmatpush1.msra.mxu0 0.0
    %3419 = vmatprep.subr.mxu0 0.0
    %3420 = vmatpush1.msra.mxu0 0.0
    %3421 = vmatprep.subr.mxu0 0.0
    %3422 = vmatpush1.msra.mxu0 0.0
    %3423 = vmatprep.subr.mxu0 0.0
    %3424 = vmatpush1.msra.mxu0 0.0
    %3425 = vmatprep.subr.mxu0 0.0
    %3426 = vmatpush1.msra.mxu0 %v3388
    %3427 = vmatprep.subr.mxu0 0.0
    %3428 = vmatpush1.msra.mxu0 %v3386
    %3429 = vmatprep.subr.mxu0 0.0
    %3430 = vmatpush2.msra.mxu0 0.0
    %3431 = vmatprep.subr.mxu0 0.0
    %3432 = vmatpush2.msra.mxu0 0.0
    %3433 = vmatprep.subr.mxu0 0.0
    %3434 = vmatpush2.msra.mxu0 0.0
    %3435 = vmatprep.subr.mxu0 0.0
    %3436 = vmatpush2.msra.mxu0 0.0
    %3437 = vmatprep.subr.mxu0 0.0
    %3438 = vmatpush2.msra.mxu0 0.0
    %3439 = vmatprep.subr.mxu0 0.0
    %3440 = vmatpush2.msra.mxu0 0.0
    %3441 = vmatprep.subr.mxu0 0.0
    %3442 = vmatpush2.msra.mxu0 0.0
    %3443 = vmatprep.subr.mxu0 0.0
    %3444 = vmatpush2.msra.mxu0 0.0
    %3445 = vmatprep.subr.mxu0 0.0
    %3446 = vmatpush2.msra.mxu0 0.0
    %3447 = vmatprep.subr.mxu0 0.0
    %3448 = vmatpush2.msra.mxu0 0.0
    %3449 = vmatprep.subr.mxu0 0.0
    %3450 = vmatpush2.msra.mxu0 0.0
    %3451 = vmatprep.subr.mxu0 0.0
    %3452 = vmatpush2.msra.mxu0 0.0
    %3453 = vmatprep.subr.mxu0 0.0
    %3454 = vmatpush2.msra.mxu0 0.0
    %3455 = vmatprep.subr.mxu0 0.0
    %3456 = vmatpush2.msra.mxu0 0.0
    %3457 = vmatprep.subr.mxu0 0.0
    %3458 = vmatpush2.msra.mxu0 0.0
    %3459 = vmatprep.subr.mxu0 0.0
    %3460 = vmatpush2.msra.mxu0 0.0
    %3461 = vmatprep.mubr.f32.mxu0 0.0
    %3462 = vmatmul.mubr.f32.gmra.mxu0 %v3392
    %v3463 = vpop.f32.mrf.mxu0
    %v3464 = vadd.f32 0.0, %v3463
    %v3465 = vpop.f32.mrf.mxu0
    %3466 = vmatprep.mubr.f32.mxu0 0.0
    %3467 = vmatmul.mubr.f32.gmra.mxu0 %v3395
    %v3468 = vpop.f32.mrf.mxu0
    %v3469 = vadd.f32 0.0, %v3468
    %v3470 = vpop.f32.mrf.mxu0
    %3471 = vdwg.mxu0
    %3472 = vrot.lane.b32.xlu0 %v2429, 64
    %v3473 = vpop.permute.xlu0 %3472
    %3474 = vrot.lane.b32.xlu0 %v2434, 64
    %v3475 = vpop.permute.xlu0 %3474
    %v3479 = vsel %vm901, %v3371, 0
    %v3482 = vsel %vm901, %v3372, 0
    %3484 = vmatprep.subr.mxu0 0.0
    %3485 = vmatpush1.msra.mxu0 0.0
    %3486 = vmatprep.subr.mxu0 0.0
    %3487 = vmatpush1.msra.mxu0 0.0
    %3488 = vmatprep.subr.mxu0 0.0
    %3489 = vmatpush1.msra.mxu0 0.0
    %3490 = vmatprep.subr.mxu0 0.0
    %3491 = vmatpush1.msra.mxu0 0.0
    %3492 = vmatprep.subr.mxu0 0.0
    %3493 = vmatpush1.msra.mxu0 0.0
    %3494 = vmatprep.subr.mxu0 0.0
    %3495 = vmatpush1.msra.mxu0 0.0
    %3496 = vmatprep.subr.mxu0 0.0
    %3497 = vmatpush1.msra.mxu0 0.0
    %3498 = vmatprep.subr.mxu0 0.0
    %3499 = vmatpush1.msra.mxu0 0.0
    %3500 = vmatprep.subr.mxu0 0.0
    %3501 = vmatpush1.msra.mxu0 0.0
    %3502 = vmatprep.subr.mxu0 0.0
    %3503 = vmatpush1.msra.mxu0 0.0
    %3504 = vmatprep.subr.mxu0 0.0
    %3505 = vmatpush1.msra.mxu0 0.0
    %3506 = vmatprep.subr.mxu0 0.0
    %3507 = vmatpush1.msra.mxu0 0.0
    %3508 = vmatprep.subr.mxu0 0.0
    %3509 = vmatpush1.msra.mxu0 0.0
    %3510 = vmatprep.subr.mxu0 0.0
    %3511 = vmatpush1.msra.mxu0 0.0
    %3512 = vmatprep.subr.mxu0 0.0
    %3513 = vmatpush1.msra.mxu0 %v3475
    %3514 = vmatprep.subr.mxu0 0.0
    %3515 = vmatpush1.msra.mxu0 %v3473
    %3516 = vmatprep.subr.mxu0 0.0
    %3517 = vmatpush2.msra.mxu0 0.0
    %3518 = vmatprep.subr.mxu0 0.0
    %3519 = vmatpush2.msra.mxu0 0.0
    %3520 = vmatprep.subr.mxu0 0.0
    %3521 = vmatpush2.msra.mxu0 0.0
    %3522 = vmatprep.subr.mxu0 0.0
    %3523 = vmatpush2.msra.mxu0 0.0
    %3524 = vmatprep.subr.mxu0 0.0
    %3525 = vmatpush2.msra.mxu0 0.0
    %3526 = vmatprep.subr.mxu0 0.0
    %3527 = vmatpush2.msra.mxu0 0.0
    %3528 = vmatprep.subr.mxu0 0.0
    %3529 = vmatpush2.msra.mxu0 0.0
    %3530 = vmatprep.subr.mxu0 0.0
    %3531 = vmatpush2.msra.mxu0 0.0
    %3532 = vmatprep.subr.mxu0 0.0
    %3533 = vmatpush2.msra.mxu0 0.0
    %3534 = vmatprep.subr.mxu0 0.0
    %3535 = vmatpush2.msra.mxu0 0.0
    %3536 = vmatprep.subr.mxu0 0.0
    %3537 = vmatpush2.msra.mxu0 0.0
    %3538 = vmatprep.subr.mxu0 0.0
    %3539 = vmatpush2.msra.mxu0 0.0
    %3540 = vmatprep.subr.mxu0 0.0
    %3541 = vmatpush2.msra.mxu0 0.0
    %3542 = vmatprep.subr.mxu0 0.0
    %3543 = vmatpush2.msra.mxu0 0.0
    %3544 = vmatprep.subr.mxu0 0.0
    %3545 = vmatpush2.msra.mxu0 0.0
    %3546 = vmatprep.subr.mxu0 0.0
    %3547 = vmatpush2.msra.mxu0 0.0
    %3548 = vmatprep.mubr.f32.mxu0 0.0
    %3549 = vmatmul.mubr.f32.gmra.mxu0 %v3479
    %v3550 = vpop.f32.mrf.mxu0
    %v3551 = vadd.f32 0.0, %v3550
    %v3552 = vpop.f32.mrf.mxu0
    %3553 = vmatprep.mubr.f32.mxu0 0.0
    %3554 = vmatmul.mubr.f32.gmra.mxu0 %v3482
    %v3555 = vpop.f32.mrf.mxu0
    %v3556 = vadd.f32 0.0, %v3555
    %v3557 = vpop.f32.mrf.mxu0
    %3558 = vdwg.mxu0
    %3559 = vrot.lane.b32.xlu0 %v2442, 64
    %v3560 = vpop.permute.xlu0 %3559
    %3561 = vrot.lane.b32.xlu0 %v2444, 64
    %v3562 = vpop.permute.xlu0 %3561
    %v3566 = vsel %vm901, %v3373, 0
    %v3569 = vsel %vm901, %v3374, 0
    %3571 = vmatprep.subr.mxu0 0.0
    %3572 = vmatpush1.msra.mxu0 0.0
    %3573 = vmatprep.subr.mxu0 0.0
    %3574 = vmatpush1.msra.mxu0 0.0
    %3575 = vmatprep.subr.mxu0 0.0
    %3576 = vmatpush1.msra.mxu0 0.0
    %3577 = vmatprep.subr.mxu0 0.0
    %3578 = vmatpush1.msra.mxu0 0.0
    %3579 = vmatprep.subr.mxu0 0.0
    %3580 = vmatpush1.msra.mxu0 0.0
    %3581 = vmatprep.subr.mxu0 0.0
    %3582 = vmatpush1.msra.mxu0 0.0
    %3583 = vmatprep.subr.mxu0 0.0
    %3584 = vmatpush1.msra.mxu0 0.0
    %3585 = vmatprep.subr.mxu0 0.0
    %3586 = vmatpush1.msra.mxu0 0.0
    %3587 = vmatprep.subr.mxu0 0.0
    %3588 = vmatpush1.msra.mxu0 0.0
    %3589 = vmatprep.subr.mxu0 0.0
    %3590 = vmatpush1.msra.mxu0 0.0
    %3591 = vmatprep.subr.mxu0 0.0
    %3592 = vmatpush1.msra.mxu0 0.0
    %3593 = vmatprep.subr.mxu0 0.0
    %3594 = vmatpush1.msra.mxu0 0.0
    %3595 = vmatprep.subr.mxu0 0.0
    %3596 = vmatpush1.msra.mxu0 0.0
    %3597 = vmatprep.subr.mxu0 0.0
    %3598 = vmatpush1.msra.mxu0 0.0
    %3599 = vmatprep.subr.mxu0 0.0
    %3600 = vmatpush1.msra.mxu0 %v3562
    %3601 = vmatprep.subr.mxu0 0.0
    %3602 = vmatpush1.msra.mxu0 %v3560
    %3603 = vmatprep.subr.mxu0 0.0
    %3604 = vmatpush2.msra.mxu0 0.0
    %3605 = vmatprep.subr.mxu0 0.0
    %3606 = vmatpush2.msra.mxu0 0.0
    %3607 = vmatprep.subr.mxu0 0.0
    %3608 = vmatpush2.msra.mxu0 0.0
    %3609 = vmatprep.subr.mxu0 0.0
    %3610 = vmatpush2.msra.mxu0 0.0
    %3611 = vmatprep.subr.mxu0 0.0
    %3612 = vmatpush2.msra.mxu0 0.0
    %3613 = vmatprep.subr.mxu0 0.0
    %3614 = vmatpush2.msra.mxu0 0.0
    %3615 = vmatprep.subr.mxu0 0.0
    %3616 = vmatpush2.msra.mxu0 0.0
    %3617 = vmatprep.subr.mxu0 0.0
    %3618 = vmatpush2.msra.mxu0 0.0
    %3619 = vmatprep.subr.mxu0 0.0
    %3620 = vmatpush2.msra.mxu0 0.0
    %3621 = vmatprep.subr.mxu0 0.0
    %3622 = vmatpush2.msra.mxu0 0.0
    %3623 = vmatprep.subr.mxu0 0.0
    %3624 = vmatpush2.msra.mxu0 0.0
    %3625 = vmatprep.subr.mxu0 0.0
    %3626 = vmatpush2.msra.mxu0 0.0
    %3627 = vmatprep.subr.mxu0 0.0
    %3628 = vmatpush2.msra.mxu0 0.0
    %3629 = vmatprep.subr.mxu0 0.0
    %3630 = vmatpush2.msra.mxu0 0.0
    %3631 = vmatprep.subr.mxu0 0.0
    %3632 = vmatpush2.msra.mxu0 0.0
    %3633 = vmatprep.subr.mxu0 0.0
    %3634 = vmatpush2.msra.mxu0 0.0
    %3635 = vmatprep.mubr.f32.mxu0 0.0
    %3636 = vmatmul.mubr.f32.gmra.mxu0 %v3566
    %v3637 = vpop.f32.mrf.mxu0
    %v3638 = vadd.f32 0.0, %v3637
    %v3639 = vpop.f32.mrf.mxu0
    %3640 = vmatprep.mubr.f32.mxu0 0.0
    %3641 = vmatmul.mubr.f32.gmra.mxu0 %v3569
    %v3642 = vpop.f32.mrf.mxu0
    %v3643 = vadd.f32 0.0, %v3642
    %v3644 = vpop.f32.mrf.mxu0
    %3645 = vdwg.mxu0
    %3646 = vrot.lane.b32.xlu0 %v2446, 64
    %v3647 = vpop.permute.xlu0 %3646
    %3648 = vrot.lane.b32.xlu0 %v2448, 64
    %v3649 = vpop.permute.xlu0 %3648
    %v3653 = vsel %vm901, %v3375, 0
    %v3656 = vsel %vm901, %v3376, 0
    %3658 = vmatprep.subr.mxu0 0.0
    %3659 = vmatpush1.msra.mxu0 0.0
    %3660 = vmatprep.subr.mxu0 0.0
    %3661 = vmatpush1.msra.mxu0 0.0
    %3662 = vmatprep.subr.mxu0 0.0
    %3663 = vmatpush1.msra.mxu0 0.0
    %3664 = vmatprep.subr.mxu0 0.0
    %3665 = vmatpush1.msra.mxu0 0.0
    %3666 = vmatprep.subr.mxu0 0.0
    %3667 = vmatpush1.msra.mxu0 0.0
    %3668 = vmatprep.subr.mxu0 0.0
    %3669 = vmatpush1.msra.mxu0 0.0
    %3670 = vmatprep.subr.mxu0 0.0
    %3671 = vmatpush1.msra.mxu0 0.0
    %3672 = vmatprep.subr.mxu0 0.0
    %3673 = vmatpush1.msra.mxu0 0.0
    %3674 = vmatprep.subr.mxu0 0.0
    %3675 = vmatpush1.msra.mxu0 0.0
    %3676 = vmatprep.subr.mxu0 0.0
    %3677 = vmatpush1.msra.mxu0 0.0
    %3678 = vmatprep.subr.mxu0 0.0
    %3679 = vmatpush1.msra.mxu0 0.0
    %3680 = vmatprep.subr.mxu0 0.0
    %3681 = vmatpush1.msra.mxu0 0.0
    %3682 = vmatprep.subr.mxu0 0.0
    %3683 = vmatpush1.msra.mxu0 0.0
    %3684 = vmatprep.subr.mxu0 0.0
    %3685 = vmatpush1.msra.mxu0 0.0
    %3686 = vmatprep.subr.mxu0 0.0
    %3687 = vmatpush1.msra.mxu0 %v3649
    %3688 = vmatprep.subr.mxu0 0.0
    %3689 = vmatpush1.msra.mxu0 %v3647
    %3690 = vmatprep.subr.mxu0 0.0
    %3691 = vmatpush2.msra.mxu0 0.0
    %3692 = vmatprep.subr.mxu0 0.0
    %3693 = vmatpush2.msra.mxu0 0.0
    %3694 = vmatprep.subr.mxu0 0.0
    %3695 = vmatpush2.msra.mxu0 0.0
    %3696 = vmatprep.subr.mxu0 0.0
    %3697 = vmatpush2.msra.mxu0 0.0
    %3698 = vmatprep.subr.mxu0 0.0
    %3699 = vmatpush2.msra.mxu0 0.0
    %3700 = vmatprep.subr.mxu0 0.0
    %3701 = vmatpush2.msra.mxu0 0.0
    %3702 = vmatprep.subr.mxu0 0.0
    %3703 = vmatpush2.msra.mxu0 0.0
    %3704 = vmatprep.subr.mxu0 0.0
    %3705 = vmatpush2.msra.mxu0 0.0
    %3706 = vmatprep.subr.mxu0 0.0
    %3707 = vmatpush2.msra.mxu0 0.0
    %3708 = vmatprep.subr.mxu0 0.0
    %3709 = vmatpush2.msra.mxu0 0.0
    %3710 = vmatprep.subr.mxu0 0.0
    %3711 = vmatpush2.msra.mxu0 0.0
    %3712 = vmatprep.subr.mxu0 0.0
    %3713 = vmatpush2.msra.mxu0 0.0
    %3714 = vmatprep.subr.mxu0 0.0
    %3715 = vmatpush2.msra.mxu0 0.0
    %3716 = vmatprep.subr.mxu0 0.0
    %3717 = vmatpush2.msra.mxu0 0.0
    %3718 = vmatprep.subr.mxu0 0.0
    %3719 = vmatpush2.msra.mxu0 0.0
    %3720 = vmatprep.subr.mxu0 0.0
    %3721 = vmatpush2.msra.mxu0 0.0
    %3722 = vmatprep.mubr.f32.mxu0 0.0
    %3723 = vmatmul.mubr.f32.gmra.mxu0 %v3653
    %v3724 = vpop.f32.mrf.mxu0
    %v3725 = vadd.f32 0.0, %v3724
    %v3726 = vpop.f32.mrf.mxu0
    %3727 = vmatprep.mubr.f32.mxu0 0.0
    %3728 = vmatmul.mubr.f32.gmra.mxu0 %v3656
    %v3729 = vpop.f32.mrf.mxu0
    %v3730 = vadd.f32 0.0, %v3729
    %v3731 = vpop.f32.mrf.mxu0
    %3732 = vdwg.mxu0
    %3733 = vrot.lane.b32.xlu0 %v2450, 64
    %v3734 = vpop.permute.xlu0 %3733
    %3735 = vrot.lane.b32.xlu0 %v2452, 64
    %v3736 = vpop.permute.xlu0 %3735
    %v3740 = vsel %vm901, %v3377, 0
    %v3743 = vsel %vm901, %v3378, 0
    %3745 = vmatprep.subr.mxu0 0.0
    %3746 = vmatpush1.msra.mxu0 0.0
    %3747 = vmatprep.subr.mxu0 0.0
    %3748 = vmatpush1.msra.mxu0 0.0
    %3749 = vmatprep.subr.mxu0 0.0
    %3750 = vmatpush1.msra.mxu0 0.0
    %3751 = vmatprep.subr.mxu0 0.0
    %3752 = vmatpush1.msra.mxu0 0.0
    %3753 = vmatprep.subr.mxu0 0.0
    %3754 = vmatpush1.msra.mxu0 0.0
    %3755 = vmatprep.subr.mxu0 0.0
    %3756 = vmatpush1.msra.mxu0 0.0
    %3757 = vmatprep.subr.mxu0 0.0
    %3758 = vmatpush1.msra.mxu0 0.0
    %3759 = vmatprep.subr.mxu0 0.0
    %3760 = vmatpush1.msra.mxu0 0.0
    %3761 = vmatprep.subr.mxu0 0.0
    %3762 = vmatpush1.msra.mxu0 0.0
    %3763 = vmatprep.subr.mxu0 0.0
    %3764 = vmatpush1.msra.mxu0 0.0
    %3765 = vmatprep.subr.mxu0 0.0
    %3766 = vmatpush1.msra.mxu0 0.0
    %3767 = vmatprep.subr.mxu0 0.0
    %3768 = vmatpush1.msra.mxu0 0.0
    %3769 = vmatprep.subr.mxu0 0.0
    %3770 = vmatpush1.msra.mxu0 0.0
    %3771 = vmatprep.subr.mxu0 0.0
    %3772 = vmatpush1.msra.mxu0 0.0
    %3773 = vmatprep.subr.mxu0 0.0
    %3774 = vmatpush1.msra.mxu0 %v3736
    %3775 = vmatprep.subr.mxu0 0.0
    %3776 = vmatpush1.msra.mxu0 %v3734
    %3777 = vmatprep.subr.mxu0 0.0
    %3778 = vmatpush2.msra.mxu0 0.0
    %3779 = vmatprep.subr.mxu0 0.0
    %3780 = vmatpush2.msra.mxu0 0.0
    %3781 = vmatprep.subr.mxu0 0.0
    %3782 = vmatpush2.msra.mxu0 0.0
    %3783 = vmatprep.subr.mxu0 0.0
    %3784 = vmatpush2.msra.mxu0 0.0
    %3785 = vmatprep.subr.mxu0 0.0
    %3786 = vmatpush2.msra.mxu0 0.0
    %3787 = vmatprep.subr.mxu0 0.0
    %3788 = vmatpush2.msra.mxu0 0.0
    %3789 = vmatprep.subr.mxu0 0.0
    %3790 = vmatpush2.msra.mxu0 0.0
    %3791 = vmatprep.subr.mxu0 0.0
    %3792 = vmatpush2.msra.mxu0 0.0
    %3793 = vmatprep.subr.mxu0 0.0
    %3794 = vmatpush2.msra.mxu0 0.0
    %3795 = vmatprep.subr.mxu0 0.0
    %3796 = vmatpush2.msra.mxu0 0.0
    %3797 = vmatprep.subr.mxu0 0.0
    %3798 = vmatpush2.msra.mxu0 0.0
    %3799 = vmatprep.subr.mxu0 0.0
    %3800 = vmatpush2.msra.mxu0 0.0
    %3801 = vmatprep.subr.mxu0 0.0
    %3802 = vmatpush2.msra.mxu0 0.0
    %3803 = vmatprep.subr.mxu0 0.0
    %3804 = vmatpush2.msra.mxu0 0.0
    %3805 = vmatprep.subr.mxu0 0.0
    %3806 = vmatpush2.msra.mxu0 0.0
    %3807 = vmatprep.subr.mxu0 0.0
    %3808 = vmatpush2.msra.mxu0 0.0
    %3809 = vmatprep.mubr.f32.mxu0 0.0
    %3810 = vmatmul.mubr.f32.gmra.mxu0 %v3740
    %v3811 = vpop.f32.mrf.mxu0
    %v3812 = vadd.f32 0.0, %v3811
    %v3813 = vpop.f32.mrf.mxu0
    %3814 = vmatprep.mubr.f32.mxu0 0.0
    %3815 = vmatmul.mubr.f32.gmra.mxu0 %v3743
    %v3816 = vpop.f32.mrf.mxu0
    %v3817 = vadd.f32 0.0, %v3816
    %v3818 = vpop.f32.mrf.mxu0
    %3819 = vdwg.mxu0
    %3820 = vrot.lane.b32.xlu0 %v2454, 64
    %v3821 = vpop.permute.xlu0 %3820
    %3822 = vrot.lane.b32.xlu0 %v2456, 64
    %v3823 = vpop.permute.xlu0 %3822
    %v3827 = vsel %vm901, %v3379, 0
    %v3830 = vsel %vm901, %v3380, 0
    %3832 = vmatprep.subr.mxu0 0.0
    %3833 = vmatpush1.msra.mxu0 0.0
    %3834 = vmatprep.subr.mxu0 0.0
    %3835 = vmatpush1.msra.mxu0 0.0
    %3836 = vmatprep.subr.mxu0 0.0
    %3837 = vmatpush1.msra.mxu0 0.0
    %3838 = vmatprep.subr.mxu0 0.0
    %3839 = vmatpush1.msra.mxu0 0.0
    %3840 = vmatprep.subr.mxu0 0.0
    %3841 = vmatpush1.msra.mxu0 0.0
    %3842 = vmatprep.subr.mxu0 0.0
    %3843 = vmatpush1.msra.mxu0 0.0
    %3844 = vmatprep.subr.mxu0 0.0
    %3845 = vmatpush1.msra.mxu0 0.0
    %3846 = vmatprep.subr.mxu0 0.0
    %3847 = vmatpush1.msra.mxu0 0.0
    %3848 = vmatprep.subr.mxu0 0.0
    %3849 = vmatpush1.msra.mxu0 0.0
    %3850 = vmatprep.subr.mxu0 0.0
    %3851 = vmatpush1.msra.mxu0 0.0
    %3852 = vmatprep.subr.mxu0 0.0
    %3853 = vmatpush1.msra.mxu0 0.0
    %3854 = vmatprep.subr.mxu0 0.0
    %3855 = vmatpush1.msra.mxu0 0.0
    %3856 = vmatprep.subr.mxu0 0.0
    %3857 = vmatpush1.msra.mxu0 0.0
    %3858 = vmatprep.subr.mxu0 0.0
    %3859 = vmatpush1.msra.mxu0 0.0
    %3860 = vmatprep.subr.mxu0 0.0
    %3861 = vmatpush1.msra.mxu0 %v3823
    %3862 = vmatprep.subr.mxu0 0.0
    %3863 = vmatpush1.msra.mxu0 %v3821
    %3864 = vmatprep.subr.mxu0 0.0
    %3865 = vmatpush2.msra.mxu0 0.0
    %3866 = vmatprep.subr.mxu0 0.0
    %3867 = vmatpush2.msra.mxu0 0.0
    %3868 = vmatprep.subr.mxu0 0.0
    %3869 = vmatpush2.msra.mxu0 0.0
    %3870 = vmatprep.subr.mxu0 0.0
    %3871 = vmatpush2.msra.mxu0 0.0
    %3872 = vmatprep.subr.mxu0 0.0
    %3873 = vmatpush2.msra.mxu0 0.0
    %3874 = vmatprep.subr.mxu0 0.0
    %3875 = vmatpush2.msra.mxu0 0.0
    %3876 = vmatprep.subr.mxu0 0.0
    %3877 = vmatpush2.msra.mxu0 0.0
    %3878 = vmatprep.subr.mxu0 0.0
    %3879 = vmatpush2.msra.mxu0 0.0
    %3880 = vmatprep.subr.mxu0 0.0
    %3881 = vmatpush2.msra.mxu0 0.0
    %3882 = vmatprep.subr.mxu0 0.0
    %3883 = vmatpush2.msra.mxu0 0.0
    %3884 = vmatprep.subr.mxu0 0.0
    %3885 = vmatpush2.msra.mxu0 0.0
    %3886 = vmatprep.subr.mxu0 0.0
    %3887 = vmatpush2.msra.mxu0 0.0
    %3888 = vmatprep.subr.mxu0 0.0
    %3889 = vmatpush2.msra.mxu0 0.0
    %3890 = vmatprep.subr.mxu0 0.0
    %3891 = vmatpush2.msra.mxu0 0.0
    %3892 = vmatprep.subr.mxu0 0.0
    %3893 = vmatpush2.msra.mxu0 0.0
    %3894 = vmatprep.subr.mxu0 0.0
    %3895 = vmatpush2.msra.mxu0 0.0
    %3896 = vmatprep.mubr.f32.mxu0 0.0
    %3897 = vmatmul.mubr.f32.gmra.mxu0 %v3827
    %v3898 = vpop.f32.mrf.mxu0
    %v3899 = vadd.f32 0.0, %v3898
    %v3900 = vpop.f32.mrf.mxu0
    %3901 = vmatprep.mubr.f32.mxu0 0.0
    %3902 = vmatmul.mubr.f32.gmra.mxu0 %v3830
    %v3903 = vpop.f32.mrf.mxu0
    %v3904 = vadd.f32 0.0, %v3903
    %v3905 = vpop.f32.mrf.mxu0
    %3906 = vdwg.mxu0
    %3907 = vrot.lane.b32.xlu0 %v2458, 64
    %v3908 = vpop.permute.xlu0 %3907
    %3909 = vrot.lane.b32.xlu0 %v2460, 64
    %v3910 = vpop.permute.xlu0 %3909
    %v3914 = vsel %vm901, %v3381, 0
    %v3917 = vsel %vm901, %v3382, 0
    %3919 = vmatprep.subr.mxu0 0.0
    %3920 = vmatpush1.msra.mxu0 0.0
    %3921 = vmatprep.subr.mxu0 0.0
    %3922 = vmatpush1.msra.mxu0 0.0
    %3923 = vmatprep.subr.mxu0 0.0
    %3924 = vmatpush1.msra.mxu0 0.0
    %3925 = vmatprep.subr.mxu0 0.0
    %3926 = vmatpush1.msra.mxu0 0.0
    %3927 = vmatprep.subr.mxu0 0.0
    %3928 = vmatpush1.msra.mxu0 0.0
    %3929 = vmatprep.subr.mxu0 0.0
    %3930 = vmatpush1.msra.mxu0 0.0
    %3931 = vmatprep.subr.mxu0 0.0
    %3932 = vmatpush1.msra.mxu0 0.0
    %3933 = vmatprep.subr.mxu0 0.0
    %3934 = vmatpush1.msra.mxu0 0.0
    %3935 = vmatprep.subr.mxu0 0.0
    %3936 = vmatpush1.msra.mxu0 0.0
    %3937 = vmatprep.subr.mxu0 0.0
    %3938 = vmatpush1.msra.mxu0 0.0
    %3939 = vmatprep.subr.mxu0 0.0
    %3940 = vmatpush1.msra.mxu0 0.0
    %3941 = vmatprep.subr.mxu0 0.0
    %3942 = vmatpush1.msra.mxu0 0.0
    %3943 = vmatprep.subr.mxu0 0.0
    %3944 = vmatpush1.msra.mxu0 0.0
    %3945 = vmatprep.subr.mxu0 0.0
    %3946 = vmatpush1.msra.mxu0 0.0
    %3947 = vmatprep.subr.mxu0 0.0
    %3948 = vmatpush1.msra.mxu0 %v3910
    %3949 = vmatprep.subr.mxu0 0.0
    %3950 = vmatpush1.msra.mxu0 %v3908
    %3951 = vmatprep.subr.mxu0 0.0
    %3952 = vmatpush2.msra.mxu0 0.0
    %3953 = vmatprep.subr.mxu0 0.0
    %3954 = vmatpush2.msra.mxu0 0.0
    %3955 = vmatprep.subr.mxu0 0.0
    %3956 = vmatpush2.msra.mxu0 0.0
    %3957 = vmatprep.subr.mxu0 0.0
    %3958 = vmatpush2.msra.mxu0 0.0
    %3959 = vmatprep.subr.mxu0 0.0
    %3960 = vmatpush2.msra.mxu0 0.0
    %3961 = vmatprep.subr.mxu0 0.0
    %3962 = vmatpush2.msra.mxu0 0.0
    %3963 = vmatprep.subr.mxu0 0.0
    %3964 = vmatpush2.msra.mxu0 0.0
    %3965 = vmatprep.subr.mxu0 0.0
    %3966 = vmatpush2.msra.mxu0 0.0
    %3967 = vmatprep.subr.mxu0 0.0
    %3968 = vmatpush2.msra.mxu0 0.0
    %3969 = vmatprep.subr.mxu0 0.0
    %3970 = vmatpush2.msra.mxu0 0.0
    %3971 = vmatprep.subr.mxu0 0.0
    %3972 = vmatpush2.msra.mxu0 0.0
    %3973 = vmatprep.subr.mxu0 0.0
    %3974 = vmatpush2.msra.mxu0 0.0
    %3975 = vmatprep.subr.mxu0 0.0
    %3976 = vmatpush2.msra.mxu0 0.0
    %3977 = vmatprep.subr.mxu0 0.0
    %3978 = vmatpush2.msra.mxu0 0.0
    %3979 = vmatprep.subr.mxu0 0.0
    %3980 = vmatpush2.msra.mxu0 0.0
    %3981 = vmatprep.subr.mxu0 0.0
    %3982 = vmatpush2.msra.mxu0 0.0
    %3983 = vmatprep.mubr.f32.mxu0 0.0
    %3984 = vmatmul.mubr.f32.gmra.mxu0 %v3914
    %v3985 = vpop.f32.mrf.mxu0
    %v3986 = vadd.f32 0.0, %v3985
    %v3987 = vpop.f32.mrf.mxu0
    %3988 = vmatprep.mubr.f32.mxu0 0.0
    %3989 = vmatmul.mubr.f32.gmra.mxu0 %v3917
    %v3990 = vpop.f32.mrf.mxu0
    %v3991 = vadd.f32 0.0, %v3990
    %v3992 = vpop.f32.mrf.mxu0
    %3993 = vdwg.mxu0
    %3994 = vrot.lane.b32.xlu0 %v2462, 64
    %v3995 = vpop.permute.xlu0 %3994
    %3996 = vrot.lane.b32.xlu0 %v2464, 64
    %v3997 = vpop.permute.xlu0 %3996
    %v4001 = vsel %vm901, %v3383, 0
    %v4004 = vsel %vm901, %v3384, 0
    %4006 = vmatprep.subr.mxu0 0.0
    %4007 = vmatpush1.msra.mxu0 0.0
    %4008 = vmatprep.subr.mxu0 0.0
    %4009 = vmatpush1.msra.mxu0 0.0
    %4010 = vmatprep.subr.mxu0 0.0
    %4011 = vmatpush1.msra.mxu0 0.0
    %4012 = vmatprep.subr.mxu0 0.0
    %4013 = vmatpush1.msra.mxu0 0.0
    %4014 = vmatprep.subr.mxu0 0.0
    %4015 = vmatpush1.msra.mxu0 0.0
    %4016 = vmatprep.subr.mxu0 0.0
    %4017 = vmatpush1.msra.mxu0 0.0
    %4018 = vmatprep.subr.mxu0 0.0
    %4019 = vmatpush1.msra.mxu0 0.0
    %4020 = vmatprep.subr.mxu0 0.0
    %4021 = vmatpush1.msra.mxu0 0.0
    %4022 = vmatprep.subr.mxu0 0.0
    %4023 = vmatpush1.msra.mxu0 0.0
    %4024 = vmatprep.subr.mxu0 0.0
    %4025 = vmatpush1.msra.mxu0 0.0
    %4026 = vmatprep.subr.mxu0 0.0
    %4027 = vmatpush1.msra.mxu0 0.0
    %4028 = vmatprep.subr.mxu0 0.0
    %4029 = vmatpush1.msra.mxu0 0.0
    %4030 = vmatprep.subr.mxu0 0.0
    %4031 = vmatpush1.msra.mxu0 0.0
    %4032 = vmatprep.subr.mxu0 0.0
    %4033 = vmatpush1.msra.mxu0 0.0
    %4034 = vmatprep.subr.mxu0 0.0
    %4035 = vmatpush1.msra.mxu0 %v3997
    %4036 = vmatprep.subr.mxu0 0.0
    %4037 = vmatpush1.msra.mxu0 %v3995
    %4038 = vmatprep.subr.mxu0 0.0
    %4039 = vmatpush2.msra.mxu0 0.0
    %4040 = vmatprep.subr.mxu0 0.0
    %4041 = vmatpush2.msra.mxu0 0.0
    %4042 = vmatprep.subr.mxu0 0.0
    %4043 = vmatpush2.msra.mxu0 0.0
    %4044 = vmatprep.subr.mxu0 0.0
    %4045 = vmatpush2.msra.mxu0 0.0
    %4046 = vmatprep.subr.mxu0 0.0
    %4047 = vmatpush2.msra.mxu0 0.0
    %4048 = vmatprep.subr.mxu0 0.0
    %4049 = vmatpush2.msra.mxu0 0.0
    %4050 = vmatprep.subr.mxu0 0.0
    %4051 = vmatpush2.msra.mxu0 0.0
    %4052 = vmatprep.subr.mxu0 0.0
    %4053 = vmatpush2.msra.mxu0 0.0
    %4054 = vmatprep.subr.mxu0 0.0
    %4055 = vmatpush2.msra.mxu0 0.0
    %4056 = vmatprep.subr.mxu0 0.0
    %4057 = vmatpush2.msra.mxu0 0.0
    %4058 = vmatprep.subr.mxu0 0.0
    %4059 = vmatpush2.msra.mxu0 0.0
    %4060 = vmatprep.subr.mxu0 0.0
    %4061 = vmatpush2.msra.mxu0 0.0
    %4062 = vmatprep.subr.mxu0 0.0
    %4063 = vmatpush2.msra.mxu0 0.0
    %4064 = vmatprep.subr.mxu0 0.0
    %4065 = vmatpush2.msra.mxu0 0.0
    %4066 = vmatprep.subr.mxu0 0.0
    %4067 = vmatpush2.msra.mxu0 0.0
    %4068 = vmatprep.subr.mxu0 0.0
    %4069 = vmatpush2.msra.mxu0 0.0
    %4070 = vmatprep.mubr.f32.mxu0 0.0
    %4071 = vmatmul.mubr.f32.gmra.mxu0 %v4001
    %v4072 = vpop.f32.mrf.mxu0
    %v4073 = vadd.f32 0.0, %v4072
    %v4074 = vpop.f32.mrf.mxu0
    %4075 = vmatprep.mubr.f32.mxu0 0.0
    %4076 = vmatmul.mubr.f32.gmra.mxu0 %v4004
    %v4077 = vpop.f32.mrf.mxu0
    %v4078 = vadd.f32 0.0, %v4077
    %v4079 = vpop.f32.mrf.mxu0
    %4080 = vdwg.mxu0
    %4085 = vrot.lane.b32.xlu0 %v3638, 8
    %v4086 = vpop.permute.xlu0 %4085
    %4087 = vrot.lane.b32.xlu0 %v3643, 8
    %v4088 = vpop.permute.xlu0 %4087
    %4089 = vrot.lane.b32.xlu0 %v3725, 8
    %v4090 = vpop.permute.xlu0 %4089
    %4091 = vrot.lane.b32.xlu0 %v3730, 8
    %v4092 = vpop.permute.xlu0 %4091
    %4101 = vrot.lane.b32.xlu0 %v3812, 16
    %v4102 = vpop.permute.xlu0 %4101
    %4103 = vrot.lane.b32.xlu0 %v3817, 16
    %v4104 = vpop.permute.xlu0 %4103
    %4105 = vrot.lane.b32.xlu0 %v3899, 16
    %v4106 = vpop.permute.xlu0 %4105
    %4107 = vrot.lane.b32.xlu0 %v3904, 16
    %v4108 = vpop.permute.xlu0 %4107
    %4117 = vrot.lane.b32.xlu0 %v3986, 24
    %v4118 = vpop.permute.xlu0 %4117
    %4119 = vrot.lane.b32.xlu0 %v3991, 24
    %v4120 = vpop.permute.xlu0 %4119
    %4121 = vrot.lane.b32.xlu0 %v4073, 24
    %v4122 = vpop.permute.xlu0 %4121
    %4123 = vrot.lane.b32.xlu0 %v4078, 24
    %v4124 = vpop.permute.xlu0 %4123
    %v4129 = vsel %vm208, %v3464, %v4086
    %v4130 = vsel %vm208, %v3469, %v4088
    %v4131 = vsel %vm208, %v3551, %v4090
    %v4132 = vsel %vm208, %v3556, %v4092
    %v4133 = vsel %vm901, %v4129, %v4102
    %v4134 = vsel %vm901, %v4130, %v4104
    %v4135 = vsel %vm901, %v4131, %v4106
    %v4136 = vsel %vm901, %v4132, %v4108
    %v4137 = vsel %vm1878, %v4133, %v4118
    %v4138 = vsel %vm1878, %v4134, %v4120
    %v4139 = vsel %vm1878, %v4135, %v4122
    %v4140 = vsel %vm1878, %v4136, %v4124
    %v4141 = vld [vmem:[%s1] sm:$0xff]
    %v4142 = vld [vmem:[%s1 + $0x10] sm:$0xff]
    %v4143 = vld [vmem:[%s1 + $0x20] sm:$0xff]
    %v4144 = vld [vmem:[%s1 + $0x30] sm:$0xff]
    %4149 = vrot.lane.b32.xlu0 %v4141, 32
    %v4150 = vpop.permute.xlu0 %4149
    %4151 = vrot.lane.b32.xlu0 %v4142, 32
    %v4152 = vpop.permute.xlu0 %4151
    %4153 = vrot.lane.b32.xlu0 %v4143, 32
    %v4154 = vpop.permute.xlu0 %4153
    %4155 = vrot.lane.b32.xlu0 %v4144, 32
    %v4156 = vpop.permute.xlu0 %4155
    %v4162 = vsel %vm78, %v4137, 0
    %v4165 = vsel %vm78, %v4138, 0
    %v4168 = vsel %vm78, %v4139, 0
    %v4171 = vsel %vm78, %v4140, 0
    %4173 = vmatprep.subr.mxu0 0.0
    %4174 = vmatpush1.msra.mxu0 0.0
    %4175 = vmatprep.subr.mxu0 0.0
    %4176 = vmatpush1.msra.mxu0 0.0
    %4177 = vmatprep.subr.mxu0 0.0
    %4178 = vmatpush1.msra.mxu0 0.0
    %4179 = vmatprep.subr.mxu0 0.0
    %4180 = vmatpush1.msra.mxu0 0.0
    %4181 = vmatprep.subr.mxu0 0.0
    %4182 = vmatpush1.msra.mxu0 0.0
    %4183 = vmatprep.subr.mxu0 0.0
    %4184 = vmatpush1.msra.mxu0 0.0
    %4185 = vmatprep.subr.mxu0 0.0
    %4186 = vmatpush1.msra.mxu0 0.0
    %4187 = vmatprep.subr.mxu0 0.0
    %4188 = vmatpush1.msra.mxu0 0.0
    %4189 = vmatprep.subr.mxu0 0.0
    %4190 = vmatpush1.msra.mxu0 0.0
    %4191 = vmatprep.subr.mxu0 0.0
    %4192 = vmatpush1.msra.mxu0 0.0
    %4193 = vmatprep.subr.mxu0 0.0
    %4194 = vmatpush1.msra.mxu0 0.0
    %4195 = vmatprep.subr.mxu0 0.0
    %4196 = vmatpush1.msra.mxu0 0.0
    %4197 = vmatprep.subr.mxu0 0.0
    %4198 = vmatpush1.msra.mxu0 %v4156
    %4199 = vmatprep.subr.mxu0 0.0
    %4200 = vmatpush1.msra.mxu0 %v4154
    %4201 = vmatprep.subr.mxu0 0.0
    %4202 = vmatpush1.msra.mxu0 %v4152
    %4203 = vmatprep.subr.mxu0 0.0
    %4204 = vmatpush1.msra.mxu0 %v4150
    %4205 = vmatprep.subr.mxu0 0.0
    %4206 = vmatpush2.msra.mxu0 0.0
    %4207 = vmatprep.subr.mxu0 0.0
    %4208 = vmatpush2.msra.mxu0 0.0
    %4209 = vmatprep.subr.mxu0 0.0
    %4210 = vmatpush2.msra.mxu0 0.0
    %4211 = vmatprep.subr.mxu0 0.0
    %4212 = vmatpush2.msra.mxu0 0.0
    %4213 = vmatprep.subr.mxu0 0.0
    %4214 = vmatpush2.msra.mxu0 0.0
    %4215 = vmatprep.subr.mxu0 0.0
    %4216 = vmatpush2.msra.mxu0 0.0
    %4217 = vmatprep.subr.mxu0 0.0
    %4218 = vmatpush2.msra.mxu0 0.0
    %4219 = vmatprep.subr.mxu0 0.0
    %4220 = vmatpush2.msra.mxu0 0.0
    %4221 = vmatprep.subr.mxu0 0.0
    %4222 = vmatpush2.msra.mxu0 0.0
    %4223 = vmatprep.subr.mxu0 0.0
    %4224 = vmatpush2.msra.mxu0 0.0
    %4225 = vmatprep.subr.mxu0 0.0
    %4226 = vmatpush2.msra.mxu0 0.0
    %4227 = vmatprep.subr.mxu0 0.0
    %4228 = vmatpush2.msra.mxu0 0.0
    %4229 = vmatprep.subr.mxu0 0.0
    %4230 = vmatpush2.msra.mxu0 0.0
    %4231 = vmatprep.subr.mxu0 0.0
    %4232 = vmatpush2.msra.mxu0 0.0
    %4233 = vmatprep.subr.mxu0 0.0
    %4234 = vmatpush2.msra.mxu0 0.0
    %4235 = vmatprep.subr.mxu0 0.0
    %4236 = vmatpush2.msra.mxu0 0.0
    %4237 = vmatprep.mubr.f32.mxu0 0.0
    %4238 = vmatmul.mubr.f32.gmra.mxu0 %v4162
    %v4239 = vpop.f32.mrf.mxu0
    %v4240 = vadd.f32 %v43, %v4239
    %v4241 = vpop.f32.mrf.mxu0
    %4242 = vmatprep.mubr.f32.mxu0 0.0
    %4243 = vmatmul.mubr.f32.gmra.mxu0 %v4165
    %v4244 = vpop.f32.mrf.mxu0
    %v4245 = vadd.f32 %v43, %v4244
    %v4246 = vpop.f32.mrf.mxu0
    %4247 = vmatprep.mubr.f32.mxu0 0.0
    %4248 = vmatmul.mubr.f32.gmra.mxu0 %v4168
    %v4249 = vpop.f32.mrf.mxu0
    %v4250 = vadd.f32 %v43, %v4249
    %v4251 = vpop.f32.mrf.mxu0
    %4252 = vmatprep.mubr.f32.mxu0 0.0
    %4253 = vmatmul.mubr.f32.gmra.mxu0 %v4171
    %v4254 = vpop.f32.mrf.mxu0
    %v4255 = vadd.f32 %v43, %v4254
    %v4256 = vpop.f32.mrf.mxu0
    %4257 = vdwg.mxu0
    %v4258 = vadd.f32 %v2336, %v4240
    %v4259 = vadd.f32 %v2337, %v4245
    %v4260 = vadd.f32 %v2338, %v4250
    %v4261 = vadd.f32 %v2339, %v4255
    %v4262 = vsel %vm78, %v4258, 0.0
    %4263 = vadd.xlane.f32.xlu0 %v4262
    %v4264 = vpop.xlane.xlu0 %4263
    %v4265 = vsel %vm78, %v4259, 0.0
    %4266 = vadd.xlane.f32.xlu0 %v4265
    %v4267 = vpop.xlane.xlu0 %4266
    %v4268 = vsel %vm78, %v4260, 0.0
    %4269 = vadd.xlane.f32.xlu0 %v4268
    %v4270 = vpop.xlane.xlu0 %4269
    %v4271 = vsel %vm78, %v4261, 0.0
    %4272 = vadd.xlane.f32.xlu0 %v4271
    %v4273 = vpop.xlane.xlu0 %4272
    %v4274 = vmul.f32 %v4264, %v2016
    %v4275 = vmul.f32 %v4267, %v2016
    %v4276 = vmul.f32 %v4270, %v2016
    %v4277 = vmul.f32 %v4273, %v2016
    %v4278 = vsub.f32 %v4258, %v4274
    %v4279 = vsub.f32 %v4259, %v4275
    %v4280 = vsub.f32 %v4260, %v4276
    %v4281 = vsub.f32 %v4261, %v4277
    %v4282 = vmul.f32 %v4278, %v4278
    %v4283 = vmul.f32 %v4279, %v4279
    %v4284 = vmul.f32 %v4280, %v4280
    %v4285 = vmul.f32 %v4281, %v4281
    %v4286 = vsel %vm78, %v4282, 0.0
    %4287 = vadd.xlane.f32.xlu0 %v4286
    %v4288 = vpop.xlane.xlu0 %4287
    %v4289 = vsel %vm78, %v4283, 0.0
    %4290 = vadd.xlane.f32.xlu0 %v4289
    %v4291 = vpop.xlane.xlu0 %4290
    %v4292 = vsel %vm78, %v4284, 0.0
    %4293 = vadd.xlane.f32.xlu0 %v4292
    %v4294 = vpop.xlane.xlu0 %4293
    %v4295 = vsel %vm78, %v4285, 0.0
    %4296 = vadd.xlane.f32.xlu0 %v4295
    %v4297 = vpop.xlane.xlu0 %4296
    %v4298 = vmul.f32 %v4288, %v2016
    %v4299 = vmul.f32 %v4291, %v2016
    %v4300 = vmul.f32 %v4294, %v2016
    %v4301 = vmul.f32 %v4297, %v2016
    %v4302 = vadd.f32 %v4298, 1e-05
    %v4303 = vadd.f32 %v4299, 1e-05
    %v4304 = vadd.f32 %v4300, 1e-05
    %v4305 = vadd.f32 %v4301, 1e-05
    %v4306 = vrsqrt.pop %v4302
    %v4307 = vrsqrt.pop %v4303
    %v4308 = vrsqrt.pop %v4304
    %v4309 = vrsqrt.pop %v4305
    %v4310 = vmul.f32 %v4278, %v4306
    %v4311 = vmul.f32 %v4279, %v4307
    %v4312 = vmul.f32 %v4280, %v4308
    %v4313 = vmul.f32 %v4281, %v4309
    %v4314 = vmul.f32 %v4310, %v48
    %v4315 = vmul.f32 %v4311, %v48
    %v4316 = vmul.f32 %v4312, %v48
    %v4317 = vmul.f32 %v4313, %v48
    %v4318 = vadd.f32 %v4314, %v53
    %v4319 = vadd.f32 %v4315, %v53
    %v4320 = vadd.f32 %v4316, %v53
    %v4321 = vadd.f32 %v4317, %v53
    %v4322 = vld [vmem:[%s1 + $0x8] sm:$0xff]
    %v4323 = vld [vmem:[%s1 + $0x18] sm:$0xff]
    %v4324 = vld [vmem:[%s1 + $0x28] sm:$0xff]
    %v4325 = vld [vmem:[%s1 + $0x38] sm:$0xff]
    %v4327 = vsel %vm78, %v4318, 0
    %v4330 = vsel %vm78, %v4319, 0
    %v4333 = vsel %vm78, %v4320, 0
    %v4336 = vsel %vm78, %v4321, 0
    %4338 = vmatprep.subr.mxu0 0.0
    %4339 = vmatpush1.msra.mxu0 0.0
    %4340 = vmatprep.subr.mxu0 0.0
    %4341 = vmatpush1.msra.mxu0 0.0
    %4342 = vmatprep.subr.mxu0 0.0
    %4343 = vmatpush1.msra.mxu0 0.0
    %4344 = vmatprep.subr.mxu0 0.0
    %4345 = vmatpush1.msra.mxu0 0.0
    %4346 = vmatprep.subr.mxu0 0.0
    %4347 = vmatpush1.msra.mxu0 0.0
    %4348 = vmatprep.subr.mxu0 0.0
    %4349 = vmatpush1.msra.mxu0 0.0
    %4350 = vmatprep.subr.mxu0 0.0
    %4351 = vmatpush1.msra.mxu0 0.0
    %4352 = vmatprep.subr.mxu0 0.0
    %4353 = vmatpush1.msra.mxu0 0.0
    %4354 = vmatprep.subr.mxu0 0.0
    %4355 = vmatpush1.msra.mxu0 0.0
    %4356 = vmatprep.subr.mxu0 0.0
    %4357 = vmatpush1.msra.mxu0 0.0
    %4358 = vmatprep.subr.mxu0 0.0
    %4359 = vmatpush1.msra.mxu0 0.0
    %4360 = vmatprep.subr.mxu0 0.0
    %4361 = vmatpush1.msra.mxu0 0.0
    %4362 = vmatprep.subr.mxu0 0.0
    %4363 = vmatpush1.msra.mxu0 %v4325
    %4364 = vmatprep.subr.mxu0 0.0
    %4365 = vmatpush1.msra.mxu0 %v4324
    %4366 = vmatprep.subr.mxu0 0.0
    %4367 = vmatpush1.msra.mxu0 %v4323
    %4368 = vmatprep.subr.mxu0 0.0
    %4369 = vmatpush1.msra.mxu0 %v4322
    %4370 = vmatprep.subr.mxu0 0.0
    %4371 = vmatpush2.msra.mxu0 0.0
    %4372 = vmatprep.subr.mxu0 0.0
    %4373 = vmatpush2.msra.mxu0 0.0
    %4374 = vmatprep.subr.mxu0 0.0
    %4375 = vmatpush2.msra.mxu0 0.0
    %4376 = vmatprep.subr.mxu0 0.0
    %4377 = vmatpush2.msra.mxu0 0.0
    %4378 = vmatprep.subr.mxu0 0.0
    %4379 = vmatpush2.msra.mxu0 0.0
    %4380 = vmatprep.subr.mxu0 0.0
    %4381 = vmatpush2.msra.mxu0 0.0
    %4382 = vmatprep.subr.mxu0 0.0
    %4383 = vmatpush2.msra.mxu0 0.0
    %4384 = vmatprep.subr.mxu0 0.0
    %4385 = vmatpush2.msra.mxu0 0.0
    %4386 = vmatprep.subr.mxu0 0.0
    %4387 = vmatpush2.msra.mxu0 0.0
    %4388 = vmatprep.subr.mxu0 0.0
    %4389 = vmatpush2.msra.mxu0 0.0
    %4390 = vmatprep.subr.mxu0 0.0
    %4391 = vmatpush2.msra.mxu0 0.0
    %4392 = vmatprep.subr.mxu0 0.0
    %4393 = vmatpush2.msra.mxu0 0.0
    %4394 = vmatprep.subr.mxu0 0.0
    %4395 = vmatpush2.msra.mxu0 0.0
    %4396 = vmatprep.subr.mxu0 0.0
    %4397 = vmatpush2.msra.mxu0 0.0
    %4398 = vmatprep.subr.mxu0 0.0
    %4399 = vmatpush2.msra.mxu0 0.0
    %4400 = vmatprep.subr.mxu0 0.0
    %4401 = vmatpush2.msra.mxu0 0.0
    %4402 = vmatprep.mubr.f32.mxu0 0.0
    %4403 = vmatmul.mubr.f32.gmra.mxu0 %v4327
    %v4404 = vpop.f32.mrf.mxu0
    %v4405 = vadd.f32 %v58, %v4404
    %v4406 = vpop.f32.mrf.mxu0
    %4407 = vmatprep.mubr.f32.mxu0 0.0
    %4408 = vmatmul.mubr.f32.gmra.mxu0 %v4330
    %v4409 = vpop.f32.mrf.mxu0
    %v4410 = vadd.f32 %v58, %v4409
    %v4411 = vpop.f32.mrf.mxu0
    %4412 = vmatprep.mubr.f32.mxu0 0.0
    %4413 = vmatmul.mubr.f32.gmra.mxu0 %v4333
    %v4414 = vpop.f32.mrf.mxu0
    %v4415 = vadd.f32 %v58, %v4414
    %v4416 = vpop.f32.mrf.mxu0
    %4417 = vmatprep.mubr.f32.mxu0 0.0
    %4418 = vmatmul.mubr.f32.gmra.mxu0 %v4336
    %v4419 = vpop.f32.mrf.mxu0
    %v4420 = vadd.f32 %v58, %v4419
    %v4421 = vpop.f32.mrf.mxu0
    %4422 = vdwg.mxu0
    %v4423 = vmax.f32 %v4405, 0.0
    %v4424 = vmax.f32 %v4410, 0.0
    %v4425 = vmax.f32 %v4415, 0.0
    %v4426 = vmax.f32 %v4420, 0.0
    %v4427 = vld [vmem:[%s2] sm:$0xff]
    %v4428 = vld [vmem:[%s2 + $0x8] sm:$0xff]
    %v4429 = vld [vmem:[%s2 + $0x10] sm:$0xff]
    %v4430 = vld [vmem:[%s2 + $0x18] sm:$0xff]
    %v4431 = vld [vmem:[%s2 + $0x20] sm:$0xff]
    %v4432 = vld [vmem:[%s2 + $0x28] sm:$0xff]
    %v4433 = vld [vmem:[%s2 + $0x30] sm:$0xff]
    %v4434 = vld [vmem:[%s2 + $0x38] sm:$0xff]
    %v4436 = vsel %vm2178, %v4423, 0
    %v4439 = vsel %vm2178, %v4424, 0
    %v4442 = vsel %vm2178, %v4425, 0
    %v4445 = vsel %vm2178, %v4426, 0
    %4447 = vmatprep.subr.mxu0 0.0
    %4448 = vmatpush1.msra.mxu0 0.0
    %4449 = vmatprep.subr.mxu0 0.0
    %4450 = vmatpush1.msra.mxu0 0.0
    %4451 = vmatprep.subr.mxu0 0.0
    %4452 = vmatpush1.msra.mxu0 0.0
    %4453 = vmatprep.subr.mxu0 0.0
    %4454 = vmatpush1.msra.mxu0 0.0
    %4455 = vmatprep.subr.mxu0 0.0
    %4456 = vmatpush1.msra.mxu0 0.0
    %4457 = vmatprep.subr.mxu0 0.0
    %4458 = vmatpush1.msra.mxu0 0.0
    %4459 = vmatprep.subr.mxu0 0.0
    %4460 = vmatpush1.msra.mxu0 0.0
    %4461 = vmatprep.subr.mxu0 0.0
    %4462 = vmatpush1.msra.mxu0 0.0
    %4463 = vmatprep.subr.mxu0 0.0
    %4464 = vmatpush1.msra.mxu0 %v4434
    %4465 = vmatprep.subr.mxu0 0.0
    %4466 = vmatpush1.msra.mxu0 %v4433
    %4467 = vmatprep.subr.mxu0 0.0
    %4468 = vmatpush1.msra.mxu0 %v4432
    %4469 = vmatprep.subr.mxu0 0.0
    %4470 = vmatpush1.msra.mxu0 %v4431
    %4471 = vmatprep.subr.mxu0 0.0
    %4472 = vmatpush1.msra.mxu0 %v4430
    %4473 = vmatprep.subr.mxu0 0.0
    %4474 = vmatpush1.msra.mxu0 %v4429
    %4475 = vmatprep.subr.mxu0 0.0
    %4476 = vmatpush1.msra.mxu0 %v4428
    %4477 = vmatprep.subr.mxu0 0.0
    %4478 = vmatpush1.msra.mxu0 %v4427
    %4479 = vmatprep.subr.mxu0 0.0
    %4480 = vmatpush2.msra.mxu0 0.0
    %4481 = vmatprep.subr.mxu0 0.0
    %4482 = vmatpush2.msra.mxu0 0.0
    %4483 = vmatprep.subr.mxu0 0.0
    %4484 = vmatpush2.msra.mxu0 0.0
    %4485 = vmatprep.subr.mxu0 0.0
    %4486 = vmatpush2.msra.mxu0 0.0
    %4487 = vmatprep.subr.mxu0 0.0
    %4488 = vmatpush2.msra.mxu0 0.0
    %4489 = vmatprep.subr.mxu0 0.0
    %4490 = vmatpush2.msra.mxu0 0.0
    %4491 = vmatprep.subr.mxu0 0.0
    %4492 = vmatpush2.msra.mxu0 0.0
    %4493 = vmatprep.subr.mxu0 0.0
    %4494 = vmatpush2.msra.mxu0 0.0
    %4495 = vmatprep.subr.mxu0 0.0
    %4496 = vmatpush2.msra.mxu0 0.0
    %4497 = vmatprep.subr.mxu0 0.0
    %4498 = vmatpush2.msra.mxu0 0.0
    %4499 = vmatprep.subr.mxu0 0.0
    %4500 = vmatpush2.msra.mxu0 0.0
    %4501 = vmatprep.subr.mxu0 0.0
    %4502 = vmatpush2.msra.mxu0 0.0
    %4503 = vmatprep.subr.mxu0 0.0
    %4504 = vmatpush2.msra.mxu0 0.0
    %4505 = vmatprep.subr.mxu0 0.0
    %4506 = vmatpush2.msra.mxu0 0.0
    %4507 = vmatprep.subr.mxu0 0.0
    %4508 = vmatpush2.msra.mxu0 0.0
    %4509 = vmatprep.subr.mxu0 0.0
    %4510 = vmatpush2.msra.mxu0 0.0
    %4511 = vmatprep.mubr.f32.mxu0 0.0
    %4512 = vmatmul.mubr.f32.gmra.mxu0 %v4436
    %v4513 = vpop.f32.mrf.mxu0
    %v4514 = vadd.f32 %v63, %v4513
    %v4515 = vpop.f32.mrf.mxu0
    %4516 = vmatprep.mubr.f32.mxu0 0.0
    %4517 = vmatmul.mubr.f32.gmra.mxu0 %v4439
    %v4518 = vpop.f32.mrf.mxu0
    %v4519 = vadd.f32 %v63, %v4518
    %v4520 = vpop.f32.mrf.mxu0
    %4521 = vmatprep.mubr.f32.mxu0 0.0
    %4522 = vmatmul.mubr.f32.gmra.mxu0 %v4442
    %v4523 = vpop.f32.mrf.mxu0
    %v4524 = vadd.f32 %v63, %v4523
    %v4525 = vpop.f32.mrf.mxu0
    %4526 = vmatprep.mubr.f32.mxu0 0.0
    %4527 = vmatmul.mubr.f32.gmra.mxu0 %v4445
    %v4528 = vpop.f32.mrf.mxu0
    %v4529 = vadd.f32 %v63, %v4528
    %v4530 = vpop.f32.mrf.mxu0
    %4531 = vdwg.mxu0
    %v4532 = vadd.f32 %v4318, %v4514
    %v4533 = vadd.f32 %v4319, %v4519
    %v4534 = vadd.f32 %v4320, %v4524
    %v4535 = vadd.f32 %v4321, %v4529
    %v4536 = vsel %vm78, %v4532, 0.0
    %4537 = vadd.xlane.f32.xlu0 %v4536
    %v4538 = vpop.xlane.xlu0 %4537
    %v4539 = vsel %vm78, %v4533, 0.0
    %4540 = vadd.xlane.f32.xlu0 %v4539
    %v4541 = vpop.xlane.xlu0 %4540
    %v4542 = vsel %vm78, %v4534, 0.0
    %4543 = vadd.xlane.f32.xlu0 %v4542
    %v4544 = vpop.xlane.xlu0 %4543
    %v4545 = vsel %vm78, %v4535, 0.0
    %4546 = vadd.xlane.f32.xlu0 %v4545
    %v4547 = vpop.xlane.xlu0 %4546
    %v4548 = vmul.f32 %v4538, %v2016
    %v4549 = vmul.f32 %v4541, %v2016
    %v4550 = vmul.f32 %v4544, %v2016
    %v4551 = vmul.f32 %v4547, %v2016
    %v4552 = vsub.f32 %v4532, %v4548
    %v4553 = vsub.f32 %v4533, %v4549
    %v4554 = vsub.f32 %v4534, %v4550
    %v4555 = vsub.f32 %v4535, %v4551
    %v4556 = vmul.f32 %v4552, %v4552
    %v4557 = vmul.f32 %v4553, %v4553
    %v4558 = vmul.f32 %v4554, %v4554
    %v4559 = vmul.f32 %v4555, %v4555
    %v4560 = vsel %vm78, %v4556, 0.0
    %4561 = vadd.xlane.f32.xlu0 %v4560
    %v4562 = vpop.xlane.xlu0 %4561
    %v4563 = vsel %vm78, %v4557, 0.0
    %4564 = vadd.xlane.f32.xlu0 %v4563
    %v4565 = vpop.xlane.xlu0 %4564
    %v4566 = vsel %vm78, %v4558, 0.0
    %4567 = vadd.xlane.f32.xlu0 %v4566
    %v4568 = vpop.xlane.xlu0 %4567
    %v4569 = vsel %vm78, %v4559, 0.0
    %4570 = vadd.xlane.f32.xlu0 %v4569
    %v4571 = vpop.xlane.xlu0 %4570
    %v4572 = vmul.f32 %v4562, %v2016
    %v4573 = vmul.f32 %v4565, %v2016
    %v4574 = vmul.f32 %v4568, %v2016
    %v4575 = vmul.f32 %v4571, %v2016
    %v4576 = vadd.f32 %v4572, 1e-05
    %v4577 = vadd.f32 %v4573, 1e-05
    %v4578 = vadd.f32 %v4574, 1e-05
    %v4579 = vadd.f32 %v4575, 1e-05
    %v4580 = vrsqrt.pop %v4576
    %v4581 = vrsqrt.pop %v4577
    %v4582 = vrsqrt.pop %v4578
    %v4583 = vrsqrt.pop %v4579
    %v4584 = vmul.f32 %v4552, %v4580
    %v4585 = vmul.f32 %v4553, %v4581
    %v4586 = vmul.f32 %v4554, %v4582
    %v4587 = vmul.f32 %v4555, %v4583
    %v4588 = vmul.f32 %v4584, %v68
    %v4589 = vmul.f32 %v4585, %v68
    %v4590 = vmul.f32 %v4586, %v68
    %v4591 = vmul.f32 %v4587, %v68
    %v4592 = vadd.f32 %v4588, %v73
    %v4593 = vadd.f32 %v4589, %v73
    %v4594 = vadd.f32 %v4590, %v73
    %v4595 = vadd.f32 %v4591, %v73
    %4596 = vst.msk [vmem:[#allocation5] sm:$0xff] %vm78, %v4592
    %4597 = vst.msk [vmem:[#allocation5 + $0x8] sm:$0xff] %vm78, %v4593
    %4598 = vst.msk [vmem:[#allocation5 + $0x10] sm:$0xff] %vm78, %v4594
    %4599 = vst.msk [vmem:[#allocation5 + $0x18] sm:$0xff] %vm78, %v4595
    // Predicated region
    $region22: #{transformer_encoder.1} parent=1 // pred_check
      _
    $region23: #{transformer_encoder.1} parent=1 // pred_check_branch
      %4601 = sbr.rel (0) target = $region25
    $region24: #{transformer_encoder.1} parent=1 // pred_region
      %s4603 = ssub.s32 512, 512
      %4604 = vsyncadd [#allocation4], %s4603
      %s4605 = sshll.u32 [#allocation5], 4
      %s4606 = int_to_ptr.vmem [resolvable:$true] %s4605
      %4611 = dma.vmem_to_hbm [thread:$0]  %s4606, 512, %s4, [#allocation4], 128, 128, 8
    $region25: #{transformer_encoder.1} parent=1 // pred_fallthru
      _
    // Predicated region
    $region26: #{transformer_encoder.1} parent=1 // pred_check
      _
    $region27: #{transformer_encoder.1} parent=1 // pred_check_branch
      %4613 = sbr.rel (0) target = $region29
    $region28: #{transformer_encoder.1} parent=1 // pred_region
      %4614 = dma.done [#allocation4], 512
    $region29: #{transformer_encoder.1} parent=1 // pred_fallthru
      _
    %4615 = vsyncpa [#allocation3], 1
    %4616 = vsyncpa [#allocation4], 1

</llo_original>
